<compile_context>
chip_gen: v7x
topology: tpu7x:2x2x1
jax: 0.10.0
libtpu: 0.0.40
codegen_flags: <defaults>
</compile_context>

<pallas_src>
import functools
import math

import jax
import jax.numpy as jnp
from jax.experimental import pallas as pl
from jax.experimental.pallas import tpu as pltpu


def _conv_out(n, k, s):
    return (n - k) // s + 1


# ----------------------------- fused Pallas kernel ---------------------------


def _im2col_rows(h, oh_in, ow_in, k, s):
    """h: (oh_in*ow_in, cin) activation (rows = spatial, row-major; cols = C).

    Returns (oh*ow, k*k*cin) patch matrix with columns ordered (kh, kw, C) and
    rows ordered (oh, ow).  Built from static row slices + concats only (no
    in-kernel reshapes)."""
    oh = (oh_in - k) // s + 1
    ow = (ow_in - k) // s + 1
    taps = []
    for i in range(k):
        for j in range(k):
            rows = []
            for a in range(oh):
                for b in range(ow):
                    r = (a * s + i) * ow_in + (b * s + j)
                    rows.append(h[r:r + 1, :])
            taps.append(rows[0] if len(rows) == 1 else jnp.concatenate(rows, axis=0))
    p = taps[0] if len(taps) == 1 else jnp.concatenate(taps, axis=1)
    return p, oh, ow


def _rainbow_fused_kernel(p1_ref, w1_ref, b1_ref, w2_ref, b2_ref, w3_ref, b3_ref,
                          wva1_ref, bva1_ref, wv2_ref, bv2_ref, wa2_ref, ba2_ref,
                          o_ref, *, oh1, ow1, k2, s2, k3, s3,
                          num_actions, num_atoms):
    f32, bf16 = jnp.float32, jnp.bfloat16

    def mm_bias_relu(p, w_ref, b_ref):
        y = jnp.dot(p.astype(bf16), w_ref[...], preferred_element_type=f32)
        return jnp.maximum(y + b_ref[...], 0.0)

    # conv1 (im2col patches precomputed in the wrapper): (oh1*ow1, 8*8*C)@(., 32)
    h1 = mm_bias_relu(p1_ref[...], w1_ref, b1_ref)                 # (oh1*ow1, 32)

    # conv2 / conv3: in-kernel im2col (static slices) + matmul + bias + ReLU.
    p2, oh2, ow2 = _im2col_rows(h1, oh1, ow1, k2, s2)
    h2 = mm_bias_relu(p2, w2_ref, b2_ref)                          # (oh2*ow2, 64)
    p3, oh3, ow3 = _im2col_rows(h2, oh2, ow2, k3, s3)
    h3 = mm_bias_relu(p3, w3_ref, b3_ref)                          # (oh3*ow3, 64)

    # Flatten conv features to (1, oh3*ow3*C) in (H, W, C) order; wva1 rows
    # were permuted at init so this matches PyTorch's NCHW .view(B, -1).
    rows = [h3[r:r + 1, :] for r in range(oh3 * ow3)]
    feat = rows[0] if len(rows) == 1 else jnp.concatenate(rows, axis=1)

    # Fused noisy_value1 / noisy_advantage1 (concatenated along out features).
    hidden = mm_bias_relu(feat, wva1_ref, bva1_ref)                # (1, 1024)
    hdim = wv2_ref.shape[0]
    value = (jnp.dot(hidden[:, :hdim].astype(bf16), wv2_ref[...],
                     preferred_element_type=f32) + bv2_ref[...])   # (1, atoms)
    adv = (jnp.dot(hidden[:, hdim:].astype(bf16), wa2_ref[...],
                   preferred_element_type=f32) + ba2_ref[...])     # (1, A*atoms)

    # Dueling combine + per-action stable softmax over atoms.
    adv_a = [adv[:, a * num_atoms:(a + 1) * num_atoms] for a in range(num_actions)]
    adv_mean = adv_a[0]
    for a in range(1, num_actions):
        adv_mean = adv_mean + adv_a[a]
    adv_mean = adv_mean * (1.0 / num_actions)

    probs = []
    for a in range(num_actions):
        q = value + adv_a[a] - adv_mean
        q = q - jnp.max(q, axis=-1, keepdims=True)
        e = jnp.exp(q)
        probs.append(e * pl.reciprocal(jnp.sum(e, axis=-1, keepdims=True),
                                       approx=True))
    out = jnp.concatenate(probs, axis=-1)                          # (1, A*atoms)
    o_ref[...] = out[None]                                         # lane-dense store


# ------------------------------- JAX wrappers --------------------------------


def prepare_params(params, input_shape):
    """One-time weight preprocessing: fold 1/255 into conv1, repack conv
    weights to (kh*kw*Cin, O), permute + concat the noisy layer-1 weights to
    the kernel's channel-last feature order, cast GEMM operands to bf16."""
    C, H, W = input_shape
    h3 = _conv_out(_conv_out(_conv_out(H, 8, 4), 4, 2), 3, 1)
    w3 = _conv_out(_conv_out(_conv_out(W, 8, 4), 4, 2), 3, 1)
    c3 = params["c3_w"].shape[0]

    def conv_w(w):  # (O, Cin, kh, kw) -> (kh*kw*Cin, O)
        O, Ci, kh, kw = w.shape
        return jnp.transpose(w, (2, 3, 1, 0)).reshape(kh * kw * Ci, O)

    def nchw_to_nhwc_rows(wt):  # rows indexed (C, H3, W3) -> (H3, W3, C)
        out_f = wt.shape[1]
        return wt.reshape(c3, h3, w3, out_f).transpose(1, 2, 0, 3).reshape(-1, out_f)

    wv1 = nchw_to_nhwc_rows(params["wv1"])
    wa1 = nchw_to_nhwc_rows(params["wa1"])

    f32, bf16 = jnp.float32, jnp.bfloat16
    return {
        "w1": (conv_w(params["c1_w"]) * (1.0 / 255.0)).astype(bf16),
        "b1": params["c1_b"].reshape(1, -1).astype(f32),
        "w2": conv_w(params["c2_w"]).astype(bf16),
        "b2": params["c2_b"].reshape(1, -1).astype(f32),
        "w3": conv_w(params["c3_w"]).astype(bf16),
        "b3": params["c3_b"].reshape(1, -1).astype(f32),
        "wva1": jnp.concatenate([wv1, wa1], axis=1).astype(bf16),
        "bva1": jnp.concatenate([params["bv1"], params["ba1"]]).reshape(1, -1).astype(f32),
        "wv2": params["wv2"].astype(bf16),
        "bv2": params["bv2"].reshape(1, -1).astype(f32),
        "wa2": params["wa2"].astype(bf16),
        "ba2": params["ba2"].reshape(1, -1).astype(f32),
    }


@functools.partial(jax.jit, static_argnames=("input_shape", "num_actions", "num_atoms"))
def rainbow_forward(x, pp, *, input_shape, num_actions, num_atoms):
    B = x.shape[0]
    C, H, W = input_shape
    oh1, ow1 = _conv_out(H, 8, 4), _conv_out(W, 8, 4)

    # conv1 im2col (layout-only glue, stays in XLA): rows ordered (b, oh, ow),
    # columns ordered (kh, kw, C) -> channel-last, lane-dense GEMM input.
    xh = jnp.transpose(x, (0, 2, 3, 1))                            # NHWC
    pats = []
    for i in range(8):
        for j in range(8):
            pats.append(xh[:, i:i + 4 * (oh1 - 1) + 1:4,
                           j:j + 4 * (ow1 - 1) + 1:4, :])          # (B, oh1, ow1, C)
    p1 = jnp.stack(pats, axis=3).reshape(B * oh1 * ow1, 8 * 8 * C)
    p1 = p1.astype(jnp.bfloat16)

    args = (p1, pp["w1"], pp["b1"], pp["w2"], pp["b2"], pp["w3"], pp["b3"],
            pp["wva1"], pp["bva1"], pp["wv2"], pp["bv2"], pp["wa2"], pp["ba2"])
    in_specs = [pl.BlockSpec((oh1 * ow1, p1.shape[1]), lambda b: (b, 0))]
    for a in args[1:]:
        in_specs.append(pl.BlockSpec(a.shape, lambda b: (0, 0)))

    kernel = functools.partial(
        _rainbow_fused_kernel, oh1=oh1, ow1=ow1, k2=4, s2=2, k3=3, s3=1,
        num_actions=num_actions, num_atoms=num_atoms)

    out = pl.pallas_call(
        kernel,
        out_shape=jax.ShapeDtypeStruct((B, 1, num_actions * num_atoms), jnp.float32),
        grid=(B,),
        in_specs=in_specs,
        out_specs=pl.BlockSpec((1, 1, num_actions * num_atoms), lambda b: (b, 0, 0)),
        compiler_params=pltpu.CompilerParams(dimension_semantics=("parallel",)),
    )(*args)
    return out.reshape(B, num_actions, num_atoms)


# ------------------------- parameter init (PyTorch parity) -------------------


def _scale_noise(key, size):
    x = jax.random.normal(key, (size,), dtype=jnp.float32)
    return jnp.sign(x) * jnp.sqrt(jnp.abs(x))


def noisy_linear_params(key, in_f, out_f, std_init=0.5, training=True):
    """Effective NoisyLinear weights (W^T: (in, out)) and bias, replicating
    reset_parameters + factorized-Gaussian reset_noise, training mode."""
    k1, k2, k3, k4, k5 = jax.random.split(key, 5)
    mu_range = 1.0 / math.sqrt(in_f)
    w_mu = jax.random.uniform(k1, (out_f, in_f), minval=-mu_range, maxval=mu_range)
    b_mu = jax.random.uniform(k2, (out_f,), minval=-mu_range, maxval=mu_range)
    w_sigma = jnp.full((out_f, in_f), std_init / math.sqrt(in_f), jnp.float32)
    b_sigma = jnp.full((out_f,), std_init / math.sqrt(out_f), jnp.float32)
    eps_in = _scale_noise(k3, in_f)
    eps_out = _scale_noise(k4, out_f)
    if training:
        w = w_mu + w_sigma * jnp.outer(eps_out, eps_in)
        b = b_mu + b_sigma * _scale_noise(k5, out_f)
    else:
        w, b = w_mu, b_mu
    return w.T.astype(jnp.float32), b.astype(jnp.float32)


def conv_params(key, out_c, in_c, k):
    k1, k2 = jax.random.split(key)
    bound = 1.0 / math.sqrt(in_c * k * k)
    w = jax.random.uniform(k1, (out_c, in_c, k, k), minval=-bound, maxval=bound)
    b = jax.random.uniform(k2, (out_c,), minval=-bound, maxval=bound)
    return w.astype(jnp.float32), b.astype(jnp.float32)


def init_params(key, input_shape, num_actions, num_atoms):
    C, H, W = input_shape
    h3 = _conv_out(_conv_out(_conv_out(H, 8, 4), 4, 2), 3, 1)
    w3 = _conv_out(_conv_out(_conv_out(W, 8, 4), 4, 2), 3, 1)
    feat_size = 64 * h3 * w3
    keys = jax.random.split(key, 7)
    p = {}
    p["c1_w"], p["c1_b"] = conv_params(keys[0], 32, C, 8)
    p["c2_w"], p["c2_b"] = conv_params(keys[1], 64, 32, 4)
    p["c3_w"], p["c3_b"] = conv_params(keys[2], 64, 64, 3)
    p["wv1"], p["bv1"] = noisy_linear_params(keys[3], feat_size, 512)
    p["wv2"], p["bv2"] = noisy_linear_params(keys[4], 512, num_atoms)
    p["wa1"], p["ba1"] = noisy_linear_params(keys[5], feat_size, 512)
    p["wa2"], p["ba2"] = noisy_linear_params(keys[6], 512, num_atoms * num_actions)
    return p, feat_size


def reference_forward(x, params, num_actions, num_atoms):
    """Pure-JAX f32 reference replicating the PyTorch module (for checking)."""
    def conv(h, w, b, stride):
        y = jax.lax.conv_general_dilated(
            h, w, window_strides=(stride, stride), padding="VALID",
            dimension_numbers=("NCHW", "OIHW", "NCHW"))
        return jax.nn.relu(y + b.reshape(1, -1, 1, 1))

    h = conv(x / 255.0, params["c1_w"], params["c1_b"], 4)
    h = conv(h, params["c2_w"], params["c2_b"], 2)
    h = conv(h, params["c3_w"], params["c3_b"], 1)
    feat = h.reshape(x.shape[0], -1)
    v = jax.nn.relu(feat @ params["wv1"] + params["bv1"]) @ params["wv2"] + params["bv2"]
    a = jax.nn.relu(feat @ params["wa1"] + params["ba1"]) @ params["wa2"] + params["ba2"]
    v = v.reshape(-1, 1, num_atoms)
    a = a.reshape(-1, num_actions, num_atoms)
    q = v + a - a.mean(axis=1, keepdims=True)
    return jax.nn.softmax(q, axis=-1)


# ----------------------------------- main ------------------------------------


if __name__ == "__main__":
    key = jax.random.PRNGKey(0)
    k_params, k_x = jax.random.split(key)

    # Small shapes consistent with the module: 4 stacked frames, 36x36 image
    # (conv stack 36 -> 8 -> 3 -> 1 => feature size 64), 4 actions, 51 atoms.
    input_shape = (4, 36, 36)
    batch, num_actions, num_atoms = 2, 4, 51

    params, feat_size = init_params(k_params, input_shape, num_actions, num_atoms)
    pp = prepare_params(params, input_shape)
    x = jax.random.uniform(k_x, (batch,) + input_shape,
                           minval=0.0, maxval=255.0, dtype=jnp.float32)

    out = rainbow_forward(x, pp, input_shape=input_shape,
                          num_actions=num_actions, num_atoms=num_atoms)
    out = jax.block_until_ready(out)

    assert out.shape == (batch, num_actions, num_atoms)
    # Each (b, a) row is a softmax distribution over atoms.
    sums = jnp.sum(out, axis=-1)
    assert bool(jnp.all(jnp.abs(sums - 1.0) < 1e-2)), sums
    # Cross-check against a pure-JAX f32 reference (bf16 / approx-recip slack).
    ref = reference_forward(x, params, num_actions, num_atoms)
    max_err = float(jnp.max(jnp.abs(out - ref)))
    assert max_err < 5e-3, max_err

    print("KERNEL_OK")
</pallas_src>

<mosaic_0001>
module attributes {stable_mosaic.version = 11 : i64} {
  func.func @_rainbow_fused_kernel(%arg0: i32, %arg1: memref<64x256xbf16, #tpu.memory_space<vmem>>, %arg2: memref<256x32xbf16, #tpu.memory_space<vmem>>, %arg3: memref<1x32xf32, #tpu.memory_space<vmem>>, %arg4: memref<512x64xbf16, #tpu.memory_space<vmem>>, %arg5: memref<1x64xf32, #tpu.memory_space<vmem>>, %arg6: memref<576x64xbf16, #tpu.memory_space<vmem>>, %arg7: memref<1x64xf32, #tpu.memory_space<vmem>>, %arg8: memref<64x1024xbf16, #tpu.memory_space<vmem>>, %arg9: memref<1x1024xf32, #tpu.memory_space<vmem>>, %arg10: memref<512x51xbf16, #tpu.memory_space<vmem>>, %arg11: memref<1x51xf32, #tpu.memory_space<vmem>>, %arg12: memref<512x204xbf16, #tpu.memory_space<vmem>>, %arg13: memref<1x204xf32, #tpu.memory_space<vmem>>, %arg14: memref<1x1x204xf32, #tpu.memory_space<vmem>>) attributes {dimension_semantics = [#tpu.dimension_semantics<parallel>], iteration_bounds = array<i64: 2>, scalar_prefetch = 0 : i64, scratch_operands = 0 : i64, tpu.core_type = #tpu.core_type<tc>, window_params = [{transform_indices = @transform_0, window_bounds = array<i64: 64, 256>}, {pipeline_mode = #tpu.pipeline_mode<synchronous>, transform_indices = @transform_1, window_bounds = array<i64: 256, 32>}, {pipeline_mode = #tpu.pipeline_mode<synchronous>, transform_indices = @transform_2, window_bounds = array<i64: 1, 32>}, {pipeline_mode = #tpu.pipeline_mode<synchronous>, transform_indices = @transform_3, window_bounds = array<i64: 512, 64>}, {pipeline_mode = #tpu.pipeline_mode<synchronous>, transform_indices = @transform_4, window_bounds = array<i64: 1, 64>}, {pipeline_mode = #tpu.pipeline_mode<synchronous>, transform_indices = @transform_5, window_bounds = array<i64: 576, 64>}, {pipeline_mode = #tpu.pipeline_mode<synchronous>, transform_indices = @transform_6, window_bounds = array<i64: 1, 64>}, {pipeline_mode = #tpu.pipeline_mode<synchronous>, transform_indices = @transform_7, window_bounds = array<i64: 64, 1024>}, {pipeline_mode = #tpu.pipeline_mode<synchronous>, transform_indices = @transform_8, window_bounds = array<i64: 1, 1024>}, {pipeline_mode = #tpu.pipeline_mode<synchronous>, transform_indices = @transform_9, window_bounds = array<i64: 512, 51>}, {pipeline_mode = #tpu.pipeline_mode<synchronous>, transform_indices = @transform_10, window_bounds = array<i64: 1, 51>}, {pipeline_mode = #tpu.pipeline_mode<synchronous>, transform_indices = @transform_11, window_bounds = array<i64: 512, 204>}, {pipeline_mode = #tpu.pipeline_mode<synchronous>, transform_indices = @transform_12, window_bounds = array<i64: 1, 204>}, {transform_indices = @transform_13, window_bounds = array<i64: 1, 1, 204>}]} {
    %c0 = arith.constant 0 : index
    %c0_0 = arith.constant 0 : index
    %0 = vector.load %arg1[%c0, %c0_0] : memref<64x256xbf16, #tpu.memory_space<vmem>>, vector<64x256xbf16>
    %c0_1 = arith.constant 0 : index
    %c0_2 = arith.constant 0 : index
    %1 = vector.load %arg2[%c0_1, %c0_2] : memref<256x32xbf16, #tpu.memory_space<vmem>>, vector<256x32xbf16>
    %cst = arith.constant dense<0.000000e+00> : vector<64x32xf32>
    %2 = tpu.matmul %0, %1, %cst {dimension_numbers = #tpu.dot_dimension_numbers<[1], [0], [0], [1], [0, 0, 1, 1], [], []>} : vector<64x256xbf16>, vector<256x32xbf16>, vector<64x32xf32> -> vector<64x32xf32>
    %c0_3 = arith.constant 0 : index
    %c0_4 = arith.constant 0 : index
    %3 = vector.load %arg3[%c0_3, %c0_4] : memref<1x32xf32, #tpu.memory_space<vmem>>, vector<1x32xf32>
    %4 = vector.broadcast %3 : vector<1x32xf32> to vector<64x32xf32>
    %5 = arith.addf %2, %4 : vector<64x32xf32>
    %cst_5 = arith.constant 0.000000e+00 : f32
    %6 = vector.broadcast %cst_5 : f32 to vector<64x32xf32>
    %7 = arith.maximumf %5, %6 : vector<64x32xf32>
    %8 = vector.extract_strided_slice %7 {offsets = [0, 0], sizes = [1, 32], strides = [1, 1]} : vector<64x32xf32> to vector<1x32xf32>
    %9 = vector.extract_strided_slice %7 {offsets = [2, 0], sizes = [1, 32], strides = [1, 1]} : vector<64x32xf32> to vector<1x32xf32>
    %10 = vector.extract_strided_slice %7 {offsets = [4, 0], sizes = [1, 32], strides = [1, 1]} : vector<64x32xf32> to vector<1x32xf32>
    %11 = vector.extract_strided_slice %7 {offsets = [16, 0], sizes = [1, 32], strides = [1, 1]} : vector<64x32xf32> to vector<1x32xf32>
    %12 = vector.extract_strided_slice %7 {offsets = [18, 0], sizes = [1, 32], strides = [1, 1]} : vector<64x32xf32> to vector<1x32xf32>
    %13 = vector.extract_strided_slice %7 {offsets = [20, 0], sizes = [1, 32], strides = [1, 1]} : vector<64x32xf32> to vector<1x32xf32>
    %14 = vector.extract_strided_slice %7 {offsets = [32, 0], sizes = [1, 32], strides = [1, 1]} : vector<64x32xf32> to vector<1x32xf32>
    %15 = vector.extract_strided_slice %7 {offsets = [34, 0], sizes = [1, 32], strides = [1, 1]} : vector<64x32xf32> to vector<1x32xf32>
    %16 = vector.extract_strided_slice %7 {offsets = [36, 0], sizes = [1, 32], strides = [1, 1]} : vector<64x32xf32> to vector<1x32xf32>
    %17 = tpu.concatenate %8, %9, %10, %11, %12, %13, %14, %15, %16 in 0 : vector<1x32xf32>, vector<1x32xf32>, vector<1x32xf32>, vector<1x32xf32>, vector<1x32xf32>, vector<1x32xf32>, vector<1x32xf32>, vector<1x32xf32>, vector<1x32xf32> -> vector<9x32xf32>
    %18 = vector.extract_strided_slice %7 {offsets = [1, 0], sizes = [1, 32], strides = [1, 1]} : vector<64x32xf32> to vector<1x32xf32>
    %19 = vector.extract_strided_slice %7 {offsets = [3, 0], sizes = [1, 32], strides = [1, 1]} : vector<64x32xf32> to vector<1x32xf32>
    %20 = vector.extract_strided_slice %7 {offsets = [5, 0], sizes = [1, 32], strides = [1, 1]} : vector<64x32xf32> to vector<1x32xf32>
    %21 = vector.extract_strided_slice %7 {offsets = [17, 0], sizes = [1, 32], strides = [1, 1]} : vector<64x32xf32> to vector<1x32xf32>
    %22 = vector.extract_strided_slice %7 {offsets = [19, 0], sizes = [1, 32], strides = [1, 1]} : vector<64x32xf32> to vector<1x32xf32>
    %23 = vector.extract_strided_slice %7 {offsets = [21, 0], sizes = [1, 32], strides = [1, 1]} : vector<64x32xf32> to vector<1x32xf32>
    %24 = vector.extract_strided_slice %7 {offsets = [33, 0], sizes = [1, 32], strides = [1, 1]} : vector<64x32xf32> to vector<1x32xf32>
    %25 = vector.extract_strided_slice %7 {offsets = [35, 0], sizes = [1, 32], strides = [1, 1]} : vector<64x32xf32> to vector<1x32xf32>
    %26 = vector.extract_strided_slice %7 {offsets = [37, 0], sizes = [1, 32], strides = [1, 1]} : vector<64x32xf32> to vector<1x32xf32>
    %27 = tpu.concatenate %18, %19, %20, %21, %22, %23, %24, %25, %26 in 0 : vector<1x32xf32>, vector<1x32xf32>, vector<1x32xf32>, vector<1x32xf32>, vector<1x32xf32>, vector<1x32xf32>, vector<1x32xf32>, vector<1x32xf32>, vector<1x32xf32> -> vector<9x32xf32>
    %28 = vector.extract_strided_slice %7 {offsets = [2, 0], sizes = [1, 32], strides = [1, 1]} : vector<64x32xf32> to vector<1x32xf32>
    %29 = vector.extract_strided_slice %7 {offsets = [4, 0], sizes = [1, 32], strides = [1, 1]} : vector<64x32xf32> to vector<1x32xf32>
    %30 = vector.extract_strided_slice %7 {offsets = [6, 0], sizes = [1, 32], strides = [1, 1]} : vector<64x32xf32> to vector<1x32xf32>
    %31 = vector.extract_strided_slice %7 {offsets = [18, 0], sizes = [1, 32], strides = [1, 1]} : vector<64x32xf32> to vector<1x32xf32>
    %32 = vector.extract_strided_slice %7 {offsets = [20, 0], sizes = [1, 32], strides = [1, 1]} : vector<64x32xf32> to vector<1x32xf32>
    %33 = vector.extract_strided_slice %7 {offsets = [22, 0], sizes = [1, 32], strides = [1, 1]} : vector<64x32xf32> to vector<1x32xf32>
    %34 = vector.extract_strided_slice %7 {offsets = [34, 0], sizes = [1, 32], strides = [1, 1]} : vector<64x32xf32> to vector<1x32xf32>
    %35 = vector.extract_strided_slice %7 {offsets = [36, 0], sizes = [1, 32], strides = [1, 1]} : vector<64x32xf32> to vector<1x32xf32>
    %36 = vector.extract_strided_slice %7 {offsets = [38, 0], sizes = [1, 32], strides = [1, 1]} : vector<64x32xf32> to vector<1x32xf32>
    %37 = tpu.concatenate %28, %29, %30, %31, %32, %33, %34, %35, %36 in 0 : vector<1x32xf32>, vector<1x32xf32>, vector<1x32xf32>, vector<1x32xf32>, vector<1x32xf32>, vector<1x32xf32>, vector<1x32xf32>, vector<1x32xf32>, vector<1x32xf32> -> vector<9x32xf32>
    %38 = vector.extract_strided_slice %7 {offsets = [3, 0], sizes = [1, 32], strides = [1, 1]} : vector<64x32xf32> to vector<1x32xf32>
    %39 = vector.extract_strided_slice %7 {offsets = [5, 0], sizes = [1, 32], strides = [1, 1]} : vector<64x32xf32> to vector<1x32xf32>
    %40 = vector.extract_strided_slice %7 {offsets = [7, 0], sizes = [1, 32], strides = [1, 1]} : vector<64x32xf32> to vector<1x32xf32>
    %41 = vector.extract_strided_slice %7 {offsets = [19, 0], sizes = [1, 32], strides = [1, 1]} : vector<64x32xf32> to vector<1x32xf32>
    %42 = vector.extract_strided_slice %7 {offsets = [21, 0], sizes = [1, 32], strides = [1, 1]} : vector<64x32xf32> to vector<1x32xf32>
    %43 = vector.extract_strided_slice %7 {offsets = [23, 0], sizes = [1, 32], strides = [1, 1]} : vector<64x32xf32> to vector<1x32xf32>
    %44 = vector.extract_strided_slice %7 {offsets = [35, 0], sizes = [1, 32], strides = [1, 1]} : vector<64x32xf32> to vector<1x32xf32>
    %45 = vector.extract_strided_slice %7 {offsets = [37, 0], sizes = [1, 32], strides = [1, 1]} : vector<64x32xf32> to vector<1x32xf32>
    %46 = vector.extract_strided_slice %7 {offsets = [39, 0], sizes = [1, 32], strides = [1, 1]} : vector<64x32xf32> to vector<1x32xf32>
    %47 = tpu.concatenate %38, %39, %40, %41, %42, %43, %44, %45, %46 in 0 : vector<1x32xf32>, vector<1x32xf32>, vector<1x32xf32>, vector<1x32xf32>, vector<1x32xf32>, vector<1x32xf32>, vector<1x32xf32>, vector<1x32xf32>, vector<1x32xf32> -> vector<9x32xf32>
    %48 = vector.extract_strided_slice %7 {offsets = [8, 0], sizes = [1, 32], strides = [1, 1]} : vector<64x32xf32> to vector<1x32xf32>
    %49 = vector.extract_strided_slice %7 {offsets = [10, 0], sizes = [1, 32], strides = [1, 1]} : vector<64x32xf32> to vector<1x32xf32>
    %50 = vector.extract_strided_slice %7 {offsets = [12, 0], sizes = [1, 32], strides = [1, 1]} : vector<64x32xf32> to vector<1x32xf32>
    %51 = vector.extract_strided_slice %7 {offsets = [24, 0], sizes = [1, 32], strides = [1, 1]} : vector<64x32xf32> to vector<1x32xf32>
    %52 = vector.extract_strided_slice %7 {offsets = [26, 0], sizes = [1, 32], strides = [1, 1]} : vector<64x32xf32> to vector<1x32xf32>
    %53 = vector.extract_strided_slice %7 {offsets = [28, 0], sizes = [1, 32], strides = [1, 1]} : vector<64x32xf32> to vector<1x32xf32>
    %54 = vector.extract_strided_slice %7 {offsets = [40, 0], sizes = [1, 32], strides = [1, 1]} : vector<64x32xf32> to vector<1x32xf32>
    %55 = vector.extract_strided_slice %7 {offsets = [42, 0], sizes = [1, 32], strides = [1, 1]} : vector<64x32xf32> to vector<1x32xf32>
    %56 = vector.extract_strided_slice %7 {offsets = [44, 0], sizes = [1, 32], strides = [1, 1]} : vector<64x32xf32> to vector<1x32xf32>
    %57 = tpu.concatenate %48, %49, %50, %51, %52, %53, %54, %55, %56 in 0 : vector<1x32xf32>, vector<1x32xf32>, vector<1x32xf32>, vector<1x32xf32>, vector<1x32xf32>, vector<1x32xf32>, vector<1x32xf32>, vector<1x32xf32>, vector<1x32xf32> -> vector<9x32xf32>
    %58 = vector.extract_strided_slice %7 {offsets = [9, 0], sizes = [1, 32], strides = [1, 1]} : vector<64x32xf32> to vector<1x32xf32>
    %59 = vector.extract_strided_slice %7 {offsets = [11, 0], sizes = [1, 32], strides = [1, 1]} : vector<64x32xf32> to vector<1x32xf32>
    %60 = vector.extract_strided_slice %7 {offsets = [13, 0], sizes = [1, 32], strides = [1, 1]} : vector<64x32xf32> to vector<1x32xf32>
    %61 = vector.extract_strided_slice %7 {offsets = [25, 0], sizes = [1, 32], strides = [1, 1]} : vector<64x32xf32> to vector<1x32xf32>
    %62 = vector.extract_strided_slice %7 {offsets = [27, 0], sizes = [1, 32], strides = [1, 1]} : vector<64x32xf32> to vector<1x32xf32>
    %63 = vector.extract_strided_slice %7 {offsets = [29, 0], sizes = [1, 32], strides = [1, 1]} : vector<64x32xf32> to vector<1x32xf32>
    %64 = vector.extract_strided_slice %7 {offsets = [41, 0], sizes = [1, 32], strides = [1, 1]} : vector<64x32xf32> to vector<1x32xf32>
    %65 = vector.extract_strided_slice %7 {offsets = [43, 0], sizes = [1, 32], strides = [1, 1]} : vector<64x32xf32> to vector<1x32xf32>
    %66 = vector.extract_strided_slice %7 {offsets = [45, 0], sizes = [1, 32], strides = [1, 1]} : vector<64x32xf32> to vector<1x32xf32>
    %67 = tpu.concatenate %58, %59, %60, %61, %62, %63, %64, %65, %66 in 0 : vector<1x32xf32>, vector<1x32xf32>, vector<1x32xf32>, vector<1x32xf32>, vector<1x32xf32>, vector<1x32xf32>, vector<1x32xf32>, vector<1x32xf32>, vector<1x32xf32> -> vector<9x32xf32>
    %68 = vector.extract_strided_slice %7 {offsets = [10, 0], sizes = [1, 32], strides = [1, 1]} : vector<64x32xf32> to vector<1x32xf32>
    %69 = vector.extract_strided_slice %7 {offsets = [12, 0], sizes = [1, 32], strides = [1, 1]} : vector<64x32xf32> to vector<1x32xf32>
    %70 = vector.extract_strided_slice %7 {offsets = [14, 0], sizes = [1, 32], strides = [1, 1]} : vector<64x32xf32> to vector<1x32xf32>
    %71 = vector.extract_strided_slice %7 {offsets = [26, 0], sizes = [1, 32], strides = [1, 1]} : vector<64x32xf32> to vector<1x32xf32>
    %72 = vector.extract_strided_slice %7 {offsets = [28, 0], sizes = [1, 32], strides = [1, 1]} : vector<64x32xf32> to vector<1x32xf32>
    %73 = vector.extract_strided_slice %7 {offsets = [30, 0], sizes = [1, 32], strides = [1, 1]} : vector<64x32xf32> to vector<1x32xf32>
    %74 = vector.extract_strided_slice %7 {offsets = [42, 0], sizes = [1, 32], strides = [1, 1]} : vector<64x32xf32> to vector<1x32xf32>
    %75 = vector.extract_strided_slice %7 {offsets = [44, 0], sizes = [1, 32], strides = [1, 1]} : vector<64x32xf32> to vector<1x32xf32>
    %76 = vector.extract_strided_slice %7 {offsets = [46, 0], sizes = [1, 32], strides = [1, 1]} : vector<64x32xf32> to vector<1x32xf32>
    %77 = tpu.concatenate %68, %69, %70, %71, %72, %73, %74, %75, %76 in 0 : vector<1x32xf32>, vector<1x32xf32>, vector<1x32xf32>, vector<1x32xf32>, vector<1x32xf32>, vector<1x32xf32>, vector<1x32xf32>, vector<1x32xf32>, vector<1x32xf32> -> vector<9x32xf32>
    %78 = vector.extract_strided_slice %7 {offsets = [11, 0], sizes = [1, 32], strides = [1, 1]} : vector<64x32xf32> to vector<1x32xf32>
    %79 = vector.extract_strided_slice %7 {offsets = [13, 0], sizes = [1, 32], strides = [1, 1]} : vector<64x32xf32> to vector<1x32xf32>
    %80 = vector.extract_strided_slice %7 {offsets = [15, 0], sizes = [1, 32], strides = [1, 1]} : vector<64x32xf32> to vector<1x32xf32>
    %81 = vector.extract_strided_slice %7 {offsets = [27, 0], sizes = [1, 32], strides = [1, 1]} : vector<64x32xf32> to vector<1x32xf32>
    %82 = vector.extract_strided_slice %7 {offsets = [29, 0], sizes = [1, 32], strides = [1, 1]} : vector<64x32xf32> to vector<1x32xf32>
    %83 = vector.extract_strided_slice %7 {offsets = [31, 0], sizes = [1, 32], strides = [1, 1]} : vector<64x32xf32> to vector<1x32xf32>
    %84 = vector.extract_strided_slice %7 {offsets = [43, 0], sizes = [1, 32], strides = [1, 1]} : vector<64x32xf32> to vector<1x32xf32>
    %85 = vector.extract_strided_slice %7 {offsets = [45, 0], sizes = [1, 32], strides = [1, 1]} : vector<64x32xf32> to vector<1x32xf32>
    %86 = vector.extract_strided_slice %7 {offsets = [47, 0], sizes = [1, 32], strides = [1, 1]} : vector<64x32xf32> to vector<1x32xf32>
    %87 = tpu.concatenate %78, %79, %80, %81, %82, %83, %84, %85, %86 in 0 : vector<1x32xf32>, vector<1x32xf32>, vector<1x32xf32>, vector<1x32xf32>, vector<1x32xf32>, vector<1x32xf32>, vector<1x32xf32>, vector<1x32xf32>, vector<1x32xf32> -> vector<9x32xf32>
    %88 = vector.extract_strided_slice %7 {offsets = [16, 0], sizes = [1, 32], strides = [1, 1]} : vector<64x32xf32> to vector<1x32xf32>
    %89 = vector.extract_strided_slice %7 {offsets = [18, 0], sizes = [1, 32], strides = [1, 1]} : vector<64x32xf32> to vector<1x32xf32>
    %90 = vector.extract_strided_slice %7 {offsets = [20, 0], sizes = [1, 32], strides = [1, 1]} : vector<64x32xf32> to vector<1x32xf32>
    %91 = vector.extract_strided_slice %7 {offsets = [32, 0], sizes = [1, 32], strides = [1, 1]} : vector<64x32xf32> to vector<1x32xf32>
    %92 = vector.extract_strided_slice %7 {offsets = [34, 0], sizes = [1, 32], strides = [1, 1]} : vector<64x32xf32> to vector<1x32xf32>
    %93 = vector.extract_strided_slice %7 {offsets = [36, 0], sizes = [1, 32], strides = [1, 1]} : vector<64x32xf32> to vector<1x32xf32>
    %94 = vector.extract_strided_slice %7 {offsets = [48, 0], sizes = [1, 32], strides = [1, 1]} : vector<64x32xf32> to vector<1x32xf32>
    %95 = vector.extract_strided_slice %7 {offsets = [50, 0], sizes = [1, 32], strides = [1, 1]} : vector<64x32xf32> to vector<1x32xf32>
    %96 = vector.extract_strided_slice %7 {offsets = [52, 0], sizes = [1, 32], strides = [1, 1]} : vector<64x32xf32> to vector<1x32xf32>
    %97 = tpu.concatenate %88, %89, %90, %91, %92, %93, %94, %95, %96 in 0 : vector<1x32xf32>, vector<1x32xf32>, vector<1x32xf32>, vector<1x32xf32>, vector<1x32xf32>, vector<1x32xf32>, vector<1x32xf32>, vector<1x32xf32>, vector<1x32xf32> -> vector<9x32xf32>
    %98 = vector.extract_strided_slice %7 {offsets = [17, 0], sizes = [1, 32], strides = [1, 1]} : vector<64x32xf32> to vector<1x32xf32>
    %99 = vector.extract_strided_slice %7 {offsets = [19, 0], sizes = [1, 32], strides = [1, 1]} : vector<64x32xf32> to vector<1x32xf32>
    %100 = vector.extract_strided_slice %7 {offsets = [21, 0], sizes = [1, 32], strides = [1, 1]} : vector<64x32xf32> to vector<1x32xf32>
    %101 = vector.extract_strided_slice %7 {offsets = [33, 0], sizes = [1, 32], strides = [1, 1]} : vector<64x32xf32> to vector<1x32xf32>
    %102 = vector.extract_strided_slice %7 {offsets = [35, 0], sizes = [1, 32], strides = [1, 1]} : vector<64x32xf32> to vector<1x32xf32>
    %103 = vector.extract_strided_slice %7 {offsets = [37, 0], sizes = [1, 32], strides = [1, 1]} : vector<64x32xf32> to vector<1x32xf32>
    %104 = vector.extract_strided_slice %7 {offsets = [49, 0], sizes = [1, 32], strides = [1, 1]} : vector<64x32xf32> to vector<1x32xf32>
    %105 = vector.extract_strided_slice %7 {offsets = [51, 0], sizes = [1, 32], strides = [1, 1]} : vector<64x32xf32> to vector<1x32xf32>
    %106 = vector.extract_strided_slice %7 {offsets = [53, 0], sizes = [1, 32], strides = [1, 1]} : vector<64x32xf32> to vector<1x32xf32>
    %107 = tpu.concatenate %98, %99, %100, %101, %102, %103, %104, %105, %106 in 0 : vector<1x32xf32>, vector<1x32xf32>, vector<1x32xf32>, vector<1x32xf32>, vector<1x32xf32>, vector<1x32xf32>, vector<1x32xf32>, vector<1x32xf32>, vector<1x32xf32> -> vector<9x32xf32>
    %108 = vector.extract_strided_slice %7 {offsets = [18, 0], sizes = [1, 32], strides = [1, 1]} : vector<64x32xf32> to vector<1x32xf32>
    %109 = vector.extract_strided_slice %7 {offsets = [20, 0], sizes = [1, 32], strides = [1, 1]} : vector<64x32xf32> to vector<1x32xf32>
    %110 = vector.extract_strided_slice %7 {offsets = [22, 0], sizes = [1, 32], strides = [1, 1]} : vector<64x32xf32> to vector<1x32xf32>
    %111 = vector.extract_strided_slice %7 {offsets = [34, 0], sizes = [1, 32], strides = [1, 1]} : vector<64x32xf32> to vector<1x32xf32>
    %112 = vector.extract_strided_slice %7 {offsets = [36, 0], sizes = [1, 32], strides = [1, 1]} : vector<64x32xf32> to vector<1x32xf32>
    %113 = vector.extract_strided_slice %7 {offsets = [38, 0], sizes = [1, 32], strides = [1, 1]} : vector<64x32xf32> to vector<1x32xf32>
    %114 = vector.extract_strided_slice %7 {offsets = [50, 0], sizes = [1, 32], strides = [1, 1]} : vector<64x32xf32> to vector<1x32xf32>
    %115 = vector.extract_strided_slice %7 {offsets = [52, 0], sizes = [1, 32], strides = [1, 1]} : vector<64x32xf32> to vector<1x32xf32>
    %116 = vector.extract_strided_slice %7 {offsets = [54, 0], sizes = [1, 32], strides = [1, 1]} : vector<64x32xf32> to vector<1x32xf32>
    %117 = tpu.concatenate %108, %109, %110, %111, %112, %113, %114, %115, %116 in 0 : vector<1x32xf32>, vector<1x32xf32>, vector<1x32xf32>, vector<1x32xf32>, vector<1x32xf32>, vector<1x32xf32>, vector<1x32xf32>, vector<1x32xf32>, vector<1x32xf32> -> vector<9x32xf32>
    %118 = vector.extract_strided_slice %7 {offsets = [19, 0], sizes = [1, 32], strides = [1, 1]} : vector<64x32xf32> to vector<1x32xf32>
    %119 = vector.extract_strided_slice %7 {offsets = [21, 0], sizes = [1, 32], strides = [1, 1]} : vector<64x32xf32> to vector<1x32xf32>
    %120 = vector.extract_strided_slice %7 {offsets = [23, 0], sizes = [1, 32], strides = [1, 1]} : vector<64x32xf32> to vector<1x32xf32>
    %121 = vector.extract_strided_slice %7 {offsets = [35, 0], sizes = [1, 32], strides = [1, 1]} : vector<64x32xf32> to vector<1x32xf32>
    %122 = vector.extract_strided_slice %7 {offsets = [37, 0], sizes = [1, 32], strides = [1, 1]} : vector<64x32xf32> to vector<1x32xf32>
    %123 = vector.extract_strided_slice %7 {offsets = [39, 0], sizes = [1, 32], strides = [1, 1]} : vector<64x32xf32> to vector<1x32xf32>
    %124 = vector.extract_strided_slice %7 {offsets = [51, 0], sizes = [1, 32], strides = [1, 1]} : vector<64x32xf32> to vector<1x32xf32>
    %125 = vector.extract_strided_slice %7 {offsets = [53, 0], sizes = [1, 32], strides = [1, 1]} : vector<64x32xf32> to vector<1x32xf32>
    %126 = vector.extract_strided_slice %7 {offsets = [55, 0], sizes = [1, 32], strides = [1, 1]} : vector<64x32xf32> to vector<1x32xf32>
    %127 = tpu.concatenate %118, %119, %120, %121, %122, %123, %124, %125, %126 in 0 : vector<1x32xf32>, vector<1x32xf32>, vector<1x32xf32>, vector<1x32xf32>, vector<1x32xf32>, vector<1x32xf32>, vector<1x32xf32>, vector<1x32xf32>, vector<1x32xf32> -> vector<9x32xf32>
    %128 = vector.extract_strided_slice %7 {offsets = [24, 0], sizes = [1, 32], strides = [1, 1]} : vector<64x32xf32> to vector<1x32xf32>
    %129 = vector.extract_strided_slice %7 {offsets = [26, 0], sizes = [1, 32], strides = [1, 1]} : vector<64x32xf32> to vector<1x32xf32>
    %130 = vector.extract_strided_slice %7 {offsets = [28, 0], sizes = [1, 32], strides = [1, 1]} : vector<64x32xf32> to vector<1x32xf32>
    %131 = vector.extract_strided_slice %7 {offsets = [40, 0], sizes = [1, 32], strides = [1, 1]} : vector<64x32xf32> to vector<1x32xf32>
    %132 = vector.extract_strided_slice %7 {offsets = [42, 0], sizes = [1, 32], strides = [1, 1]} : vector<64x32xf32> to vector<1x32xf32>
    %133 = vector.extract_strided_slice %7 {offsets = [44, 0], sizes = [1, 32], strides = [1, 1]} : vector<64x32xf32> to vector<1x32xf32>
    %134 = vector.extract_strided_slice %7 {offsets = [56, 0], sizes = [1, 32], strides = [1, 1]} : vector<64x32xf32> to vector<1x32xf32>
    %135 = vector.extract_strided_slice %7 {offsets = [58, 0], sizes = [1, 32], strides = [1, 1]} : vector<64x32xf32> to vector<1x32xf32>
    %136 = vector.extract_strided_slice %7 {offsets = [60, 0], sizes = [1, 32], strides = [1, 1]} : vector<64x32xf32> to vector<1x32xf32>
    %137 = tpu.concatenate %128, %129, %130, %131, %132, %133, %134, %135, %136 in 0 : vector<1x32xf32>, vector<1x32xf32>, vector<1x32xf32>, vector<1x32xf32>, vector<1x32xf32>, vector<1x32xf32>, vector<1x32xf32>, vector<1x32xf32>, vector<1x32xf32> -> vector<9x32xf32>
    %138 = vector.extract_strided_slice %7 {offsets = [25, 0], sizes = [1, 32], strides = [1, 1]} : vector<64x32xf32> to vector<1x32xf32>
    %139 = vector.extract_strided_slice %7 {offsets = [27, 0], sizes = [1, 32], strides = [1, 1]} : vector<64x32xf32> to vector<1x32xf32>
    %140 = vector.extract_strided_slice %7 {offsets = [29, 0], sizes = [1, 32], strides = [1, 1]} : vector<64x32xf32> to vector<1x32xf32>
    %141 = vector.extract_strided_slice %7 {offsets = [41, 0], sizes = [1, 32], strides = [1, 1]} : vector<64x32xf32> to vector<1x32xf32>
    %142 = vector.extract_strided_slice %7 {offsets = [43, 0], sizes = [1, 32], strides = [1, 1]} : vector<64x32xf32> to vector<1x32xf32>
    %143 = vector.extract_strided_slice %7 {offsets = [45, 0], sizes = [1, 32], strides = [1, 1]} : vector<64x32xf32> to vector<1x32xf32>
    %144 = vector.extract_strided_slice %7 {offsets = [57, 0], sizes = [1, 32], strides = [1, 1]} : vector<64x32xf32> to vector<1x32xf32>
    %145 = vector.extract_strided_slice %7 {offsets = [59, 0], sizes = [1, 32], strides = [1, 1]} : vector<64x32xf32> to vector<1x32xf32>
    %146 = vector.extract_strided_slice %7 {offsets = [61, 0], sizes = [1, 32], strides = [1, 1]} : vector<64x32xf32> to vector<1x32xf32>
    %147 = tpu.concatenate %138, %139, %140, %141, %142, %143, %144, %145, %146 in 0 : vector<1x32xf32>, vector<1x32xf32>, vector<1x32xf32>, vector<1x32xf32>, vector<1x32xf32>, vector<1x32xf32>, vector<1x32xf32>, vector<1x32xf32>, vector<1x32xf32> -> vector<9x32xf32>
    %148 = vector.extract_strided_slice %7 {offsets = [26, 0], sizes = [1, 32], strides = [1, 1]} : vector<64x32xf32> to vector<1x32xf32>
    %149 = vector.extract_strided_slice %7 {offsets = [28, 0], sizes = [1, 32], strides = [1, 1]} : vector<64x32xf32> to vector<1x32xf32>
    %150 = vector.extract_strided_slice %7 {offsets = [30, 0], sizes = [1, 32], strides = [1, 1]} : vector<64x32xf32> to vector<1x32xf32>
    %151 = vector.extract_strided_slice %7 {offsets = [42, 0], sizes = [1, 32], strides = [1, 1]} : vector<64x32xf32> to vector<1x32xf32>
    %152 = vector.extract_strided_slice %7 {offsets = [44, 0], sizes = [1, 32], strides = [1, 1]} : vector<64x32xf32> to vector<1x32xf32>
    %153 = vector.extract_strided_slice %7 {offsets = [46, 0], sizes = [1, 32], strides = [1, 1]} : vector<64x32xf32> to vector<1x32xf32>
    %154 = vector.extract_strided_slice %7 {offsets = [58, 0], sizes = [1, 32], strides = [1, 1]} : vector<64x32xf32> to vector<1x32xf32>
    %155 = vector.extract_strided_slice %7 {offsets = [60, 0], sizes = [1, 32], strides = [1, 1]} : vector<64x32xf32> to vector<1x32xf32>
    %156 = vector.extract_strided_slice %7 {offsets = [62, 0], sizes = [1, 32], strides = [1, 1]} : vector<64x32xf32> to vector<1x32xf32>
    %157 = tpu.concatenate %148, %149, %150, %151, %152, %153, %154, %155, %156 in 0 : vector<1x32xf32>, vector<1x32xf32>, vector<1x32xf32>, vector<1x32xf32>, vector<1x32xf32>, vector<1x32xf32>, vector<1x32xf32>, vector<1x32xf32>, vector<1x32xf32> -> vector<9x32xf32>
    %158 = vector.extract_strided_slice %7 {offsets = [27, 0], sizes = [1, 32], strides = [1, 1]} : vector<64x32xf32> to vector<1x32xf32>
    %159 = vector.extract_strided_slice %7 {offsets = [29, 0], sizes = [1, 32], strides = [1, 1]} : vector<64x32xf32> to vector<1x32xf32>
    %160 = vector.extract_strided_slice %7 {offsets = [31, 0], sizes = [1, 32], strides = [1, 1]} : vector<64x32xf32> to vector<1x32xf32>
    %161 = vector.extract_strided_slice %7 {offsets = [43, 0], sizes = [1, 32], strides = [1, 1]} : vector<64x32xf32> to vector<1x32xf32>
    %162 = vector.extract_strided_slice %7 {offsets = [45, 0], sizes = [1, 32], strides = [1, 1]} : vector<64x32xf32> to vector<1x32xf32>
    %163 = vector.extract_strided_slice %7 {offsets = [47, 0], sizes = [1, 32], strides = [1, 1]} : vector<64x32xf32> to vector<1x32xf32>
    %164 = vector.extract_strided_slice %7 {offsets = [59, 0], sizes = [1, 32], strides = [1, 1]} : vector<64x32xf32> to vector<1x32xf32>
    %165 = vector.extract_strided_slice %7 {offsets = [61, 0], sizes = [1, 32], strides = [1, 1]} : vector<64x32xf32> to vector<1x32xf32>
    %166 = vector.extract_strided_slice %7 {offsets = [63, 0], sizes = [1, 32], strides = [1, 1]} : vector<64x32xf32> to vector<1x32xf32>
    %167 = tpu.concatenate %158, %159, %160, %161, %162, %163, %164, %165, %166 in 0 : vector<1x32xf32>, vector<1x32xf32>, vector<1x32xf32>, vector<1x32xf32>, vector<1x32xf32>, vector<1x32xf32>, vector<1x32xf32>, vector<1x32xf32>, vector<1x32xf32> -> vector<9x32xf32>
    %168 = tpu.concatenate %17, %27, %37, %47, %57, %67, %77, %87, %97, %107, %117, %127, %137, %147, %157, %167 in 1 : vector<9x32xf32>, vector<9x32xf32>, vector<9x32xf32>, vector<9x32xf32>, vector<9x32xf32>, vector<9x32xf32>, vector<9x32xf32>, vector<9x32xf32>, vector<9x32xf32>, vector<9x32xf32>, vector<9x32xf32>, vector<9x32xf32>, vector<9x32xf32>, vector<9x32xf32>, vector<9x32xf32>, vector<9x32xf32> -> vector<9x512xf32>
    %169 = arith.truncf %168 : vector<9x512xf32> to vector<9x512xbf16>
    %c0_6 = arith.constant 0 : index
    %c0_7 = arith.constant 0 : index
    %170 = vector.load %arg4[%c0_6, %c0_7] : memref<512x64xbf16, #tpu.memory_space<vmem>>, vector<512x64xbf16>
    %cst_8 = arith.constant dense<0.000000e+00> : vector<9x64xf32>
    %171 = tpu.matmul %169, %170, %cst_8 {dimension_numbers = #tpu.dot_dimension_numbers<[1], [0], [0], [1], [0, 0, 1, 1], [], []>} : vector<9x512xbf16>, vector<512x64xbf16>, vector<9x64xf32> -> vector<9x64xf32>
    %c0_9 = arith.constant 0 : index
    %c0_10 = arith.constant 0 : index
    %172 = vector.load %arg5[%c0_9, %c0_10] : memref<1x64xf32, #tpu.memory_space<vmem>>, vector<1x64xf32>
    %173 = vector.broadcast %172 : vector<1x64xf32> to vector<9x64xf32>
    %174 = arith.addf %171, %173 : vector<9x64xf32>
    %cst_11 = arith.constant 0.000000e+00 : f32
    %175 = vector.broadcast %cst_11 : f32 to vector<9x64xf32>
    %176 = arith.maximumf %174, %175 : vector<9x64xf32>
    %177 = vector.extract_strided_slice %176 {offsets = [0, 0], sizes = [1, 64], strides = [1, 1]} : vector<9x64xf32> to vector<1x64xf32>
    %178 = vector.extract_strided_slice %176 {offsets = [1, 0], sizes = [1, 64], strides = [1, 1]} : vector<9x64xf32> to vector<1x64xf32>
    %179 = vector.extract_strided_slice %176 {offsets = [2, 0], sizes = [1, 64], strides = [1, 1]} : vector<9x64xf32> to vector<1x64xf32>
    %180 = vector.extract_strided_slice %176 {offsets = [3, 0], sizes = [1, 64], strides = [1, 1]} : vector<9x64xf32> to vector<1x64xf32>
    %181 = vector.extract_strided_slice %176 {offsets = [4, 0], sizes = [1, 64], strides = [1, 1]} : vector<9x64xf32> to vector<1x64xf32>
    %182 = vector.extract_strided_slice %176 {offsets = [5, 0], sizes = [1, 64], strides = [1, 1]} : vector<9x64xf32> to vector<1x64xf32>
    %183 = vector.extract_strided_slice %176 {offsets = [6, 0], sizes = [1, 64], strides = [1, 1]} : vector<9x64xf32> to vector<1x64xf32>
    %184 = vector.extract_strided_slice %176 {offsets = [7, 0], sizes = [1, 64], strides = [1, 1]} : vector<9x64xf32> to vector<1x64xf32>
    %185 = vector.extract_strided_slice %176 {offsets = [8, 0], sizes = [1, 64], strides = [1, 1]} : vector<9x64xf32> to vector<1x64xf32>
    %186 = tpu.concatenate %177, %178, %179, %180, %181, %182, %183, %184, %185 in 1 : vector<1x64xf32>, vector<1x64xf32>, vector<1x64xf32>, vector<1x64xf32>, vector<1x64xf32>, vector<1x64xf32>, vector<1x64xf32>, vector<1x64xf32>, vector<1x64xf32> -> vector<1x576xf32>
    %187 = arith.truncf %186 : vector<1x576xf32> to vector<1x576xbf16>
    %c0_12 = arith.constant 0 : index
    %c0_13 = arith.constant 0 : index
    %188 = vector.load %arg6[%c0_12, %c0_13] : memref<576x64xbf16, #tpu.memory_space<vmem>>, vector<576x64xbf16>
    %cst_14 = arith.constant dense<0.000000e+00> : vector<1x64xf32>
    %189 = tpu.matmul %187, %188, %cst_14 {dimension_numbers = #tpu.dot_dimension_numbers<[1], [0], [0], [1], [0, 0, 1, 1], [], []>} : vector<1x576xbf16>, vector<576x64xbf16>, vector<1x64xf32> -> vector<1x64xf32>
    %c0_15 = arith.constant 0 : index
    %c0_16 = arith.constant 0 : index
    %190 = vector.load %arg7[%c0_15, %c0_16] : memref<1x64xf32, #tpu.memory_space<vmem>>, vector<1x64xf32>
    %191 = arith.addf %189, %190 : vector<1x64xf32>
    %cst_17 = arith.constant 0.000000e+00 : f32
    %192 = vector.broadcast %cst_17 : f32 to vector<1x64xf32>
    %193 = arith.maximumf %191, %192 : vector<1x64xf32>
    %194 = arith.truncf %193 : vector<1x64xf32> to vector<1x64xbf16>
    %c0_18 = arith.constant 0 : index
    %c0_19 = arith.constant 0 : index
    %195 = vector.load %arg8[%c0_18, %c0_19] : memref<64x1024xbf16, #tpu.memory_space<vmem>>, vector<64x1024xbf16>
    %cst_20 = arith.constant dense<0.000000e+00> : vector<1x1024xf32>
    %196 = tpu.matmul %194, %195, %cst_20 {dimension_numbers = #tpu.dot_dimension_numbers<[1], [0], [0], [1], [0, 0, 1, 1], [], []>} : vector<1x64xbf16>, vector<64x1024xbf16>, vector<1x1024xf32> -> vector<1x1024xf32>
    %c0_21 = arith.constant 0 : index
    %c0_22 = arith.constant 0 : index
    %197 = vector.load %arg9[%c0_21, %c0_22] : memref<1x1024xf32, #tpu.memory_space<vmem>>, vector<1x1024xf32>
    %198 = arith.addf %196, %197 : vector<1x1024xf32>
    %cst_23 = arith.constant 0.000000e+00 : f32
    %199 = vector.broadcast %cst_23 : f32 to vector<1x1024xf32>
    %200 = arith.maximumf %198, %199 : vector<1x1024xf32>
    %201 = vector.extract_strided_slice %200 {offsets = [0, 0], sizes = [1, 512], strides = [1, 1]} : vector<1x1024xf32> to vector<1x512xf32>
    %202 = arith.truncf %201 : vector<1x512xf32> to vector<1x512xbf16>
    %c0_24 = arith.constant 0 : index
    %c0_25 = arith.constant 0 : index
    %203 = vector.load %arg10[%c0_24, %c0_25] : memref<512x51xbf16, #tpu.memory_space<vmem>>, vector<512x51xbf16>
    %cst_26 = arith.constant dense<0.000000e+00> : vector<1x51xf32>
    %204 = tpu.matmul %202, %203, %cst_26 {dimension_numbers = #tpu.dot_dimension_numbers<[1], [0], [0], [1], [0, 0, 1, 1], [], []>} : vector<1x512xbf16>, vector<512x51xbf16>, vector<1x51xf32> -> vector<1x51xf32>
    %c0_27 = arith.constant 0 : index
    %c0_28 = arith.constant 0 : index
    %205 = vector.load %arg11[%c0_27, %c0_28] : memref<1x51xf32, #tpu.memory_space<vmem>>, vector<1x51xf32>
    %206 = arith.addf %204, %205 : vector<1x51xf32>
    %207 = vector.extract_strided_slice %200 {offsets = [0, 512], sizes = [1, 512], strides = [1, 1]} : vector<1x1024xf32> to vector<1x512xf32>
    %208 = arith.truncf %207 : vector<1x512xf32> to vector<1x512xbf16>
    %c0_29 = arith.constant 0 : index
    %c0_30 = arith.constant 0 : index
    %209 = vector.load %arg12[%c0_29, %c0_30] : memref<512x204xbf16, #tpu.memory_space<vmem>>, vector<512x204xbf16>
    %cst_31 = arith.constant dense<0.000000e+00> : vector<1x204xf32>
    %210 = tpu.matmul %208, %209, %cst_31 {dimension_numbers = #tpu.dot_dimension_numbers<[1], [0], [0], [1], [0, 0, 1, 1], [], []>} : vector<1x512xbf16>, vector<512x204xbf16>, vector<1x204xf32> -> vector<1x204xf32>
    %c0_32 = arith.constant 0 : index
    %c0_33 = arith.constant 0 : index
    %211 = vector.load %arg13[%c0_32, %c0_33] : memref<1x204xf32, #tpu.memory_space<vmem>>, vector<1x204xf32>
    %212 = arith.addf %210, %211 : vector<1x204xf32>
    %213 = vector.extract_strided_slice %212 {offsets = [0, 0], sizes = [1, 51], strides = [1, 1]} : vector<1x204xf32> to vector<1x51xf32>
    %214 = vector.extract_strided_slice %212 {offsets = [0, 51], sizes = [1, 51], strides = [1, 1]} : vector<1x204xf32> to vector<1x51xf32>
    %215 = vector.extract_strided_slice %212 {offsets = [0, 102], sizes = [1, 51], strides = [1, 1]} : vector<1x204xf32> to vector<1x51xf32>
    %216 = vector.extract_strided_slice %212 {offsets = [0, 153], sizes = [1, 51], strides = [1, 1]} : vector<1x204xf32> to vector<1x51xf32>
    %217 = arith.addf %213, %214 : vector<1x51xf32>
    %218 = arith.addf %217, %215 : vector<1x51xf32>
    %219 = arith.addf %218, %216 : vector<1x51xf32>
    %cst_34 = arith.constant 2.500000e-01 : f32
    %220 = vector.broadcast %cst_34 : f32 to vector<1x51xf32>
    %221 = arith.mulf %219, %220 : vector<1x51xf32>
    %222 = arith.addf %206, %213 : vector<1x51xf32>
    %223 = arith.subf %222, %221 : vector<1x51xf32>
    %cst_35 = arith.constant dense<0xFF800000> : vector<1xf32>
    %224 = vector.multi_reduction <maximumf>, %223, %cst_35 [1] : vector<1x51xf32> to vector<1xf32>
    %225 = vector.shape_cast %224 : vector<1xf32> to vector<1x1xf32>
    %226 = vector.broadcast %225 : vector<1x1xf32> to vector<1x51xf32>
    %227 = arith.subf %223, %226 : vector<1x51xf32>
    %228 = math.exp %227 : vector<1x51xf32>
    %cst_36 = arith.constant dense<0.000000e+00> : vector<1xf32>
    %229 = vector.multi_reduction <add>, %228, %cst_36 [1] : vector<1x51xf32> to vector<1xf32>
    %230 = vector.shape_cast %229 : vector<1xf32> to vector<1x1xf32>
    %231 = tpu.reciprocal %230 {approx = true} : vector<1x1xf32> -> vector<1x1xf32>
    %232 = vector.broadcast %231 : vector<1x1xf32> to vector<1x51xf32>
    %233 = arith.mulf %228, %232 : vector<1x51xf32>
    %234 = arith.addf %206, %214 : vector<1x51xf32>
    %235 = arith.subf %234, %221 : vector<1x51xf32>
    %cst_37 = arith.constant dense<0xFF800000> : vector<1xf32>
    %236 = vector.multi_reduction <maximumf>, %235, %cst_37 [1] : vector<1x51xf32> to vector<1xf32>
    %237 = vector.shape_cast %236 : vector<1xf32> to vector<1x1xf32>
    %238 = vector.broadcast %237 : vector<1x1xf32> to vector<1x51xf32>
    %239 = arith.subf %235, %238 : vector<1x51xf32>
    %240 = math.exp %239 : vector<1x51xf32>
    %cst_38 = arith.constant dense<0.000000e+00> : vector<1xf32>
    %241 = vector.multi_reduction <add>, %240, %cst_38 [1] : vector<1x51xf32> to vector<1xf32>
    %242 = vector.shape_cast %241 : vector<1xf32> to vector<1x1xf32>
    %243 = tpu.reciprocal %242 {approx = true} : vector<1x1xf32> -> vector<1x1xf32>
    %244 = vector.broadcast %243 : vector<1x1xf32> to vector<1x51xf32>
    %245 = arith.mulf %240, %244 : vector<1x51xf32>
    %246 = arith.addf %206, %215 : vector<1x51xf32>
    %247 = arith.subf %246, %221 : vector<1x51xf32>
    %cst_39 = arith.constant dense<0xFF800000> : vector<1xf32>
    %248 = vector.multi_reduction <maximumf>, %247, %cst_39 [1] : vector<1x51xf32> to vector<1xf32>
    %249 = vector.shape_cast %248 : vector<1xf32> to vector<1x1xf32>
    %250 = vector.broadcast %249 : vector<1x1xf32> to vector<1x51xf32>
    %251 = arith.subf %247, %250 : vector<1x51xf32>
    %252 = math.exp %251 : vector<1x51xf32>
    %cst_40 = arith.constant dense<0.000000e+00> : vector<1xf32>
    %253 = vector.multi_reduction <add>, %252, %cst_40 [1] : vector<1x51xf32> to vector<1xf32>
    %254 = vector.shape_cast %253 : vector<1xf32> to vector<1x1xf32>
    %255 = tpu.reciprocal %254 {approx = true} : vector<1x1xf32> -> vector<1x1xf32>
    %256 = vector.broadcast %255 : vector<1x1xf32> to vector<1x51xf32>
    %257 = arith.mulf %252, %256 : vector<1x51xf32>
    %258 = arith.addf %206, %216 : vector<1x51xf32>
    %259 = arith.subf %258, %221 : vector<1x51xf32>
    %cst_41 = arith.constant dense<0xFF800000> : vector<1xf32>
    %260 = vector.multi_reduction <maximumf>, %259, %cst_41 [1] : vector<1x51xf32> to vector<1xf32>
    %261 = vector.shape_cast %260 : vector<1xf32> to vector<1x1xf32>
    %262 = vector.broadcast %261 : vector<1x1xf32> to vector<1x51xf32>
    %263 = arith.subf %259, %262 : vector<1x51xf32>
    %264 = math.exp %263 : vector<1x51xf32>
    %cst_42 = arith.constant dense<0.000000e+00> : vector<1xf32>
    %265 = vector.multi_reduction <add>, %264, %cst_42 [1] : vector<1x51xf32> to vector<1xf32>
    %266 = vector.shape_cast %265 : vector<1xf32> to vector<1x1xf32>
    %267 = tpu.reciprocal %266 {approx = true} : vector<1x1xf32> -> vector<1x1xf32>
    %268 = vector.broadcast %267 : vector<1x1xf32> to vector<1x51xf32>
    %269 = arith.mulf %264, %268 : vector<1x51xf32>
    %270 = tpu.concatenate %233, %245, %257, %269 in 1 : vector<1x51xf32>, vector<1x51xf32>, vector<1x51xf32>, vector<1x51xf32> -> vector<1x204xf32>
    %271 = vector.shape_cast %270 : vector<1x204xf32> to vector<1x1x204xf32>
    %c0_43 = arith.constant 0 : index
    %c0_44 = arith.constant 0 : index
    %c0_45 = arith.constant 0 : index
    %272 = vector.load %arg14[%c0_43, %c0_44, %c0_45] : memref<1x1x204xf32, #tpu.memory_space<vmem>>, vector<1x1x204xf32>
    tpu.vector_store %arg14[%c0_43, %c0_44, %c0_45], %271 {strides = array<i32>} : memref<1x1x204xf32, #tpu.memory_space<vmem>>, vector<1x1x204xf32>,
    return
  }
  func.func @transform_0(%arg0: i32) -> (i32, i32) {
    %c0_i32 = arith.constant 0 : i32
    %c0_i32_0 = arith.constant 0 : i32
    return %arg0, %c0_i32 : i32, i32
  }
  func.func @transform_1(%arg0: i32) -> (i32, i32) {
    %c0_i32 = arith.constant 0 : i32
    %c0_i32_0 = arith.constant 0 : i32
    %c0_i32_1 = arith.constant 0 : i32
    return %c0_i32, %c0_i32_0 : i32, i32
  }
  func.func @transform_2(%arg0: i32) -> (i32, i32) {
    %c0_i32 = arith.constant 0 : i32
    %c0_i32_0 = arith.constant 0 : i32
    %c0_i32_1 = arith.constant 0 : i32
    return %c0_i32, %c0_i32_0 : i32, i32
  }
  func.func @transform_3(%arg0: i32) -> (i32, i32) {
    %c0_i32 = arith.constant 0 : i32
    %c0_i32_0 = arith.constant 0 : i32
    %c0_i32_1 = arith.constant 0 : i32
    return %c0_i32, %c0_i32_0 : i32, i32
  }
  func.func @transform_4(%arg0: i32) -> (i32, i32) {
    %c0_i32 = arith.constant 0 : i32
    %c0_i32_0 = arith.constant 0 : i32
    %c0_i32_1 = arith.constant 0 : i32
    return %c0_i32, %c0_i32_0 : i32, i32
  }
  func.func @transform_5(%arg0: i32) -> (i32, i32) {
    %c0_i32 = arith.constant 0 : i32
    %c0_i32_0 = arith.constant 0 : i32
    %c0_i32_1 = arith.constant 0 : i32
    return %c0_i32, %c0_i32_0 : i32, i32
  }
  func.func @transform_6(%arg0: i32) -> (i32, i32) {
    %c0_i32 = arith.constant 0 : i32
    %c0_i32_0 = arith.constant 0 : i32
    %c0_i32_1 = arith.constant 0 : i32
    return %c0_i32, %c0_i32_0 : i32, i32
  }
  func.func @transform_7(%arg0: i32) -> (i32, i32) {
    %c0_i32 = arith.constant 0 : i32
    %c0_i32_0 = arith.constant 0 : i32
    %c0_i32_1 = arith.constant 0 : i32
    return %c0_i32, %c0_i32_0 : i32, i32
  }
  func.func @transform_8(%arg0: i32) -> (i32, i32) {
    %c0_i32 = arith.constant 0 : i32
    %c0_i32_0 = arith.constant 0 : i32
    %c0_i32_1 = arith.constant 0 : i32
    return %c0_i32, %c0_i32_0 : i32, i32
  }
  func.func @transform_9(%arg0: i32) -> (i32, i32) {
    %c0_i32 = arith.constant 0 : i32
    %c0_i32_0 = arith.constant 0 : i32
    %c0_i32_1 = arith.constant 0 : i32
    return %c0_i32, %c0_i32_0 : i32, i32
  }
  func.func @transform_10(%arg0: i32) -> (i32, i32) {
    %c0_i32 = arith.constant 0 : i32
    %c0_i32_0 = arith.constant 0 : i32
    %c0_i32_1 = arith.constant 0 : i32
    return %c0_i32, %c0_i32_0 : i32, i32
  }
  func.func @transform_11(%arg0: i32) -> (i32, i32) {
    %c0_i32 = arith.constant 0 : i32
    %c0_i32_0 = arith.constant 0 : i32
    %c0_i32_1 = arith.constant 0 : i32
    return %c0_i32, %c0_i32_0 : i32, i32
  }
  func.func @transform_12(%arg0: i32) -> (i32, i32) {
    %c0_i32 = arith.constant 0 : i32
    %c0_i32_0 = arith.constant 0 : i32
    %c0_i32_1 = arith.constant 0 : i32
    return %c0_i32, %c0_i32_0 : i32, i32
  }
  func.func @transform_13(%arg0: i32) -> (i32, i32, i32) {
    %c0_i32 = arith.constant 0 : i32
    %c0_i32_0 = arith.constant 0 : i32
    %c0_i32_1 = arith.constant 0 : i32
    return %arg0, %c0_i32, %c0_i32_0 : i32, i32, i32
  }
}

</mosaic_0001>

<llo_original>
// kernel: rainbow_forward.1
$region0: #{rainbow_forward.1}
  #allocation0 [shape = 'u32[]', space=smem, size = 0x4, offset = 0x4, fixed_abs, tag = 'smem constant byte address 0x4 - core index']
  #allocation1 [shape = 'u32[144,128]{1,0:T(1,128)}', space=vmem, size = 0x12000, scoped, tag = 'internal scratch']
  %s0 = inlined_call_operand.vmem [shape: bf16[128,256], index: 0, kind: input, shape index: {}]
  %s1 = inlined_call_operand.vmem [shape: bf16[256,32], index: 1, kind: input, shape index: {}]
  %s2 = inlined_call_operand.vmem [shape: f32[1,32], index: 2, kind: input, shape index: {}]
  %s3 = inlined_call_operand.vmem [shape: bf16[512,64], index: 3, kind: input, shape index: {}]
  %s4 = inlined_call_operand.vmem [shape: f32[1,64], index: 4, kind: input, shape index: {}]
  %s5 = inlined_call_operand.vmem [shape: bf16[576,64], index: 5, kind: input, shape index: {}]
  %s6 = inlined_call_operand.vmem [shape: f32[1,64], index: 6, kind: input, shape index: {}]
  %s7 = inlined_call_operand.vmem [shape: bf16[64,1024], index: 7, kind: input, shape index: {}]
  %s8 = inlined_call_operand.vmem [shape: f32[1,1024], index: 8, kind: input, shape index: {}]
  %s9 = inlined_call_operand.vmem [shape: bf16[512,51], index: 9, kind: input, shape index: {}]
  %s10 = inlined_call_operand.vmem [shape: f32[1,51], index: 10, kind: input, shape index: {}]
  %s11 = inlined_call_operand.vmem [shape: bf16[512,204], index: 11, kind: input, shape index: {}]
  %s12 = inlined_call_operand.vmem [shape: f32[1,204], index: 12, kind: input, shape index: {}]
  %s13 = inlined_call_operand.vmem [shape: f32[2,1,204], index: 13, kind: output, shape index: {}]
  %s14 = sld [smem:[#allocation0]]
  $region85: #{rainbow_forward.1} parent=0
    _
  %s16 = ssub.s32 1, %s14
  %s17 = scalar_select 0, %s16, %s14
  loop: start=0, step=1, limit=4
  $region2: #{rainbow_forward.1} parent=0 // loop_pre_header
    _
  $region3: #{rainbow_forward.1} parent=0 // loop_header
    %s19 = sphi 0, %s23
    %p20 = scmp.ge.s32.totalorder %s19, 4
    %s29 = sphi 0, %s31
    %s32 = sphi 0, %s29
    %s33 = sphi 0, %s32
    %s49 = sphi 0, %s33
    %s53 = sphi 0, %s53
    %s55 = sphi 0, %s53
    %s56 = sphi 0, %s55
    %s70 = sphi 0, %s56
    %s74 = sphi 0, %s74
    %s76 = sphi 0, %s74
    %s77 = sphi 0, %s76
    %s91 = sphi 0, %s77
    %s95 = sphi 0, %s95
    %s97 = sphi 0, %s95
    %s98 = sphi 0, %s97
    %s112 = sphi 0, %s98
    %s116 = sphi 0, %s116
    %s118 = sphi 0, %s116
    %s119 = sphi 0, %s118
    %s133 = sphi 0, %s119
    %s137 = sphi 0, %s137
    %s139 = sphi 0, %s137
    %s140 = sphi 0, %s139
    %s154 = sphi 0, %s140
    %s158 = sphi 0, %s158
    %s160 = sphi 0, %s158
    %s161 = sphi 0, %s160
    %s175 = sphi 0, %s161
    %s179 = sphi 0, %s179
    %s181 = sphi 0, %s179
    %s182 = sphi 0, %s181
    %s196 = sphi 0, %s182
    %s200 = sphi 0, %s200
    %s202 = sphi 0, %s200
    %s203 = sphi 0, %s202
    %s217 = sphi 0, %s203
    %s221 = sphi 0, %s221
    %s223 = sphi 0, %s221
    %s224 = sphi 0, %s223
    %s238 = sphi 0, %s224
    %s242 = sphi 0, %s242
    %s244 = sphi 0, %s242
    %s245 = sphi 0, %s244
    %s259 = sphi 0, %s245
    %s263 = sphi 0, %s263
    %s265 = sphi 0, %s263
    %s266 = sphi 0, %s265
    %s280 = sphi 0, %s266
    %s284 = sphi 0, %s284
    %s286 = sphi 0, %s284
    %s287 = sphi 0, %s286
    %s301 = sphi 0, %s287
    %s307 = sphi 0, %s309
    %s310 = sphi 0, %s307
    %s311 = sphi 0, %s310
    %s327 = sphi 0, %s311
  $region4: #{rainbow_forward.1} parent=0 // loop_header_branch
    %22 = sbr.rel (%p20) target = $region8
  $region5: #{rainbow_forward.1} parent=0 // loop_body
    %s24 = ssub.s32 %s19, 1
    %s25 = ssub.s32 %s19, 2
    %s26 = sadd.s32 %s19, 1
    %s27 = ssub.s32 %s19, %s26
    %p28 = scmp.eq.s32.totalorder %s27, 0
    %s30 = sadd.s32 %s29, 1
    %s31 = scalar_select %p28, %s29, %s30
    %p34 = pneg %p28
    %p35 = scmp.eq.s32.totalorder %s19, 1
    %p36 = por %p34, %p35
    %p37 = scmp.ne.s32.totalorder %s29, %s32
    %p38 = scmp.eq.s32.totalorder %s19, 0
    %p39 = por %p37, %p38
    %p40 = scmp.ne.s32.totalorder %s29, %s32
    %p41 = scmp.eq.s32.totalorder %s24, 1
    %p42 = por %p40, %p41
    %p43 = scmp.ne.s32.totalorder %s32, %s33
    %p44 = scmp.eq.s32.totalorder %s24, 0
    %p45 = por %p43, %p44
    %p46 = scmp.ne.s32.totalorder %s32, %s33
    %p47 = scmp.eq.s32.totalorder %s25, 1
    %p48 = por %p46, %p47
    %p50 = scmp.ne.s32.totalorder %s33, %s49
    %p51 = scmp.eq.s32.totalorder %s25, 0
    %p52 = por %p50, %p51
    %s54 = sadd.s32 %s53, 1
    %p57 = scmp.eq.s32.totalorder %s19, 1
    %p58 = scmp.ne.s32.totalorder %s53, %s55
    %p59 = scmp.eq.s32.totalorder %s19, 0
    %p60 = por %p58, %p59
    %p61 = scmp.ne.s32.totalorder %s53, %s55
    %p62 = scmp.eq.s32.totalorder %s24, 1
    %p63 = por %p61, %p62
    %p64 = scmp.ne.s32.totalorder %s55, %s56
    %p65 = scmp.eq.s32.totalorder %s24, 0
    %p66 = por %p64, %p65
    %p67 = scmp.ne.s32.totalorder %s55, %s56
    %p68 = scmp.eq.s32.totalorder %s25, 1
    %p69 = por %p67, %p68
    %p71 = scmp.ne.s32.totalorder %s56, %s70
    %p72 = scmp.eq.s32.totalorder %s25, 0
    %p73 = por %p71, %p72
    %s75 = sadd.s32 %s74, 1
    %p78 = scmp.eq.s32.totalorder %s19, 1
    %p79 = scmp.ne.s32.totalorder %s74, %s76
    %p80 = scmp.eq.s32.totalorder %s19, 0
    %p81 = por %p79, %p80
    %p82 = scmp.ne.s32.totalorder %s74, %s76
    %p83 = scmp.eq.s32.totalorder %s24, 1
    %p84 = por %p82, %p83
    %p85 = scmp.ne.s32.totalorder %s76, %s77
    %p86 = scmp.eq.s32.totalorder %s24, 0
    %p87 = por %p85, %p86
    %p88 = scmp.ne.s32.totalorder %s76, %s77
    %p89 = scmp.eq.s32.totalorder %s25, 1
    %p90 = por %p88, %p89
    %p92 = scmp.ne.s32.totalorder %s77, %s91
    %p93 = scmp.eq.s32.totalorder %s25, 0
    %p94 = por %p92, %p93
    %s96 = sadd.s32 %s95, 1
    %p99 = scmp.eq.s32.totalorder %s19, 1
    %p100 = scmp.ne.s32.totalorder %s95, %s97
    %p101 = scmp.eq.s32.totalorder %s19, 0
    %p102 = por %p100, %p101
    %p103 = scmp.ne.s32.totalorder %s95, %s97
    %p104 = scmp.eq.s32.totalorder %s24, 1
    %p105 = por %p103, %p104
    %p106 = scmp.ne.s32.totalorder %s97, %s98
    %p107 = scmp.eq.s32.totalorder %s24, 0
    %p108 = por %p106, %p107
    %p109 = scmp.ne.s32.totalorder %s97, %s98
    %p110 = scmp.eq.s32.totalorder %s25, 1
    %p111 = por %p109, %p110
    %p113 = scmp.ne.s32.totalorder %s98, %s112
    %p114 = scmp.eq.s32.totalorder %s25, 0
    %p115 = por %p113, %p114
    %s117 = sadd.s32 %s116, 1
    %p120 = scmp.eq.s32.totalorder %s19, 1
    %p121 = scmp.ne.s32.totalorder %s116, %s118
    %p122 = scmp.eq.s32.totalorder %s19, 0
    %p123 = por %p121, %p122
    %p124 = scmp.ne.s32.totalorder %s116, %s118
    %p125 = scmp.eq.s32.totalorder %s24, 1
    %p126 = por %p124, %p125
    %p127 = scmp.ne.s32.totalorder %s118, %s119
    %p128 = scmp.eq.s32.totalorder %s24, 0
    %p129 = por %p127, %p128
    %p130 = scmp.ne.s32.totalorder %s118, %s119
    %p131 = scmp.eq.s32.totalorder %s25, 1
    %p132 = por %p130, %p131
    %p134 = scmp.ne.s32.totalorder %s119, %s133
    %p135 = scmp.eq.s32.totalorder %s25, 0
    %p136 = por %p134, %p135
    %s138 = sadd.s32 %s137, 1
    %p141 = scmp.eq.s32.totalorder %s19, 1
    %p142 = scmp.ne.s32.totalorder %s137, %s139
    %p143 = scmp.eq.s32.totalorder %s19, 0
    %p144 = por %p142, %p143
    %p145 = scmp.ne.s32.totalorder %s137, %s139
    %p146 = scmp.eq.s32.totalorder %s24, 1
    %p147 = por %p145, %p146
    %p148 = scmp.ne.s32.totalorder %s139, %s140
    %p149 = scmp.eq.s32.totalorder %s24, 0
    %p150 = por %p148, %p149
    %p151 = scmp.ne.s32.totalorder %s139, %s140
    %p152 = scmp.eq.s32.totalorder %s25, 1
    %p153 = por %p151, %p152
    %p155 = scmp.ne.s32.totalorder %s140, %s154
    %p156 = scmp.eq.s32.totalorder %s25, 0
    %p157 = por %p155, %p156
    %s159 = sadd.s32 %s158, 1
    %p162 = scmp.eq.s32.totalorder %s19, 1
    %p163 = scmp.ne.s32.totalorder %s158, %s160
    %p164 = scmp.eq.s32.totalorder %s19, 0
    %p165 = por %p163, %p164
    %p166 = scmp.ne.s32.totalorder %s158, %s160
    %p167 = scmp.eq.s32.totalorder %s24, 1
    %p168 = por %p166, %p167
    %p169 = scmp.ne.s32.totalorder %s160, %s161
    %p170 = scmp.eq.s32.totalorder %s24, 0
    %p171 = por %p169, %p170
    %p172 = scmp.ne.s32.totalorder %s160, %s161
    %p173 = scmp.eq.s32.totalorder %s25, 1
    %p174 = por %p172, %p173
    %p176 = scmp.ne.s32.totalorder %s161, %s175
    %p177 = scmp.eq.s32.totalorder %s25, 0
    %p178 = por %p176, %p177
    %s180 = sadd.s32 %s179, 1
    %p183 = scmp.eq.s32.totalorder %s19, 1
    %p184 = scmp.ne.s32.totalorder %s179, %s181
    %p185 = scmp.eq.s32.totalorder %s19, 0
    %p186 = por %p184, %p185
    %p187 = scmp.ne.s32.totalorder %s179, %s181
    %p188 = scmp.eq.s32.totalorder %s24, 1
    %p189 = por %p187, %p188
    %p190 = scmp.ne.s32.totalorder %s181, %s182
    %p191 = scmp.eq.s32.totalorder %s24, 0
    %p192 = por %p190, %p191
    %p193 = scmp.ne.s32.totalorder %s181, %s182
    %p194 = scmp.eq.s32.totalorder %s25, 1
    %p195 = por %p193, %p194
    %p197 = scmp.ne.s32.totalorder %s182, %s196
    %p198 = scmp.eq.s32.totalorder %s25, 0
    %p199 = por %p197, %p198
    %s201 = sadd.s32 %s200, 1
    %p204 = scmp.eq.s32.totalorder %s19, 1
    %p205 = scmp.ne.s32.totalorder %s200, %s202
    %p206 = scmp.eq.s32.totalorder %s19, 0
    %p207 = por %p205, %p206
    %p208 = scmp.ne.s32.totalorder %s200, %s202
    %p209 = scmp.eq.s32.totalorder %s24, 1
    %p210 = por %p208, %p209
    %p211 = scmp.ne.s32.totalorder %s202, %s203
    %p212 = scmp.eq.s32.totalorder %s24, 0
    %p213 = por %p211, %p212
    %p214 = scmp.ne.s32.totalorder %s202, %s203
    %p215 = scmp.eq.s32.totalorder %s25, 1
    %p216 = por %p214, %p215
    %p218 = scmp.ne.s32.totalorder %s203, %s217
    %p219 = scmp.eq.s32.totalorder %s25, 0
    %p220 = por %p218, %p219
    %s222 = sadd.s32 %s221, 1
    %p225 = scmp.eq.s32.totalorder %s19, 1
    %p226 = scmp.ne.s32.totalorder %s221, %s223
    %p227 = scmp.eq.s32.totalorder %s19, 0
    %p228 = por %p226, %p227
    %p229 = scmp.ne.s32.totalorder %s221, %s223
    %p230 = scmp.eq.s32.totalorder %s24, 1
    %p231 = por %p229, %p230
    %p232 = scmp.ne.s32.totalorder %s223, %s224
    %p233 = scmp.eq.s32.totalorder %s24, 0
    %p234 = por %p232, %p233
    %p235 = scmp.ne.s32.totalorder %s223, %s224
    %p236 = scmp.eq.s32.totalorder %s25, 1
    %p237 = por %p235, %p236
    %p239 = scmp.ne.s32.totalorder %s224, %s238
    %p240 = scmp.eq.s32.totalorder %s25, 0
    %p241 = por %p239, %p240
    %s243 = sadd.s32 %s242, 1
    %p246 = scmp.eq.s32.totalorder %s19, 1
    %p247 = scmp.ne.s32.totalorder %s242, %s244
    %p248 = scmp.eq.s32.totalorder %s19, 0
    %p249 = por %p247, %p248
    %p250 = scmp.ne.s32.totalorder %s242, %s244
    %p251 = scmp.eq.s32.totalorder %s24, 1
    %p252 = por %p250, %p251
    %p253 = scmp.ne.s32.totalorder %s244, %s245
    %p254 = scmp.eq.s32.totalorder %s24, 0
    %p255 = por %p253, %p254
    %p256 = scmp.ne.s32.totalorder %s244, %s245
    %p257 = scmp.eq.s32.totalorder %s25, 1
    %p258 = por %p256, %p257
    %p260 = scmp.ne.s32.totalorder %s245, %s259
    %p261 = scmp.eq.s32.totalorder %s25, 0
    %p262 = por %p260, %p261
    %s264 = sadd.s32 %s263, 1
    %p267 = scmp.eq.s32.totalorder %s19, 1
    %p268 = scmp.ne.s32.totalorder %s263, %s265
    %p269 = scmp.eq.s32.totalorder %s19, 0
    %p270 = por %p268, %p269
    %p271 = scmp.ne.s32.totalorder %s263, %s265
    %p272 = scmp.eq.s32.totalorder %s24, 1
    %p273 = por %p271, %p272
    %p274 = scmp.ne.s32.totalorder %s265, %s266
    %p275 = scmp.eq.s32.totalorder %s24, 0
    %p276 = por %p274, %p275
    %p277 = scmp.ne.s32.totalorder %s265, %s266
    %p278 = scmp.eq.s32.totalorder %s25, 1
    %p279 = por %p277, %p278
    %p281 = scmp.ne.s32.totalorder %s266, %s280
    %p282 = scmp.eq.s32.totalorder %s25, 0
    %p283 = por %p281, %p282
    %s285 = sadd.s32 %s284, 1
    %p288 = scmp.eq.s32.totalorder %s19, 1
    %p289 = scmp.ne.s32.totalorder %s284, %s286
    %p290 = scmp.eq.s32.totalorder %s19, 0
    %p291 = por %p289, %p290
    %p292 = scmp.ne.s32.totalorder %s284, %s286
    %p293 = scmp.eq.s32.totalorder %s24, 1
    %p294 = por %p292, %p293
    %p295 = scmp.ne.s32.totalorder %s286, %s287
    %p296 = scmp.eq.s32.totalorder %s24, 0
    %p297 = por %p295, %p296
    %p298 = scmp.ne.s32.totalorder %s286, %s287
    %p299 = scmp.eq.s32.totalorder %s25, 1
    %p300 = por %p298, %p299
    %p302 = scmp.ne.s32.totalorder %s287, %s301
    %p303 = scmp.eq.s32.totalorder %s25, 0
    %p304 = por %p302, %p303
    %s305 = ssub.s32 %s19, %s26
    %p306 = scmp.eq.s32.totalorder %s305, 0
    %s308 = sadd.s32 %s307, 1
    %s309 = scalar_select %p306, %s307, %s308
    %p312 = pneg %p306
    %p313 = scmp.eq.s32.totalorder %s19, 1
    %p314 = por %p312, %p313
    %p315 = scmp.ne.s32.totalorder %s307, %s310
    %p316 = scmp.eq.s32.totalorder %s19, 0
    %p317 = por %p315, %p316
    %p318 = scmp.ne.s32.totalorder %s307, %s310
    %p319 = scmp.eq.s32.totalorder %s24, 1
    %p320 = por %p318, %p319
    %p321 = scmp.ne.s32.totalorder %s310, %s311
    %p322 = scmp.eq.s32.totalorder %s24, 0
    %p323 = por %p321, %p322
    %p324 = scmp.ne.s32.totalorder %s310, %s311
    %p325 = scmp.eq.s32.totalorder %s25, 1
    %p326 = por %p324, %p325
    %p328 = scmp.ne.s32.totalorder %s311, %s327
    %p329 = scmp.eq.s32.totalorder %s25, 0
    %p330 = por %p328, %p329
    %p331 = scmp.le.s32.totalorder 1, %s19
    %p332 = scmp.lt.s32.totalorder %s19, 3
    %p333 = pnand %p331, %p332
    %p334 = pneg %p333
    // Predicated region
    $region9: #{rainbow_forward.1} parent=5 // pred_check
      _
    $region10: #{rainbow_forward.1} parent=5 // pred_check_branch
      %336 = sbr.rel (%p333) target = $region12
    $region11: #{rainbow_forward.1} parent=5 // pred_region
      %s337 = ssub.s32 %s19, 1
      // Predicated region
      $region13: #{rainbow_forward.1} parent=11 // pred_check
        %p338 = pneg %p66
      $region14: #{rainbow_forward.1} parent=11 // pred_check_branch
        %340 = sbr.rel (%p338) target = $region16
      $region15: #{rainbow_forward.1} parent=11 // pred_region
        _
      $region16: #{rainbow_forward.1} parent=11 // pred_fallthru
        _
      // Predicated region
      $region17: #{rainbow_forward.1} parent=11 // pred_check
        %p341 = pneg %p87
      $region18: #{rainbow_forward.1} parent=11 // pred_check_branch
        %343 = sbr.rel (%p341) target = $region20
      $region19: #{rainbow_forward.1} parent=11 // pred_region
        _
      $region20: #{rainbow_forward.1} parent=11 // pred_fallthru
        _
      // Predicated region
      $region21: #{rainbow_forward.1} parent=11 // pred_check
        %p344 = pneg %p108
      $region22: #{rainbow_forward.1} parent=11 // pred_check_branch
        %346 = sbr.rel (%p344) target = $region24
      $region23: #{rainbow_forward.1} parent=11 // pred_region
        _
      $region24: #{rainbow_forward.1} parent=11 // pred_fallthru
        _
      // Predicated region
      $region25: #{rainbow_forward.1} parent=11 // pred_check
        %p347 = pneg %p129
      $region26: #{rainbow_forward.1} parent=11 // pred_check_branch
        %349 = sbr.rel (%p347) target = $region28
      $region27: #{rainbow_forward.1} parent=11 // pred_region
        _
      $region28: #{rainbow_forward.1} parent=11 // pred_fallthru
        _
      // Predicated region
      $region29: #{rainbow_forward.1} parent=11 // pred_check
        %p350 = pneg %p150
      $region30: #{rainbow_forward.1} parent=11 // pred_check_branch
        %352 = sbr.rel (%p350) target = $region32
      $region31: #{rainbow_forward.1} parent=11 // pred_region
        _
      $region32: #{rainbow_forward.1} parent=11 // pred_fallthru
        _
      // Predicated region
      $region33: #{rainbow_forward.1} parent=11 // pred_check
        %p353 = pneg %p171
      $region34: #{rainbow_forward.1} parent=11 // pred_check_branch
        %355 = sbr.rel (%p353) target = $region36
      $region35: #{rainbow_forward.1} parent=11 // pred_region
        _
      $region36: #{rainbow_forward.1} parent=11 // pred_fallthru
        _
      // Predicated region
      $region37: #{rainbow_forward.1} parent=11 // pred_check
        %p356 = pneg %p192
      $region38: #{rainbow_forward.1} parent=11 // pred_check_branch
        %358 = sbr.rel (%p356) target = $region40
      $region39: #{rainbow_forward.1} parent=11 // pred_region
        _
      $region40: #{rainbow_forward.1} parent=11 // pred_fallthru
        _
      // Predicated region
      $region41: #{rainbow_forward.1} parent=11 // pred_check
        %p359 = pneg %p213
      $region42: #{rainbow_forward.1} parent=11 // pred_check_branch
        %361 = sbr.rel (%p359) target = $region44
      $region43: #{rainbow_forward.1} parent=11 // pred_region
        _
      $region44: #{rainbow_forward.1} parent=11 // pred_fallthru
        _
      // Predicated region
      $region45: #{rainbow_forward.1} parent=11 // pred_check
        %p362 = pneg %p234
      $region46: #{rainbow_forward.1} parent=11 // pred_check_branch
        %364 = sbr.rel (%p362) target = $region48
      $region47: #{rainbow_forward.1} parent=11 // pred_region
        _
      $region48: #{rainbow_forward.1} parent=11 // pred_fallthru
        _
      // Predicated region
      $region49: #{rainbow_forward.1} parent=11 // pred_check
        %p365 = pneg %p255
      $region50: #{rainbow_forward.1} parent=11 // pred_check_branch
        %367 = sbr.rel (%p365) target = $region52
      $region51: #{rainbow_forward.1} parent=11 // pred_region
        _
      $region52: #{rainbow_forward.1} parent=11 // pred_fallthru
        _
      // Predicated region
      $region53: #{rainbow_forward.1} parent=11 // pred_check
        %p368 = pneg %p276
      $region54: #{rainbow_forward.1} parent=11 // pred_check_branch
        %370 = sbr.rel (%p368) target = $region56
      $region55: #{rainbow_forward.1} parent=11 // pred_region
        _
      $region56: #{rainbow_forward.1} parent=11 // pred_fallthru
        _
      // Predicated region
      $region57: #{rainbow_forward.1} parent=11 // pred_check
        %p371 = pneg %p297
      $region58: #{rainbow_forward.1} parent=11 // pred_check_branch
        %373 = sbr.rel (%p371) target = $region60
      $region59: #{rainbow_forward.1} parent=11 // pred_region
        _
      $region60: #{rainbow_forward.1} parent=11 // pred_fallthru
        _
    $region12: #{rainbow_forward.1} parent=5 // pred_fallthru
      _
    %p374 = scmp.lt.s32.totalorder %s19, 2
    // Predicated region
    $region61: #{rainbow_forward.1} parent=5 // pred_check
      %p375 = pneg %p374
    $region62: #{rainbow_forward.1} parent=5 // pred_check_branch
      %377 = sbr.rel (%p375) target = $region64
    $region63: #{rainbow_forward.1} parent=5 // pred_region
      // Predicated region
      $region65: #{rainbow_forward.1} parent=63 // pred_check
        %p378 = pneg %p39
      $region66: #{rainbow_forward.1} parent=63 // pred_check_branch
        %380 = sbr.rel (%p378) target = $region68
      $region67: #{rainbow_forward.1} parent=63 // pred_region
        %s381 = smul.u32 8, %s19
        %p382 = scmp.lt.s32.totalorder %s381, 15
        %s383 = scalar_select %p382, %s381, 15
        %s384 = smul.addr %s383, 2
        %s385 = smul.addr %s384, 4
        %s386 = scalar_lea.vmem %s0, %s385
        %s387 = smul.u32 8, %s19
      $region68: #{rainbow_forward.1} parent=63 // pred_fallthru
        _
    $region64: #{rainbow_forward.1} parent=5 // pred_fallthru
      _
    %p388 = scmp.le.s32.totalorder 1, %s19
    %p389 = scmp.lt.s32.totalorder %s19, 3
    %p390 = pnand %p388, %p389
    %p391 = pneg %p390
    // Predicated region
    $region69: #{rainbow_forward.1} parent=5 // pred_check
      _
    $region70: #{rainbow_forward.1} parent=5 // pred_check_branch
      %393 = sbr.rel (%p390) target = $region72
    $region71: #{rainbow_forward.1} parent=5 // pred_region
      %s394 = ssub.s32 %s19, 1
      %s395 = smul.u32 8, %s24
      %p396 = scmp.lt.s32.totalorder %s395, 15
      %s397 = scalar_select %p396, %s395, 15
      %s398 = smul.addr %s397, 2
      %s399 = smul.addr %s398, 4
      %s400 = scalar_lea.vmem %s0, %s399
      %p401 = pneg %p45
      %p402 = pneg %p42
      %p403 = pneg %p66
      %p404 = pneg %p63
      %p405 = pneg %p87
      %p406 = pneg %p84
      %p407 = pneg %p108
      %p408 = pneg %p105
      %p409 = pneg %p129
      %p410 = pneg %p126
      %p411 = pneg %p150
      %p412 = pneg %p147
      %p413 = pneg %p171
      %p414 = pneg %p168
      %p415 = pneg %p192
      %p416 = pneg %p189
      %p417 = pneg %p213
      %p418 = pneg %p210
      %p419 = pneg %p234
      %p420 = pneg %p231
      %p421 = pneg %p255
      %p422 = pneg %p252
      %p423 = pneg %p276
      %p424 = pneg %p273
      %p425 = pneg %p297
      %p426 = pneg %p294
      %p427 = pneg %p323
      %p428 = pneg %p320
      %p429 = scmp.lt.s32.totalorder %s24, 1
      %s430 = scalar_select %p429, %s24, 1
      %s431 = smul.addr %s430, 2
      %s432 = scalar_lea.vmem %s13, %s431
      %s433 = smul.u32 8, %s24
      %p434 = scmp.lt.s32.totalorder %s433, 15
      %s435 = scalar_select %p434, %s433, 15
      %s436 = smul.addr %s435, 2
      %s437 = smul.addr %s436, 4
      %s438 = scalar_lea.vmem %s0, %s437
      %s439 = smul.u32 8, %s24
      %p440 = scmp.lt.s32.totalorder %s24, 1
      %s441 = scalar_select %p440, %s24, 1
      %s442 = smul.addr %s441, 2
      %s443 = scalar_lea.vmem %s13, %s442
      %v445 = vld [vmem:[%s438] sm:$0xff]
      %v446 = vld [vmem:[%s438 + $0x8] sm:$0xff]
      %v447 = vld [vmem:[%s438 + $0x10] sm:$0xff]
      %v448 = vld [vmem:[%s438 + $0x18] sm:$0xff]
      %v449 = vld [vmem:[%s438 + $0x20] sm:$0xff]
      %v450 = vld [vmem:[%s438 + $0x28] sm:$0xff]
      %v451 = vld [vmem:[%s438 + $0x30] sm:$0xff]
      %v452 = vld [vmem:[%s438 + $0x38] sm:$0xff]
      %v453 = vld [vmem:[%s1] sm:$0xf]
      %v454 = vld [vmem:[%s1 + $0x4] sm:$0xf]
      %v455 = vld [vmem:[%s1 + $0x8] sm:$0xf]
      %v456 = vld [vmem:[%s1 + $0xc] sm:$0xf]
      %v457 = vld [vmem:[%s1 + $0x10] sm:$0xf]
      %v458 = vld [vmem:[%s1 + $0x14] sm:$0xf]
      %v459 = vld [vmem:[%s1 + $0x18] sm:$0xf]
      %v460 = vld [vmem:[%s1 + $0x1c] sm:$0xf]
      %v461 = vld [vmem:[%s1 + $0x20] sm:$0xf]
      %v462 = vld [vmem:[%s1 + $0x24] sm:$0xf]
      %v463 = vld [vmem:[%s1 + $0x28] sm:$0xf]
      %v464 = vld [vmem:[%s1 + $0x2c] sm:$0xf]
      %v465 = vld [vmem:[%s1 + $0x30] sm:$0xf]
      %v466 = vld [vmem:[%s1 + $0x34] sm:$0xf]
      %v467 = vld [vmem:[%s1 + $0x38] sm:$0xf]
      %v468 = vld [vmem:[%s1 + $0x3c] sm:$0xf]
      %v469 = vld [vmem:[%s1 + $0x40] sm:$0xf]
      %v470 = vld [vmem:[%s1 + $0x44] sm:$0xf]
      %v471 = vld [vmem:[%s1 + $0x48] sm:$0xf]
      %v472 = vld [vmem:[%s1 + $0x4c] sm:$0xf]
      %v473 = vld [vmem:[%s1 + $0x50] sm:$0xf]
      %v474 = vld [vmem:[%s1 + $0x54] sm:$0xf]
      %v475 = vld [vmem:[%s1 + $0x58] sm:$0xf]
      %v476 = vld [vmem:[%s1 + $0x5c] sm:$0xf]
      %v477 = vld [vmem:[%s1 + $0x60] sm:$0xf]
      %v478 = vld [vmem:[%s1 + $0x64] sm:$0xf]
      %v479 = vld [vmem:[%s1 + $0x68] sm:$0xf]
      %v480 = vld [vmem:[%s1 + $0x6c] sm:$0xf]
      %v481 = vld [vmem:[%s1 + $0x70] sm:$0xf]
      %v482 = vld [vmem:[%s1 + $0x74] sm:$0xf]
      %v483 = vld [vmem:[%s1 + $0x78] sm:$0xf]
      %v484 = vld [vmem:[%s1 + $0x7c] sm:$0xf]
      %v485 = vld [vmem:[%s2] sm:$0x1]
      %v487 = vlaneseq
      %v488 = vshrl.u32 %v487, 7
      %v489 = vsub.s32 0, %v488
      %v490 = vrot.slane %v485, %v489
      %v500 = vunpack.c.l.b16 %v445
      %v501 = vunpack.c.h.b16 %v445
      %v502 = vunpack.c.l.b16 %v446
      %v503 = vunpack.c.h.b16 %v446
      %v504 = vunpack.c.l.b16 %v447
      %v505 = vunpack.c.h.b16 %v447
      %v506 = vunpack.c.l.b16 %v448
      %v507 = vunpack.c.h.b16 %v448
      %v508 = vunpack.c.l.b16 %v449
      %v509 = vunpack.c.h.b16 %v449
      %v510 = vunpack.c.l.b16 %v450
      %v511 = vunpack.c.h.b16 %v450
      %v512 = vunpack.c.l.b16 %v451
      %v513 = vunpack.c.h.b16 %v451
      %v514 = vunpack.c.l.b16 %v452
      %v515 = vunpack.c.h.b16 %v452
      %v516 = vpack.c.b16 %v502, %v500
      %v517 = vpack.c.b16 %v503, %v501
      %v518 = vpack.c.b16 %v506, %v504
      %v519 = vpack.c.b16 %v507, %v505
      %v520 = vpack.c.b16 %v510, %v508
      %v521 = vpack.c.b16 %v511, %v509
      %v522 = vpack.c.b16 %v514, %v512
      %v523 = vpack.c.b16 %v515, %v513
      %v564 = vunpack.c.l.b16 %v453
      %v565 = vunpack.c.l.b16 %v454
      %v566 = vunpack.c.l.b16 %v455
      %v567 = vunpack.c.l.b16 %v456
      %v568 = vunpack.c.l.b16 %v457
      %v569 = vunpack.c.l.b16 %v458
      %v570 = vunpack.c.l.b16 %v459
      %v571 = vunpack.c.l.b16 %v460
      %v572 = vunpack.c.l.b16 %v461
      %v573 = vunpack.c.l.b16 %v462
      %v574 = vunpack.c.l.b16 %v463
      %v575 = vunpack.c.l.b16 %v464
      %v576 = vunpack.c.l.b16 %v465
      %v577 = vunpack.c.l.b16 %v466
      %v578 = vunpack.c.l.b16 %v467
      %v579 = vunpack.c.l.b16 %v468
      %v580 = vunpack.c.l.b16 %v469
      %v581 = vunpack.c.l.b16 %v470
      %v582 = vunpack.c.l.b16 %v471
      %v583 = vunpack.c.l.b16 %v472
      %v584 = vunpack.c.l.b16 %v473
      %v585 = vunpack.c.l.b16 %v474
      %v586 = vunpack.c.l.b16 %v475
      %v587 = vunpack.c.l.b16 %v476
      %v588 = vunpack.c.l.b16 %v477
      %v589 = vunpack.c.l.b16 %v478
      %v590 = vunpack.c.l.b16 %v479
      %v591 = vunpack.c.l.b16 %v480
      %v592 = vunpack.c.l.b16 %v481
      %v593 = vunpack.c.l.b16 %v482
      %v594 = vunpack.c.l.b16 %v483
      %v595 = vunpack.c.l.b16 %v484
      %v596 = vpack.c.b16 %v565, %v564
      %v597 = vpack.c.b16 %v567, %v566
      %v598 = vpack.c.b16 %v569, %v568
      %v599 = vpack.c.b16 %v571, %v570
      %v600 = vpack.c.b16 %v573, %v572
      %v601 = vpack.c.b16 %v575, %v574
      %v602 = vpack.c.b16 %v577, %v576
      %v603 = vpack.c.b16 %v579, %v578
      %v604 = vpack.c.b16 %v581, %v580
      %v605 = vpack.c.b16 %v583, %v582
      %v606 = vpack.c.b16 %v585, %v584
      %v607 = vpack.c.b16 %v587, %v586
      %v608 = vpack.c.b16 %v589, %v588
      %v609 = vpack.c.b16 %v591, %v590
      %v610 = vpack.c.b16 %v593, %v592
      %v611 = vpack.c.b16 %v595, %v594
      %628 = vmatprep.subr.bf16.mxu0 0
      %629 = vmatpush1.bf16.msra.mxu0 %v596
      %630 = vmatprep.subr.bf16.mxu0 0
      %631 = vmatpush1.bf16.msra.mxu0 %v597
      %632 = vmatprep.subr.bf16.mxu0 0
      %633 = vmatpush1.bf16.msra.mxu0 %v598
      %634 = vmatprep.subr.bf16.mxu0 0
      %635 = vmatpush1.bf16.msra.mxu0 %v599
      %636 = vmatprep.subr.bf16.mxu0 0
      %637 = vmatpush1.bf16.msra.mxu0 %v600
      %638 = vmatprep.subr.bf16.mxu0 0
      %639 = vmatpush1.bf16.msra.mxu0 %v601
      %640 = vmatprep.subr.bf16.mxu0 0
      %641 = vmatpush1.bf16.msra.mxu0 %v602
      %642 = vmatprep.subr.bf16.mxu0 0
      %643 = vmatpush1.bf16.msra.mxu0 %v603
      %644 = vmatprep.subr.bf16.mxu0 0
      %645 = vmatpush1.bf16.msra.mxu0 %v604
      %646 = vmatprep.subr.bf16.mxu0 0
      %647 = vmatpush1.bf16.msra.mxu0 %v605
      %648 = vmatprep.subr.bf16.mxu0 0
      %649 = vmatpush1.bf16.msra.mxu0 %v606
      %650 = vmatprep.subr.bf16.mxu0 0
      %651 = vmatpush1.bf16.msra.mxu0 %v607
      %652 = vmatprep.subr.bf16.mxu0 0
      %653 = vmatpush1.bf16.msra.mxu0 %v608
      %654 = vmatprep.subr.bf16.mxu0 0
      %655 = vmatpush1.bf16.msra.mxu0 %v609
      %656 = vmatprep.subr.bf16.mxu0 0
      %657 = vmatpush1.bf16.msra.mxu0 %v610
      %658 = vmatprep.subr.bf16.mxu0 0
      %659 = vmatpush1.bf16.msra.mxu0 %v611
      %660 = vmatprep.mubr.bf16.mxu0 %v517
      %661 = vmatmul.mubr.bf16.gmra.mrb[0].mxu0 %v516
      %v662 = vpop.f32.mrb[0].mxu0
      %v663 = vadd.f32 %v490, %v662
      %v664 = vpop.f32.mrb[0].mxu0
      %v665 = vpop.f32.mrb[0].mxu0
      %v666 = vadd.f32 %v490, %v665
      %v667 = vpop.f32.mrb[0].mxu0
      %668 = vmatprep.mubr.bf16.mxu0 %v519
      %669 = vmatmul.mubr.bf16.gmra.mrb[0].mxu0 %v518
      %v670 = vpop.f32.mrb[0].mxu0
      %v671 = vadd.f32 %v490, %v670
      %v672 = vpop.f32.mrb[0].mxu0
      %v673 = vpop.f32.mrb[0].mxu0
      %v674 = vadd.f32 %v490, %v673
      %v675 = vpop.f32.mrb[0].mxu0
      %676 = vmatprep.mubr.bf16.mxu0 %v521
      %677 = vmatmul.mubr.bf16.gmra.mrb[0].mxu0 %v520
      %v678 = vpop.f32.mrb[0].mxu0
      %v679 = vadd.f32 %v490, %v678
      %v680 = vpop.f32.mrb[0].mxu0
      %v681 = vpop.f32.mrb[0].mxu0
      %v682 = vadd.f32 %v490, %v681
      %v683 = vpop.f32.mrb[0].mxu0
      %684 = vmatprep.mubr.bf16.mxu0 %v523
      %685 = vmatmul.mubr.bf16.gmra.mrb[0].mxu0 %v522
      %v686 = vpop.f32.mrb[0].mxu0
      %v687 = vadd.f32 %v490, %v686
      %v688 = vpop.f32.mrb[0].mxu0
      %v689 = vpop.f32.mrb[0].mxu0
      %v690 = vadd.f32 %v490, %v689
      %v691 = vpop.f32.mrb[0].mxu0
      %692 = vdwg.mxu0
      %v693 = vmax.f32 %v663, 0.0
      %v694 = vmax.f32 %v666, 0.0
      %v695 = vmax.f32 %v671, 0.0
      %v696 = vmax.f32 %v674, 0.0
      %v697 = vmax.f32 %v679, 0.0
      %v698 = vmax.f32 %v682, 0.0
      %v699 = vmax.f32 %v687, 0.0
      %v700 = vmax.f32 %v690, 0.0
      %v702 = vrot.slane %v693, 1
      %v704 = vrot.slane %v693, 2
      %v707 = vrot.slane %v695, 5
      %v709 = vrot.slane %v695, 6
      %v711 = vrot.slane %v695, 7
      %v714 = vrot.slane %v697, 2
      %v716 = vrot.slane %v697, 3
      %v718 = vrot.slane %v697, 4
      %vm720 = vcmask 1040384
      %v721 = vsel %vm720, %v693, %v702
      %vm722 = vcmask 1041408
      %v723 = vsel %vm722, %v721, %v704
      %vm724 = vcmask 1042432
      %v725 = vsel %vm724, %v723, %v707
      %vm726 = vcmask 1043456
      %v727 = vsel %vm726, %v725, %v709
      %vm728 = vcmask 1044480
      %v729 = vsel %vm728, %v727, %v711
      %vm730 = vcmask 1045504
      %v731 = vsel %vm730, %v729, %v714
      %vm732 = vcmask 1046528
      %v733 = vsel %vm732, %v731, %v716
      %v734 = vrot.slane %v693, 3
      %v736 = vrot.slane %v697, 5
      %v737 = vsel %vm720, %v702, %v704
      %v738 = vsel %vm722, %v737, %v734
      %v739 = vsel %vm724, %v738, %v709
      %v740 = vsel %vm726, %v739, %v711
      %v741 = vsel %vm728, %v740, %v695
      %v742 = vsel %vm730, %v741, %v716
      %v743 = vsel %vm732, %v742, %v718
      %v744 = vrot.slane %v693, 4
      %v746 = vrot.slane %v695, 1
      %v749 = vrot.slane %v697, 6
      %v750 = vsel %vm720, %v704, %v734
      %v751 = vsel %vm722, %v750, %v744
      %v752 = vsel %vm724, %v751, %v711
      %v753 = vsel %vm726, %v752, %v695
      %v754 = vsel %vm728, %v753, %v746
      %v755 = vsel %vm730, %v754, %v718
      %v756 = vsel %vm732, %v755, %v736
      %v757 = vrot.slane %v693, 5
      %v759 = vrot.slane %v695, 2
      %v762 = vrot.slane %v697, 7
      %v763 = vsel %vm720, %v734, %v744
      %v764 = vsel %vm722, %v763, %v757
      %v765 = vsel %vm724, %v764, %v695
      %v766 = vsel %vm726, %v765, %v746
      %v767 = vsel %vm728, %v766, %v759
      %v768 = vsel %vm730, %v767, %v736
      %v769 = vsel %vm732, %v768, %v749
      %v771 = vrot.slane %v694, 1
      %v773 = vrot.slane %v694, 2
      %v776 = vrot.slane %v696, 5
      %v778 = vrot.slane %v696, 6
      %v780 = vrot.slane %v696, 7
      %v783 = vrot.slane %v698, 2
      %v785 = vrot.slane %v698, 3
      %v787 = vrot.slane %v698, 4
      %v789 = vsel %vm720, %v694, %v771
      %v790 = vsel %vm722, %v789, %v773
      %v791 = vsel %vm724, %v790, %v776
      %v792 = vsel %vm726, %v791, %v778
      %v793 = vsel %vm728, %v792, %v780
      %v794 = vsel %vm730, %v793, %v783
      %v795 = vsel %vm732, %v794, %v785
      %v796 = vrot.slane %v694, 3
      %v798 = vrot.slane %v698, 5
      %v799 = vsel %vm720, %v771, %v773
      %v800 = vsel %vm722, %v799, %v796
      %v801 = vsel %vm724, %v800, %v778
      %v802 = vsel %vm726, %v801, %v780
      %v803 = vsel %vm728, %v802, %v696
      %v804 = vsel %vm730, %v803, %v785
      %v805 = vsel %vm732, %v804, %v787
      %v806 = vrot.slane %v694, 4
      %v808 = vrot.slane %v696, 1
      %v811 = vrot.slane %v698, 6
      %v812 = vsel %vm720, %v773, %v796
      %v813 = vsel %vm722, %v812, %v806
      %v814 = vsel %vm724, %v813, %v780
      %v815 = vsel %vm726, %v814, %v696
      %v816 = vsel %vm728, %v815, %v808
      %v817 = vsel %vm730, %v816, %v787
      %v818 = vsel %vm732, %v817, %v798
      %v819 = vrot.slane %v694, 5
      %v821 = vrot.slane %v696, 2
      %v824 = vrot.slane %v698, 7
      %v825 = vsel %vm720, %v796, %v806
      %v826 = vsel %vm722, %v825, %v819
      %v827 = vsel %vm724, %v826, %v696
      %v828 = vsel %vm726, %v827, %v808
      %v829 = vsel %vm728, %v828, %v821
      %v830 = vsel %vm730, %v829, %v798
      %v831 = vsel %vm732, %v830, %v811
      %v834 = vrot.slane %v699, 2
      %v836 = vrot.slane %v699, 3
      %v838 = vrot.slane %v699, 4
      %v840 = vsel %vm720, %v695, %v746
      %v841 = vsel %vm722, %v840, %v759
      %v842 = vsel %vm724, %v841, %v736
      %v843 = vsel %vm726, %v842, %v749
      %v844 = vsel %vm728, %v843, %v762
      %v845 = vsel %vm730, %v844, %v834
      %v846 = vsel %vm732, %v845, %v836
      %v847 = vrot.slane %v695, 3
      %v849 = vrot.slane %v699, 5
      %v850 = vsel %vm720, %v746, %v759
      %v851 = vsel %vm722, %v850, %v847
      %v852 = vsel %vm724, %v851, %v749
      %v853 = vsel %vm726, %v852, %v762
      %v854 = vsel %vm728, %v853, %v697
      %v855 = vsel %vm730, %v854, %v836
      %v856 = vsel %vm732, %v855, %v838
      %v857 = vrot.slane %v695, 4
      %v859 = vrot.slane %v697, 1
      %v862 = vrot.slane %v699, 6
      %v863 = vsel %vm720, %v759, %v847
      %v864 = vsel %vm722, %v863, %v857
      %v865 = vsel %vm724, %v864, %v762
      %v866 = vsel %vm726, %v865, %v697
      %v867 = vsel %vm728, %v866, %v859
      %v868 = vsel %vm730, %v867, %v838
      %v869 = vsel %vm732, %v868, %v849
      %v871 = vrot.slane %v699, 7
      %v872 = vsel %vm720, %v847, %v857
      %v873 = vsel %vm722, %v872, %v707
      %v874 = vsel %vm724, %v873, %v697
      %v875 = vsel %vm726, %v874, %v859
      %v876 = vsel %vm728, %v875, %v714
      %v877 = vsel %vm730, %v876, %v849
      %v878 = vsel %vm732, %v877, %v862
      %v881 = vrot.slane %v700, 2
      %v883 = vrot.slane %v700, 3
      %v885 = vrot.slane %v700, 4
      %v887 = vsel %vm720, %v696, %v808
      %v888 = vsel %vm722, %v887, %v821
      %v889 = vsel %vm724, %v888, %v798
      %v890 = vsel %vm726, %v889, %v811
      %v891 = vsel %vm728, %v890, %v824
      %v892 = vsel %vm730, %v891, %v881
      %v893 = vsel %vm732, %v892, %v883
      %v894 = vrot.slane %v696, 3
      %v896 = vrot.slane %v700, 5
      %v897 = vsel %vm720, %v808, %v821
      %v898 = vsel %vm722, %v897, %v894
      %v899 = vsel %vm724, %v898, %v811
      %v900 = vsel %vm726, %v899, %v824
      %v901 = vsel %vm728, %v900, %v698
      %v902 = vsel %vm730, %v901, %v883
      %v903 = vsel %vm732, %v902, %v885
      %v904 = vrot.slane %v696, 4
      %v906 = vrot.slane %v698, 1
      %v909 = vrot.slane %v700, 6
      %v910 = vsel %vm720, %v821, %v894
      %v911 = vsel %vm722, %v910, %v904
      %v912 = vsel %vm724, %v911, %v824
      %v913 = vsel %vm726, %v912, %v698
      %v914 = vsel %vm728, %v913, %v906
      %v915 = vsel %vm730, %v914, %v885
      %v916 = vsel %vm732, %v915, %v896
      %v918 = vrot.slane %v700, 7
      %v919 = vsel %vm720, %v894, %v904
      %v920 = vsel %vm722, %v919, %v776
      %v921 = vsel %vm724, %v920, %v698
      %v922 = vsel %vm726, %v921, %v906
      %v923 = vsel %vm728, %v922, %v783
      %v924 = vsel %vm730, %v923, %v896
      %v925 = vsel %vm732, %v924, %v909
      %927 = vrot.lane.b32.xlu0 %v743, 32
      %v928 = vpop.permute.xlu0 %927
      %929 = vrot.lane.b32.xlu0 %v736, 32
      %v930 = vpop.permute.xlu0 %929
      %934 = vrot.lane.b32.xlu0 %v756, 64
      %v935 = vpop.permute.xlu0 %934
      %936 = vrot.lane.b32.xlu0 %v749, 64
      %v937 = vpop.permute.xlu0 %936
      %941 = vrot.lane.b32.xlu0 %v769, 96
      %v942 = vpop.permute.xlu0 %941
      %943 = vrot.lane.b32.xlu0 %v762, 96
      %v944 = vpop.permute.xlu0 %943
      %948 = vrot.lane.b32.xlu0 %v805, 32
      %v949 = vpop.permute.xlu0 %948
      %950 = vrot.lane.b32.xlu0 %v798, 32
      %v951 = vpop.permute.xlu0 %950
      %955 = vrot.lane.b32.xlu0 %v818, 64
      %v956 = vpop.permute.xlu0 %955
      %957 = vrot.lane.b32.xlu0 %v811, 64
      %v958 = vpop.permute.xlu0 %957
      %962 = vrot.lane.b32.xlu0 %v831, 96
      %v963 = vpop.permute.xlu0 %962
      %964 = vrot.lane.b32.xlu0 %v824, 96
      %v965 = vpop.permute.xlu0 %964
      %969 = vrot.lane.b32.xlu0 %v856, 32
      %v970 = vpop.permute.xlu0 %969
      %971 = vrot.lane.b32.xlu0 %v849, 32
      %v972 = vpop.permute.xlu0 %971
      %976 = vrot.lane.b32.xlu0 %v869, 64
      %v977 = vpop.permute.xlu0 %976
      %978 = vrot.lane.b32.xlu0 %v862, 64
      %v979 = vpop.permute.xlu0 %978
      %983 = vrot.lane.b32.xlu0 %v878, 96
      %v984 = vpop.permute.xlu0 %983
      %985 = vrot.lane.b32.xlu0 %v871, 96
      %v986 = vpop.permute.xlu0 %985
      %990 = vrot.lane.b32.xlu0 %v903, 32
      %v991 = vpop.permute.xlu0 %990
      %992 = vrot.lane.b32.xlu0 %v896, 32
      %v993 = vpop.permute.xlu0 %992
      %997 = vrot.lane.b32.xlu0 %v916, 64
      %v998 = vpop.permute.xlu0 %997
      %999 = vrot.lane.b32.xlu0 %v909, 64
      %v1000 = vpop.permute.xlu0 %999
      %1004 = vrot.lane.b32.xlu0 %v925, 96
      %v1005 = vpop.permute.xlu0 %1004
      %1006 = vrot.lane.b32.xlu0 %v918, 96
      %v1007 = vpop.permute.xlu0 %1006
      %vm1010 = vcmask 261120
      %v1011 = vsel %vm1010, %v733, %v928
      %v1012 = vsel %vm1010, %v718, %v930
      %vm1013 = vcmask 523264
      %v1014 = vsel %vm1013, %v1011, %v935
      %v1015 = vsel %vm1013, %v1012, %v937
      %vm1016 = vcmask 785408
      %v1017 = vsel %vm1016, %v1014, %v942
      %v1018 = vsel %vm1016, %v1015, %v944
      %v1019 = vsel %vm1010, %v795, %v949
      %v1020 = vsel %vm1010, %v787, %v951
      %v1021 = vsel %vm1013, %v1019, %v956
      %v1022 = vsel %vm1013, %v1020, %v958
      %v1023 = vsel %vm1016, %v1021, %v963
      %v1024 = vsel %vm1016, %v1022, %v965
      %v1025 = vsel %vm1010, %v846, %v970
      %v1026 = vsel %vm1010, %v838, %v972
      %v1027 = vsel %vm1013, %v1025, %v977
      %v1028 = vsel %vm1013, %v1026, %v979
      %v1029 = vsel %vm1016, %v1027, %v984
      %v1030 = vsel %vm1016, %v1028, %v986
      %v1031 = vsel %vm1010, %v893, %v991
      %v1032 = vsel %vm1010, %v885, %v993
      %v1033 = vsel %vm1013, %v1031, %v998
      %v1034 = vsel %vm1013, %v1032, %v1000
      %v1035 = vsel %vm1016, %v1033, %v1005
      %v1036 = vsel %vm1016, %v1034, %v1007
      %v1037 = vpack.c.bf16 %v1018, %v1017
      %v1038 = vpack.c.bf16 %v1024, %v1023
      %v1039 = vpack.c.bf16 %v1030, %v1029
      %v1040 = vpack.c.bf16 %v1036, %v1035
      %v1041 = vld [vmem:[%s3] sm:$0xf]
      %v1042 = vld [vmem:[%s3 + $0x4] sm:$0xf]
      %v1043 = vld [vmem:[%s3 + $0x8] sm:$0xf]
      %v1044 = vld [vmem:[%s3 + $0xc] sm:$0xf]
      %v1045 = vld [vmem:[%s3 + $0x10] sm:$0xf]
      %v1046 = vld [vmem:[%s3 + $0x14] sm:$0xf]
      %v1047 = vld [vmem:[%s3 + $0x18] sm:$0xf]
      %v1048 = vld [vmem:[%s3 + $0x1c] sm:$0xf]
      %v1049 = vld [vmem:[%s3 + $0x20] sm:$0xf]
      %v1050 = vld [vmem:[%s3 + $0x24] sm:$0xf]
      %v1051 = vld [vmem:[%s3 + $0x28] sm:$0xf]
      %v1052 = vld [vmem:[%s3 + $0x2c] sm:$0xf]
      %v1053 = vld [vmem:[%s3 + $0x30] sm:$0xf]
      %v1054 = vld [vmem:[%s3 + $0x34] sm:$0xf]
      %v1055 = vld [vmem:[%s3 + $0x38] sm:$0xf]
      %v1056 = vld [vmem:[%s3 + $0x3c] sm:$0xf]
      %v1057 = vld [vmem:[%s3 + $0x40] sm:$0xf]
      %v1058 = vld [vmem:[%s3 + $0x44] sm:$0xf]
      %v1059 = vld [vmem:[%s3 + $0x48] sm:$0xf]
      %v1060 = vld [vmem:[%s3 + $0x4c] sm:$0xf]
      %v1061 = vld [vmem:[%s3 + $0x50] sm:$0xf]
      %v1062 = vld [vmem:[%s3 + $0x54] sm:$0xf]
      %v1063 = vld [vmem:[%s3 + $0x58] sm:$0xf]
      %v1064 = vld [vmem:[%s3 + $0x5c] sm:$0xf]
      %v1065 = vld [vmem:[%s3 + $0x60] sm:$0xf]
      %v1066 = vld [vmem:[%s3 + $0x64] sm:$0xf]
      %v1067 = vld [vmem:[%s3 + $0x68] sm:$0xf]
      %v1068 = vld [vmem:[%s3 + $0x6c] sm:$0xf]
      %v1069 = vld [vmem:[%s3 + $0x70] sm:$0xf]
      %v1070 = vld [vmem:[%s3 + $0x74] sm:$0xf]
      %v1071 = vld [vmem:[%s3 + $0x78] sm:$0xf]
      %v1072 = vld [vmem:[%s3 + $0x7c] sm:$0xf]
      %v1073 = vld [vmem:[%s3 + $0x80] sm:$0xf]
      %v1074 = vld [vmem:[%s3 + $0x84] sm:$0xf]
      %v1075 = vld [vmem:[%s3 + $0x88] sm:$0xf]
      %v1076 = vld [vmem:[%s3 + $0x8c] sm:$0xf]
      %v1077 = vld [vmem:[%s3 + $0x90] sm:$0xf]
      %v1078 = vld [vmem:[%s3 + $0x94] sm:$0xf]
      %v1079 = vld [vmem:[%s3 + $0x98] sm:$0xf]
      %v1080 = vld [vmem:[%s3 + $0x9c] sm:$0xf]
      %v1081 = vld [vmem:[%s3 + $0xa0] sm:$0xf]
      %v1082 = vld [vmem:[%s3 + $0xa4] sm:$0xf]
      %v1083 = vld [vmem:[%s3 + $0xa8] sm:$0xf]
      %v1084 = vld [vmem:[%s3 + $0xac] sm:$0xf]
      %v1085 = vld [vmem:[%s3 + $0xb0] sm:$0xf]
      %v1086 = vld [vmem:[%s3 + $0xb4] sm:$0xf]
      %v1087 = vld [vmem:[%s3 + $0xb8] sm:$0xf]
      %v1088 = vld [vmem:[%s3 + $0xbc] sm:$0xf]
      %v1089 = vld [vmem:[%s3 + $0xc0] sm:$0xf]
      %v1090 = vld [vmem:[%s3 + $0xc4] sm:$0xf]
      %v1091 = vld [vmem:[%s3 + $0xc8] sm:$0xf]
      %v1092 = vld [vmem:[%s3 + $0xcc] sm:$0xf]
      %v1093 = vld [vmem:[%s3 + $0xd0] sm:$0xf]
      %v1094 = vld [vmem:[%s3 + $0xd4] sm:$0xf]
      %v1095 = vld [vmem:[%s3 + $0xd8] sm:$0xf]
      %v1096 = vld [vmem:[%s3 + $0xdc] sm:$0xf]
      %v1097 = vld [vmem:[%s3 + $0xe0] sm:$0xf]
      %v1098 = vld [vmem:[%s3 + $0xe4] sm:$0xf]
      %v1099 = vld [vmem:[%s3 + $0xe8] sm:$0xf]
      %v1100 = vld [vmem:[%s3 + $0xec] sm:$0xf]
      %v1101 = vld [vmem:[%s3 + $0xf0] sm:$0xf]
      %v1102 = vld [vmem:[%s3 + $0xf4] sm:$0xf]
      %v1103 = vld [vmem:[%s3 + $0xf8] sm:$0xf]
      %v1104 = vld [vmem:[%s3 + $0xfc] sm:$0xf]
      %v1105 = vld [vmem:[%s4] sm:$0x1]
      %v1107 = vlaneseq
      %v1108 = vshrl.u32 %v1107, 7
      %v1109 = vsub.s32 0, %v1108
      %v1110 = vrot.slane %v1105, %v1109
      %v1176 = vunpack.c.l.b16 %v1041
      %v1177 = vunpack.c.l.b16 %v1042
      %v1178 = vunpack.c.l.b16 %v1043
      %v1179 = vunpack.c.l.b16 %v1044
      %v1180 = vunpack.c.l.b16 %v1045
      %v1181 = vunpack.c.l.b16 %v1046
      %v1182 = vunpack.c.l.b16 %v1047
      %v1183 = vunpack.c.l.b16 %v1048
      %v1184 = vunpack.c.l.b16 %v1049
      %v1185 = vunpack.c.l.b16 %v1050
      %v1186 = vunpack.c.l.b16 %v1051
      %v1187 = vunpack.c.l.b16 %v1052
      %v1188 = vunpack.c.l.b16 %v1053
      %v1189 = vunpack.c.l.b16 %v1054
      %v1190 = vunpack.c.l.b16 %v1055
      %v1191 = vunpack.c.l.b16 %v1056
      %v1192 = vunpack.c.l.b16 %v1057
      %v1193 = vunpack.c.l.b16 %v1058
      %v1194 = vunpack.c.l.b16 %v1059
      %v1195 = vunpack.c.l.b16 %v1060
      %v1196 = vunpack.c.l.b16 %v1061
      %v1197 = vunpack.c.l.b16 %v1062
      %v1198 = vunpack.c.l.b16 %v1063
      %v1199 = vunpack.c.l.b16 %v1064
      %v1200 = vunpack.c.l.b16 %v1065
      %v1201 = vunpack.c.l.b16 %v1066
      %v1202 = vunpack.c.l.b16 %v1067
      %v1203 = vunpack.c.l.b16 %v1068
      %v1204 = vunpack.c.l.b16 %v1069
      %v1205 = vunpack.c.l.b16 %v1070
      %v1206 = vunpack.c.l.b16 %v1071
      %v1207 = vunpack.c.l.b16 %v1072
      %v1208 = vunpack.c.l.b16 %v1073
      %v1209 = vunpack.c.l.b16 %v1074
      %v1210 = vunpack.c.l.b16 %v1075
      %v1211 = vunpack.c.l.b16 %v1076
      %v1212 = vunpack.c.l.b16 %v1077
      %v1213 = vunpack.c.l.b16 %v1078
      %v1214 = vunpack.c.l.b16 %v1079
      %v1215 = vunpack.c.l.b16 %v1080
      %v1216 = vunpack.c.l.b16 %v1081
      %v1217 = vunpack.c.l.b16 %v1082
      %v1218 = vunpack.c.l.b16 %v1083
      %v1219 = vunpack.c.l.b16 %v1084
      %v1220 = vunpack.c.l.b16 %v1085
      %v1221 = vunpack.c.l.b16 %v1086
      %v1222 = vunpack.c.l.b16 %v1087
      %v1223 = vunpack.c.l.b16 %v1088
      %v1224 = vunpack.c.l.b16 %v1089
      %v1225 = vunpack.c.l.b16 %v1090
      %v1226 = vunpack.c.l.b16 %v1091
      %v1227 = vunpack.c.l.b16 %v1092
      %v1228 = vunpack.c.l.b16 %v1093
      %v1229 = vunpack.c.l.b16 %v1094
      %v1230 = vunpack.c.l.b16 %v1095
      %v1231 = vunpack.c.l.b16 %v1096
      %v1232 = vunpack.c.l.b16 %v1097
      %v1233 = vunpack.c.l.b16 %v1098
      %v1234 = vunpack.c.l.b16 %v1099
      %v1235 = vunpack.c.l.b16 %v1100
      %v1236 = vunpack.c.l.b16 %v1101
      %v1237 = vunpack.c.l.b16 %v1102
      %v1238 = vunpack.c.l.b16 %v1103
      %v1239 = vunpack.c.l.b16 %v1104
      %v1240 = vpack.c.b16 %v1177, %v1176
      %v1241 = vpack.c.b16 %v1179, %v1178
      %v1242 = vpack.c.b16 %v1181, %v1180
      %v1243 = vpack.c.b16 %v1183, %v1182
      %v1244 = vpack.c.b16 %v1185, %v1184
      %v1245 = vpack.c.b16 %v1187, %v1186
      %v1246 = vpack.c.b16 %v1189, %v1188
      %v1247 = vpack.c.b16 %v1191, %v1190
      %v1248 = vpack.c.b16 %v1193, %v1192
      %v1249 = vpack.c.b16 %v1195, %v1194
      %v1250 = vpack.c.b16 %v1197, %v1196
      %v1251 = vpack.c.b16 %v1199, %v1198
      %v1252 = vpack.c.b16 %v1201, %v1200
      %v1253 = vpack.c.b16 %v1203, %v1202
      %v1254 = vpack.c.b16 %v1205, %v1204
      %v1255 = vpack.c.b16 %v1207, %v1206
      %v1256 = vpack.c.b16 %v1209, %v1208
      %v1257 = vpack.c.b16 %v1211, %v1210
      %v1258 = vpack.c.b16 %v1213, %v1212
      %v1259 = vpack.c.b16 %v1215, %v1214
      %v1260 = vpack.c.b16 %v1217, %v1216
      %v1261 = vpack.c.b16 %v1219, %v1218
      %v1262 = vpack.c.b16 %v1221, %v1220
      %v1263 = vpack.c.b16 %v1223, %v1222
      %v1264 = vpack.c.b16 %v1225, %v1224
      %v1265 = vpack.c.b16 %v1227, %v1226
      %v1266 = vpack.c.b16 %v1229, %v1228
      %v1267 = vpack.c.b16 %v1231, %v1230
      %v1268 = vpack.c.b16 %v1233, %v1232
      %v1269 = vpack.c.b16 %v1235, %v1234
      %v1270 = vpack.c.b16 %v1237, %v1236
      %v1271 = vpack.c.b16 %v1239, %v1238
      %1304 = vmatprep.subr.bf16.mxu0 0
      %1305 = vmatpush1.bf16.msra.mxu0 %v1240
      %1306 = vmatprep.subr.bf16.mxu0 0
      %1307 = vmatpush1.bf16.msra.mxu0 %v1241
      %1308 = vmatprep.subr.bf16.mxu0 0
      %1309 = vmatpush1.bf16.msra.mxu0 %v1242
      %1310 = vmatprep.subr.bf16.mxu0 0
      %1311 = vmatpush1.bf16.msra.mxu0 %v1243
      %1312 = vmatprep.subr.bf16.mxu0 0
      %1313 = vmatpush1.bf16.msra.mxu0 %v1244
      %1314 = vmatprep.subr.bf16.mxu0 0
      %1315 = vmatpush1.bf16.msra.mxu0 %v1245
      %1316 = vmatprep.subr.bf16.mxu0 0
      %1317 = vmatpush1.bf16.msra.mxu0 %v1246
      %1318 = vmatprep.subr.bf16.mxu0 0
      %1319 = vmatpush1.bf16.msra.mxu0 %v1247
      %1320 = vmatprep.subr.bf16.mxu0 0
      %1321 = vmatpush1.bf16.msra.mxu0 %v1248
      %1322 = vmatprep.subr.bf16.mxu0 0
      %1323 = vmatpush1.bf16.msra.mxu0 %v1249
      %1324 = vmatprep.subr.bf16.mxu0 0
      %1325 = vmatpush1.bf16.msra.mxu0 %v1250
      %1326 = vmatprep.subr.bf16.mxu0 0
      %1327 = vmatpush1.bf16.msra.mxu0 %v1251
      %1328 = vmatprep.subr.bf16.mxu0 0
      %1329 = vmatpush1.bf16.msra.mxu0 %v1252
      %1330 = vmatprep.subr.bf16.mxu0 0
      %1331 = vmatpush1.bf16.msra.mxu0 %v1253
      %1332 = vmatprep.subr.bf16.mxu0 0
      %1333 = vmatpush1.bf16.msra.mxu0 %v1254
      %1334 = vmatprep.subr.bf16.mxu0 0
      %1335 = vmatpush1.bf16.msra.mxu0 %v1255
      %1336 = vmatprep.mubr.bf16.mxu0 %v1038
      %1337 = vmatmul.mubr.bf16.gmra.mrb[0].mxu0 %v1037
      %v1338 = vpop.f32.mrb[0].mxu0
      %v1339 = vadd.f32 %v1110, %v1338
      %v1340 = vpop.f32.mrb[0].mxu0
      %v1341 = vpop.f32.mrb[0].mxu0
      %v1342 = vadd.f32 %v1110, %v1341
      %v1343 = vpop.f32.mrb[0].mxu0
      %1344 = vdwg.mxu0
      %1345 = vmatprep.subr.bf16.mxu0 0
      %1346 = vmatpush1.bf16.msra.mxu0 %v1256
      %1347 = vmatprep.subr.bf16.mxu0 0
      %1348 = vmatpush1.bf16.msra.mxu0 %v1257
      %1349 = vmatprep.subr.bf16.mxu0 0
      %1350 = vmatpush1.bf16.msra.mxu0 %v1258
      %1351 = vmatprep.subr.bf16.mxu0 0
      %1352 = vmatpush1.bf16.msra.mxu0 %v1259
      %1353 = vmatprep.subr.bf16.mxu0 0
      %1354 = vmatpush1.bf16.msra.mxu0 %v1260
      %1355 = vmatprep.subr.bf16.mxu0 0
      %1356 = vmatpush1.bf16.msra.mxu0 %v1261
      %1357 = vmatprep.subr.bf16.mxu0 0
      %1358 = vmatpush1.bf16.msra.mxu0 %v1262
      %1359 = vmatprep.subr.bf16.mxu0 0
      %1360 = vmatpush1.bf16.msra.mxu0 %v1263
      %1361 = vmatprep.subr.bf16.mxu0 0
      %1362 = vmatpush1.bf16.msra.mxu0 %v1264
      %1363 = vmatprep.subr.bf16.mxu0 0
      %1364 = vmatpush1.bf16.msra.mxu0 %v1265
      %1365 = vmatprep.subr.bf16.mxu0 0
      %1366 = vmatpush1.bf16.msra.mxu0 %v1266
      %1367 = vmatprep.subr.bf16.mxu0 0
      %1368 = vmatpush1.bf16.msra.mxu0 %v1267
      %1369 = vmatprep.subr.bf16.mxu0 0
      %1370 = vmatpush1.bf16.msra.mxu0 %v1268
      %1371 = vmatprep.subr.bf16.mxu0 0
      %1372 = vmatpush1.bf16.msra.mxu0 %v1269
      %1373 = vmatprep.subr.bf16.mxu0 0
      %1374 = vmatpush1.bf16.msra.mxu0 %v1270
      %1375 = vmatprep.subr.bf16.mxu0 0
      %1376 = vmatpush1.bf16.msra.mxu0 %v1271
      %1377 = vmatprep.mubr.bf16.mxu0 %v1040
      %1378 = vmatmul.mubr.bf16.gmra.mrb[0].mxu0 %v1039
      %v1379 = vpop.f32.mrb[0].mxu0
      %v1380 = vadd.f32 %v1339, %v1379
      %v1381 = vpop.f32.mrb[0].mxu0
      %v1382 = vpop.f32.mrb[0].mxu0
      %v1383 = vadd.f32 %v1342, %v1382
      %v1384 = vpop.f32.mrb[0].mxu0
      %1385 = vdwg.mxu0
      %v1386 = vmax.f32 %v1380, 0.0
      %v1387 = vmax.f32 %v1383, 0.0
      %v1389 = vrot.slane %v1386, 1
      %1390 = vrot.lane.b32.xlu0 %v1389, 64
      %v1391 = vpop.permute.xlu0 %1390
      %v1393 = vrot.slane %v1386, 2
      %v1395 = vrot.slane %v1386, 3
      %1396 = vrot.lane.b32.xlu0 %v1395, 64
      %v1397 = vpop.permute.xlu0 %1396
      %v1399 = vrot.slane %v1386, 4
      %v1401 = vrot.slane %v1386, 5
      %1402 = vrot.lane.b32.xlu0 %v1401, 64
      %v1403 = vpop.permute.xlu0 %1402
      %v1405 = vrot.slane %v1386, 6
      %v1407 = vrot.slane %v1386, 7
      %1408 = vrot.lane.b32.xlu0 %v1407, 64
      %v1409 = vpop.permute.xlu0 %1408
      %v1411 = vsel %vm1013, %v1386, %v1391
      %v1412 = vsel %vm1013, %v1393, %v1397
      %v1413 = vsel %vm1013, %v1399, %v1403
      %v1414 = vsel %vm1013, %v1405, %v1409
      %v1415 = vpack.c.bf16 %v1411, %v1411
      %v1416 = vpack.c.bf16 %v1412, %v1412
      %v1417 = vpack.c.bf16 %v1413, %v1413
      %v1418 = vpack.c.bf16 %v1414, %v1414
      %v1419 = vpack.c.bf16 %v1387, %v1387
      %v1420 = vld [vmem:[%s5] sm:$0xf]
      %v1421 = vld [vmem:[%s5 + $0x4] sm:$0xf]
      %v1422 = vld [vmem:[%s5 + $0x8] sm:$0xf]
      %v1423 = vld [vmem:[%s5 + $0xc] sm:$0xf]
      %v1424 = vld [vmem:[%s5 + $0x10] sm:$0xf]
      %v1425 = vld [vmem:[%s5 + $0x14] sm:$0xf]
      %v1426 = vld [vmem:[%s5 + $0x18] sm:$0xf]
      %v1427 = vld [vmem:[%s5 + $0x1c] sm:$0xf]
      %v1428 = vld [vmem:[%s5 + $0x20] sm:$0xf]
      %v1429 = vld [vmem:[%s5 + $0x24] sm:$0xf]
      %v1430 = vld [vmem:[%s5 + $0x28] sm:$0xf]
      %v1431 = vld [vmem:[%s5 + $0x2c] sm:$0xf]
      %v1432 = vld [vmem:[%s5 + $0x30] sm:$0xf]
      %v1433 = vld [vmem:[%s5 + $0x34] sm:$0xf]
      %v1434 = vld [vmem:[%s5 + $0x38] sm:$0xf]
      %v1435 = vld [vmem:[%s5 + $0x3c] sm:$0xf]
      %v1436 = vld [vmem:[%s5 + $0x40] sm:$0xf]
      %v1437 = vld [vmem:[%s5 + $0x44] sm:$0xf]
      %v1438 = vld [vmem:[%s5 + $0x48] sm:$0xf]
      %v1439 = vld [vmem:[%s5 + $0x4c] sm:$0xf]
      %v1440 = vld [vmem:[%s5 + $0x50] sm:$0xf]
      %v1441 = vld [vmem:[%s5 + $0x54] sm:$0xf]
      %v1442 = vld [vmem:[%s5 + $0x58] sm:$0xf]
      %v1443 = vld [vmem:[%s5 + $0x5c] sm:$0xf]
      %v1444 = vld [vmem:[%s5 + $0x60] sm:$0xf]
      %v1445 = vld [vmem:[%s5 + $0x64] sm:$0xf]
      %v1446 = vld [vmem:[%s5 + $0x68] sm:$0xf]
      %v1447 = vld [vmem:[%s5 + $0x6c] sm:$0xf]
      %v1448 = vld [vmem:[%s5 + $0x70] sm:$0xf]
      %v1449 = vld [vmem:[%s5 + $0x74] sm:$0xf]
      %v1450 = vld [vmem:[%s5 + $0x78] sm:$0xf]
      %v1451 = vld [vmem:[%s5 + $0x7c] sm:$0xf]
      %v1452 = vld [vmem:[%s5 + $0x80] sm:$0xf]
      %v1453 = vld [vmem:[%s5 + $0x84] sm:$0xf]
      %v1454 = vld [vmem:[%s5 + $0x88] sm:$0xf]
      %v1455 = vld [vmem:[%s5 + $0x8c] sm:$0xf]
      %v1456 = vld [vmem:[%s5 + $0x90] sm:$0xf]
      %v1457 = vld [vmem:[%s5 + $0x94] sm:$0xf]
      %v1458 = vld [vmem:[%s5 + $0x98] sm:$0xf]
      %v1459 = vld [vmem:[%s5 + $0x9c] sm:$0xf]
      %v1460 = vld [vmem:[%s5 + $0xa0] sm:$0xf]
      %v1461 = vld [vmem:[%s5 + $0xa4] sm:$0xf]
      %v1462 = vld [vmem:[%s5 + $0xa8] sm:$0xf]
      %v1463 = vld [vmem:[%s5 + $0xac] sm:$0xf]
      %v1464 = vld [vmem:[%s5 + $0xb0] sm:$0xf]
      %v1465 = vld [vmem:[%s5 + $0xb4] sm:$0xf]
      %v1466 = vld [vmem:[%s5 + $0xb8] sm:$0xf]
      %v1467 = vld [vmem:[%s5 + $0xbc] sm:$0xf]
      %v1468 = vld [vmem:[%s5 + $0xc0] sm:$0xf]
      %v1469 = vld [vmem:[%s5 + $0xc4] sm:$0xf]
      %v1470 = vld [vmem:[%s5 + $0xc8] sm:$0xf]
      %v1471 = vld [vmem:[%s5 + $0xcc] sm:$0xf]
      %v1472 = vld [vmem:[%s5 + $0xd0] sm:$0xf]
      %v1473 = vld [vmem:[%s5 + $0xd4] sm:$0xf]
      %v1474 = vld [vmem:[%s5 + $0xd8] sm:$0xf]
      %v1475 = vld [vmem:[%s5 + $0xdc] sm:$0xf]
      %v1476 = vld [vmem:[%s5 + $0xe0] sm:$0xf]
      %v1477 = vld [vmem:[%s5 + $0xe4] sm:$0xf]
      %v1478 = vld [vmem:[%s5 + $0xe8] sm:$0xf]
      %v1479 = vld [vmem:[%s5 + $0xec] sm:$0xf]
      %v1480 = vld [vmem:[%s5 + $0xf0] sm:$0xf]
      %v1481 = vld [vmem:[%s5 + $0xf4] sm:$0xf]
      %v1482 = vld [vmem:[%s5 + $0xf8] sm:$0xf]
      %v1483 = vld [vmem:[%s5 + $0xfc] sm:$0xf]
      %v1484 = vld [vmem:[%s5 + $0x100] sm:$0xf]
      %v1485 = vld [vmem:[%s5 + $0x104] sm:$0xf]
      %v1486 = vld [vmem:[%s5 + $0x108] sm:$0xf]
      %v1487 = vld [vmem:[%s5 + $0x10c] sm:$0xf]
      %v1488 = vld [vmem:[%s5 + $0x110] sm:$0xf]
      %v1489 = vld [vmem:[%s5 + $0x114] sm:$0xf]
      %v1490 = vld [vmem:[%s5 + $0x118] sm:$0xf]
      %v1491 = vld [vmem:[%s5 + $0x11c] sm:$0xf]
      %v1492 = vld [vmem:[%s6] sm:$0x1]
      %v1565 = vunpack.c.l.b16 %v1420
      %v1566 = vunpack.c.l.b16 %v1421
      %v1567 = vunpack.c.l.b16 %v1422
      %v1568 = vunpack.c.l.b16 %v1423
      %v1569 = vunpack.c.l.b16 %v1424
      %v1570 = vunpack.c.l.b16 %v1425
      %v1571 = vunpack.c.l.b16 %v1426
      %v1572 = vunpack.c.l.b16 %v1427
      %v1573 = vunpack.c.l.b16 %v1428
      %v1574 = vunpack.c.l.b16 %v1429
      %v1575 = vunpack.c.l.b16 %v1430
      %v1576 = vunpack.c.l.b16 %v1431
      %v1577 = vunpack.c.l.b16 %v1432
      %v1578 = vunpack.c.l.b16 %v1433
      %v1579 = vunpack.c.l.b16 %v1434
      %v1580 = vunpack.c.l.b16 %v1435
      %v1581 = vunpack.c.l.b16 %v1436
      %v1582 = vunpack.c.l.b16 %v1437
      %v1583 = vunpack.c.l.b16 %v1438
      %v1584 = vunpack.c.l.b16 %v1439
      %v1585 = vunpack.c.l.b16 %v1440
      %v1586 = vunpack.c.l.b16 %v1441
      %v1587 = vunpack.c.l.b16 %v1442
      %v1588 = vunpack.c.l.b16 %v1443
      %v1589 = vunpack.c.l.b16 %v1444
      %v1590 = vunpack.c.l.b16 %v1445
      %v1591 = vunpack.c.l.b16 %v1446
      %v1592 = vunpack.c.l.b16 %v1447
      %v1593 = vunpack.c.l.b16 %v1448
      %v1594 = vunpack.c.l.b16 %v1449
      %v1595 = vunpack.c.l.b16 %v1450
      %v1596 = vunpack.c.l.b16 %v1451
      %v1597 = vunpack.c.l.b16 %v1452
      %v1598 = vunpack.c.l.b16 %v1453
      %v1599 = vunpack.c.l.b16 %v1454
      %v1600 = vunpack.c.l.b16 %v1455
      %v1601 = vunpack.c.l.b16 %v1456
      %v1602 = vunpack.c.l.b16 %v1457
      %v1603 = vunpack.c.l.b16 %v1458
      %v1604 = vunpack.c.l.b16 %v1459
      %v1605 = vunpack.c.l.b16 %v1460
      %v1606 = vunpack.c.l.b16 %v1461
      %v1607 = vunpack.c.l.b16 %v1462
      %v1608 = vunpack.c.l.b16 %v1463
      %v1609 = vunpack.c.l.b16 %v1464
      %v1610 = vunpack.c.l.b16 %v1465
      %v1611 = vunpack.c.l.b16 %v1466
      %v1612 = vunpack.c.l.b16 %v1467
      %v1613 = vunpack.c.l.b16 %v1468
      %v1614 = vunpack.c.l.b16 %v1469
      %v1615 = vunpack.c.l.b16 %v1470
      %v1616 = vunpack.c.l.b16 %v1471
      %v1617 = vunpack.c.l.b16 %v1472
      %v1618 = vunpack.c.l.b16 %v1473
      %v1619 = vunpack.c.l.b16 %v1474
      %v1620 = vunpack.c.l.b16 %v1475
      %v1621 = vunpack.c.l.b16 %v1476
      %v1622 = vunpack.c.l.b16 %v1477
      %v1623 = vunpack.c.l.b16 %v1478
      %v1624 = vunpack.c.l.b16 %v1479
      %v1625 = vunpack.c.l.b16 %v1480
      %v1626 = vunpack.c.l.b16 %v1481
      %v1627 = vunpack.c.l.b16 %v1482
      %v1628 = vunpack.c.l.b16 %v1483
      %v1629 = vunpack.c.l.b16 %v1484
      %v1630 = vunpack.c.l.b16 %v1485
      %v1631 = vunpack.c.l.b16 %v1486
      %v1632 = vunpack.c.l.b16 %v1487
      %v1633 = vunpack.c.l.b16 %v1488
      %v1634 = vunpack.c.l.b16 %v1489
      %v1635 = vunpack.c.l.b16 %v1490
      %v1636 = vunpack.c.l.b16 %v1491
      %v1637 = vpack.c.b16 %v1566, %v1565
      %v1638 = vpack.c.b16 %v1568, %v1567
      %v1639 = vpack.c.b16 %v1570, %v1569
      %v1640 = vpack.c.b16 %v1572, %v1571
      %v1641 = vpack.c.b16 %v1574, %v1573
      %v1642 = vpack.c.b16 %v1576, %v1575
      %v1643 = vpack.c.b16 %v1578, %v1577
      %v1644 = vpack.c.b16 %v1580, %v1579
      %v1645 = vpack.c.b16 %v1582, %v1581
      %v1646 = vpack.c.b16 %v1584, %v1583
      %v1647 = vpack.c.b16 %v1586, %v1585
      %v1648 = vpack.c.b16 %v1588, %v1587
      %v1649 = vpack.c.b16 %v1590, %v1589
      %v1650 = vpack.c.b16 %v1592, %v1591
      %v1651 = vpack.c.b16 %v1594, %v1593
      %v1652 = vpack.c.b16 %v1596, %v1595
      %v1653 = vpack.c.b16 %v1598, %v1597
      %v1654 = vpack.c.b16 %v1600, %v1599
      %v1655 = vpack.c.b16 %v1602, %v1601
      %v1656 = vpack.c.b16 %v1604, %v1603
      %v1657 = vpack.c.b16 %v1606, %v1605
      %v1658 = vpack.c.b16 %v1608, %v1607
      %v1659 = vpack.c.b16 %v1610, %v1609
      %v1660 = vpack.c.b16 %v1612, %v1611
      %v1661 = vpack.c.b16 %v1614, %v1613
      %v1662 = vpack.c.b16 %v1616, %v1615
      %v1663 = vpack.c.b16 %v1618, %v1617
      %v1664 = vpack.c.b16 %v1620, %v1619
      %v1665 = vpack.c.b16 %v1622, %v1621
      %v1666 = vpack.c.b16 %v1624, %v1623
      %v1667 = vpack.c.b16 %v1626, %v1625
      %v1668 = vpack.c.b16 %v1628, %v1627
      %v1669 = vpack.c.b16 %v1630, %v1629
      %v1670 = vpack.c.b16 %v1632, %v1631
      %v1671 = vpack.c.b16 %v1634, %v1633
      %v1672 = vpack.c.b16 %v1636, %v1635
      %v1710 = vsel %vm1013, %v1419, 0
      %1712 = vmatprep.subr.bf16.mxu0 0
      %1713 = vmatpush1.bf16.msra.mxu0 %v1637
      %1714 = vmatprep.subr.bf16.mxu0 0
      %1715 = vmatpush1.bf16.msra.mxu0 %v1638
      %1716 = vmatprep.subr.bf16.mxu0 0
      %1717 = vmatpush1.bf16.msra.mxu0 %v1639
      %1718 = vmatprep.subr.bf16.mxu0 0
      %1719 = vmatpush1.bf16.msra.mxu0 %v1640
      %1720 = vmatprep.subr.bf16.mxu0 0
      %1721 = vmatpush1.bf16.msra.mxu0 %v1641
      %1722 = vmatprep.subr.bf16.mxu0 0
      %1723 = vmatpush1.bf16.msra.mxu0 %v1642
      %1724 = vmatprep.subr.bf16.mxu0 0
      %1725 = vmatpush1.bf16.msra.mxu0 %v1643
      %1726 = vmatprep.subr.bf16.mxu0 0
      %1727 = vmatpush1.bf16.msra.mxu0 %v1644
      %1728 = vmatprep.subr.bf16.mxu0 0
      %1729 = vmatpush1.bf16.msra.mxu0 %v1645
      %1730 = vmatprep.subr.bf16.mxu0 0
      %1731 = vmatpush1.bf16.msra.mxu0 %v1646
      %1732 = vmatprep.subr.bf16.mxu0 0
      %1733 = vmatpush1.bf16.msra.mxu0 %v1647
      %1734 = vmatprep.subr.bf16.mxu0 0
      %1735 = vmatpush1.bf16.msra.mxu0 %v1648
      %1736 = vmatprep.subr.bf16.mxu0 0
      %1737 = vmatpush1.bf16.msra.mxu0 %v1649
      %1738 = vmatprep.subr.bf16.mxu0 0
      %1739 = vmatpush1.bf16.msra.mxu0 %v1650
      %1740 = vmatprep.subr.bf16.mxu0 0
      %1741 = vmatpush1.bf16.msra.mxu0 %v1651
      %1742 = vmatprep.subr.bf16.mxu0 0
      %1743 = vmatpush1.bf16.msra.mxu0 %v1652
      %1744 = vmatprep.mubr.bf16.mxu0 %v1416
      %1745 = vmatmul.mubr.bf16.gmra.mrb[0].mxu0 %v1415
      %v1746 = vpop.f32.mrb[0].mxu0
      %v1747 = vadd.f32 %v1492, %v1746
      %v1748 = vpop.f32.mrb[0].mxu0
      %v1749 = vpop.f32.mrb[0].mxu0
      %v1750 = vpop.f32.mrb[0].mxu0
      %1751 = vdwg.mxu0
      %1752 = vmatprep.subr.bf16.mxu0 0
      %1753 = vmatpush1.bf16.msra.mxu0 %v1653
      %1754 = vmatprep.subr.bf16.mxu0 0
      %1755 = vmatpush1.bf16.msra.mxu0 %v1654
      %1756 = vmatprep.subr.bf16.mxu0 0
      %1757 = vmatpush1.bf16.msra.mxu0 %v1655
      %1758 = vmatprep.subr.bf16.mxu0 0
      %1759 = vmatpush1.bf16.msra.mxu0 %v1656
      %1760 = vmatprep.subr.bf16.mxu0 0
      %1761 = vmatpush1.bf16.msra.mxu0 %v1657
      %1762 = vmatprep.subr.bf16.mxu0 0
      %1763 = vmatpush1.bf16.msra.mxu0 %v1658
      %1764 = vmatprep.subr.bf16.mxu0 0
      %1765 = vmatpush1.bf16.msra.mxu0 %v1659
      %1766 = vmatprep.subr.bf16.mxu0 0
      %1767 = vmatpush1.bf16.msra.mxu0 %v1660
      %1768 = vmatprep.subr.bf16.mxu0 0
      %1769 = vmatpush1.bf16.msra.mxu0 %v1661
      %1770 = vmatprep.subr.bf16.mxu0 0
      %1771 = vmatpush1.bf16.msra.mxu0 %v1662
      %1772 = vmatprep.subr.bf16.mxu0 0
      %1773 = vmatpush1.bf16.msra.mxu0 %v1663
      %1774 = vmatprep.subr.bf16.mxu0 0
      %1775 = vmatpush1.bf16.msra.mxu0 %v1664
      %1776 = vmatprep.subr.bf16.mxu0 0
      %1777 = vmatpush1.bf16.msra.mxu0 %v1665
      %1778 = vmatprep.subr.bf16.mxu0 0
      %1779 = vmatpush1.bf16.msra.mxu0 %v1666
      %1780 = vmatprep.subr.bf16.mxu0 0
      %1781 = vmatpush1.bf16.msra.mxu0 %v1667
      %1782 = vmatprep.subr.bf16.mxu0 0
      %1783 = vmatpush1.bf16.msra.mxu0 %v1668
      %1784 = vmatprep.mubr.bf16.mxu0 %v1418
      %1785 = vmatmul.mubr.bf16.gmra.mrb[0].mxu0 %v1417
      %v1786 = vpop.f32.mrb[0].mxu0
      %v1787 = vadd.f32 %v1747, %v1786
      %v1788 = vpop.f32.mrb[0].mxu0
      %v1789 = vpop.f32.mrb[0].mxu0
      %v1790 = vpop.f32.mrb[0].mxu0
      %1791 = vdwg.mxu0
      %1792 = vmatprep.subr.bf16.mxu0 0
      %1793 = vmatpush1.bf16.msra.mxu0 %v1669
      %1794 = vmatprep.subr.bf16.mxu0 0
      %1795 = vmatpush1.bf16.msra.mxu0 %v1670
      %1796 = vmatprep.subr.bf16.mxu0 0
      %1797 = vmatpush1.bf16.msra.mxu0 %v1671
      %1798 = vmatprep.subr.bf16.mxu0 0
      %1799 = vmatpush1.bf16.msra.mxu0 %v1672
      %1800 = vmatprep.subr.bf16.mxu0 0
      %1801 = vmatpush1.bf16.msra.mxu0 0
      %1802 = vmatprep.subr.bf16.mxu0 0
      %1803 = vmatpush1.bf16.msra.mxu0 0
      %1804 = vmatprep.subr.bf16.mxu0 0
      %1805 = vmatpush1.bf16.msra.mxu0 0
      %1806 = vmatprep.subr.bf16.mxu0 0
      %1807 = vmatpush1.bf16.msra.mxu0 0
      %1808 = vmatprep.subr.bf16.mxu0 0
      %1809 = vmatpush1.bf16.msra.mxu0 0
      %1810 = vmatprep.subr.bf16.mxu0 0
      %1811 = vmatpush1.bf16.msra.mxu0 0
      %1812 = vmatprep.subr.bf16.mxu0 0
      %1813 = vmatpush1.bf16.msra.mxu0 0
      %1814 = vmatprep.subr.bf16.mxu0 0
      %1815 = vmatpush1.bf16.msra.mxu0 0
      %1816 = vmatprep.subr.bf16.mxu0 0
      %1817 = vmatpush1.bf16.msra.mxu0 0
      %1818 = vmatprep.subr.bf16.mxu0 0
      %1819 = vmatpush1.bf16.msra.mxu0 0
      %1820 = vmatprep.subr.bf16.mxu0 0
      %1821 = vmatpush1.bf16.msra.mxu0 0
      %1822 = vmatprep.subr.bf16.mxu0 0
      %1823 = vmatpush1.bf16.msra.mxu0 0
      %1824 = vmatprep.mubr.bf16.mxu0 0
      %1825 = vmatmul.mubr.bf16.gmra.mrb[0].mxu0 %v1710
      %v1826 = vpop.f32.mrb[0].mxu0
      %v1827 = vadd.f32 %v1787, %v1826
      %v1828 = vpop.f32.mrb[0].mxu0
      %v1829 = vpop.f32.mrb[0].mxu0
      %v1830 = vpop.f32.mrb[0].mxu0
      %1831 = vdwg.mxu0
      %v1832 = vmax.f32 %v1827, 0.0
      %v1833 = vpack.c.bf16 %v1832, %v1832
      %v1834 = vld [vmem:[%s7] sm:$0xff]
      %v1835 = vld [vmem:[%s7 + $0x8] sm:$0xff]
      %v1836 = vld [vmem:[%s7 + $0x10] sm:$0xff]
      %v1837 = vld [vmem:[%s7 + $0x18] sm:$0xff]
      %v1838 = vld [vmem:[%s7 + $0x20] sm:$0xff]
      %v1839 = vld [vmem:[%s7 + $0x28] sm:$0xff]
      %v1840 = vld [vmem:[%s7 + $0x30] sm:$0xff]
      %v1841 = vld [vmem:[%s7 + $0x38] sm:$0xff]
      %v1842 = vld [vmem:[%s7 + $0x40] sm:$0xff]
      %v1843 = vld [vmem:[%s7 + $0x48] sm:$0xff]
      %v1844 = vld [vmem:[%s7 + $0x50] sm:$0xff]
      %v1845 = vld [vmem:[%s7 + $0x58] sm:$0xff]
      %v1846 = vld [vmem:[%s7 + $0x60] sm:$0xff]
      %v1847 = vld [vmem:[%s7 + $0x68] sm:$0xff]
      %v1848 = vld [vmem:[%s7 + $0x70] sm:$0xff]
      %v1849 = vld [vmem:[%s7 + $0x78] sm:$0xff]
      %v1850 = vld [vmem:[%s7 + $0x80] sm:$0xff]
      %v1851 = vld [vmem:[%s7 + $0x88] sm:$0xff]
      %v1852 = vld [vmem:[%s7 + $0x90] sm:$0xff]
      %v1853 = vld [vmem:[%s7 + $0x98] sm:$0xff]
      %v1854 = vld [vmem:[%s7 + $0xa0] sm:$0xff]
      %v1855 = vld [vmem:[%s7 + $0xa8] sm:$0xff]
      %v1856 = vld [vmem:[%s7 + $0xb0] sm:$0xff]
      %v1857 = vld [vmem:[%s7 + $0xb8] sm:$0xff]
      %v1858 = vld [vmem:[%s7 + $0xc0] sm:$0xff]
      %v1859 = vld [vmem:[%s7 + $0xc8] sm:$0xff]
      %v1860 = vld [vmem:[%s7 + $0xd0] sm:$0xff]
      %v1861 = vld [vmem:[%s7 + $0xd8] sm:$0xff]
      %v1862 = vld [vmem:[%s7 + $0xe0] sm:$0xff]
      %v1863 = vld [vmem:[%s7 + $0xe8] sm:$0xff]
      %v1864 = vld [vmem:[%s7 + $0xf0] sm:$0xff]
      %v1865 = vld [vmem:[%s7 + $0xf8] sm:$0xff]
      %v1866 = vld [vmem:[%s8] sm:$0xff]
      %v1899 = vunpack.c.l.b16 %v1834
      %v1900 = vunpack.c.h.b16 %v1834
      %v1901 = vunpack.c.l.b16 %v1835
      %v1902 = vunpack.c.h.b16 %v1835
      %v1903 = vunpack.c.l.b16 %v1836
      %v1904 = vunpack.c.h.b16 %v1836
      %v1905 = vunpack.c.l.b16 %v1837
      %v1906 = vunpack.c.h.b16 %v1837
      %v1907 = vunpack.c.l.b16 %v1838
      %v1908 = vunpack.c.h.b16 %v1838
      %v1909 = vunpack.c.l.b16 %v1839
      %v1910 = vunpack.c.h.b16 %v1839
      %v1911 = vunpack.c.l.b16 %v1840
      %v1912 = vunpack.c.h.b16 %v1840
      %v1913 = vunpack.c.l.b16 %v1841
      %v1914 = vunpack.c.h.b16 %v1841
      %v1915 = vunpack.c.l.b16 %v1842
      %v1916 = vunpack.c.h.b16 %v1842
      %v1917 = vunpack.c.l.b16 %v1843
      %v1918 = vunpack.c.h.b16 %v1843
      %v1919 = vunpack.c.l.b16 %v1844
      %v1920 = vunpack.c.h.b16 %v1844
      %v1921 = vunpack.c.l.b16 %v1845
      %v1922 = vunpack.c.h.b16 %v1845
      %v1923 = vunpack.c.l.b16 %v1846
      %v1924 = vunpack.c.h.b16 %v1846
      %v1925 = vunpack.c.l.b16 %v1847
      %v1926 = vunpack.c.h.b16 %v1847
      %v1927 = vunpack.c.l.b16 %v1848
      %v1928 = vunpack.c.h.b16 %v1848
      %v1929 = vunpack.c.l.b16 %v1849
      %v1930 = vunpack.c.h.b16 %v1849
      %v1931 = vunpack.c.l.b16 %v1850
      %v1932 = vunpack.c.h.b16 %v1850
      %v1933 = vunpack.c.l.b16 %v1851
      %v1934 = vunpack.c.h.b16 %v1851
      %v1935 = vunpack.c.l.b16 %v1852
      %v1936 = vunpack.c.h.b16 %v1852
      %v1937 = vunpack.c.l.b16 %v1853
      %v1938 = vunpack.c.h.b16 %v1853
      %v1939 = vunpack.c.l.b16 %v1854
      %v1940 = vunpack.c.h.b16 %v1854
      %v1941 = vunpack.c.l.b16 %v1855
      %v1942 = vunpack.c.h.b16 %v1855
      %v1943 = vunpack.c.l.b16 %v1856
      %v1944 = vunpack.c.h.b16 %v1856
      %v1945 = vunpack.c.l.b16 %v1857
      %v1946 = vunpack.c.h.b16 %v1857
      %v1947 = vunpack.c.l.b16 %v1858
      %v1948 = vunpack.c.h.b16 %v1858
      %v1949 = vunpack.c.l.b16 %v1859
      %v1950 = vunpack.c.h.b16 %v1859
      %v1951 = vunpack.c.l.b16 %v1860
      %v1952 = vunpack.c.h.b16 %v1860
      %v1953 = vunpack.c.l.b16 %v1861
      %v1954 = vunpack.c.h.b16 %v1861
      %v1955 = vunpack.c.l.b16 %v1862
      %v1956 = vunpack.c.h.b16 %v1862
      %v1957 = vunpack.c.l.b16 %v1863
      %v1958 = vunpack.c.h.b16 %v1863
      %v1959 = vunpack.c.l.b16 %v1864
      %v1960 = vunpack.c.h.b16 %v1864
      %v1961 = vunpack.c.l.b16 %v1865
      %v1962 = vunpack.c.h.b16 %v1865
      %v1963 = vpack.c.b16 %v1907, %v1899
      %v1964 = vpack.c.b16 %v1908, %v1900
      %v1965 = vpack.c.b16 %v1909, %v1901
      %v1966 = vpack.c.b16 %v1910, %v1902
      %v1967 = vpack.c.b16 %v1911, %v1903
      %v1968 = vpack.c.b16 %v1912, %v1904
      %v1969 = vpack.c.b16 %v1913, %v1905
      %v1970 = vpack.c.b16 %v1914, %v1906
      %v1971 = vpack.c.b16 %v1923, %v1915
      %v1972 = vpack.c.b16 %v1924, %v1916
      %v1973 = vpack.c.b16 %v1925, %v1917
      %v1974 = vpack.c.b16 %v1926, %v1918
      %v1975 = vpack.c.b16 %v1927, %v1919
      %v1976 = vpack.c.b16 %v1928, %v1920
      %v1977 = vpack.c.b16 %v1929, %v1921
      %v1978 = vpack.c.b16 %v1930, %v1922
      %v1979 = vpack.c.b16 %v1939, %v1931
      %v1980 = vpack.c.b16 %v1940, %v1932
      %v1981 = vpack.c.b16 %v1941, %v1933
      %v1982 = vpack.c.b16 %v1942, %v1934
      %v1983 = vpack.c.b16 %v1943, %v1935
      %v1984 = vpack.c.b16 %v1944, %v1936
      %v1985 = vpack.c.b16 %v1945, %v1937
      %v1986 = vpack.c.b16 %v1946, %v1938
      %v1987 = vpack.c.b16 %v1955, %v1947
      %v1988 = vpack.c.b16 %v1956, %v1948
      %v1989 = vpack.c.b16 %v1957, %v1949
      %v1990 = vpack.c.b16 %v1958, %v1950
      %v1991 = vpack.c.b16 %v1959, %v1951
      %v1992 = vpack.c.b16 %v1960, %v1952
      %v1993 = vpack.c.b16 %v1961, %v1953
      %v1994 = vpack.c.b16 %v1962, %v1954
      %v2028 = vlaneseq
      %v2029 = vshrl.u32 %v2028, 7
      %v2030 = vsub.s32 0, %v2029
      %v2031 = vrot.slane %v1866, %v2030
      %v2032 = vlaneseq
      %v2033 = vshrl.u32 %v2032, 7
      %v2034 = vsub.s32 1, %v2033
      %v2035 = vrot.slane %v1866, %v2034
      %v2036 = vlaneseq
      %v2037 = vshrl.u32 %v2036, 7
      %v2038 = vsub.s32 2, %v2037
      %v2039 = vrot.slane %v1866, %v2038
      %v2040 = vlaneseq
      %v2041 = vshrl.u32 %v2040, 7
      %v2042 = vsub.s32 3, %v2041
      %v2043 = vrot.slane %v1866, %v2042
      %v2044 = vlaneseq
      %v2045 = vshrl.u32 %v2044, 7
      %v2046 = vsub.s32 4, %v2045
      %v2047 = vrot.slane %v1866, %v2046
      %v2048 = vlaneseq
      %v2049 = vshrl.u32 %v2048, 7
      %v2050 = vsub.s32 5, %v2049
      %v2051 = vrot.slane %v1866, %v2050
      %v2052 = vlaneseq
      %v2053 = vshrl.u32 %v2052, 7
      %v2054 = vsub.s32 6, %v2053
      %v2055 = vrot.slane %v1866, %v2054
      %v2056 = vlaneseq
      %v2057 = vshrl.u32 %v2056, 7
      %v2058 = vsub.s32 7, %v2057
      %v2059 = vrot.slane %v1866, %v2058
      %v2069 = vsel %vm1013, %v1833, 0
      %2071 = vmatprep.subr.bf16.mxu0 %v1964
      %2072 = vmatpush1.bf16.msra.mxu0 %v1963
      %2073 = vmatprep.subr.bf16.mxu0 %v1972
      %2074 = vmatpush1.bf16.msra.mxu0 %v1971
      %2075 = vmatprep.subr.bf16.mxu0 %v1980
      %2076 = vmatpush1.bf16.msra.mxu0 %v1979
      %2077 = vmatprep.subr.bf16.mxu0 %v1988
      %2078 = vmatpush1.bf16.msra.mxu0 %v1987
      %2079 = vmatprep.subr.bf16.mxu0 0
      %2080 = vmatpush1.bf16.msra.mxu0 0
      %2081 = vmatprep.subr.bf16.mxu0 0
      %2082 = vmatpush1.bf16.msra.mxu0 0
      %2083 = vmatprep.subr.bf16.mxu0 0
      %2084 = vmatpush1.bf16.msra.mxu0 0
      %2085 = vmatprep.subr.bf16.mxu0 0
      %2086 = vmatpush1.bf16.msra.mxu0 0
      %2087 = vmatprep.subr.bf16.mxu0 0
      %2088 = vmatpush1.bf16.msra.mxu0 0
      %2089 = vmatprep.subr.bf16.mxu0 0
      %2090 = vmatpush1.bf16.msra.mxu0 0
      %2091 = vmatprep.subr.bf16.mxu0 0
      %2092 = vmatpush1.bf16.msra.mxu0 0
      %2093 = vmatprep.subr.bf16.mxu0 0
      %2094 = vmatpush1.bf16.msra.mxu0 0
      %2095 = vmatprep.subr.bf16.mxu0 0
      %2096 = vmatpush1.bf16.msra.mxu0 0
      %2097 = vmatprep.subr.bf16.mxu0 0
      %2098 = vmatpush1.bf16.msra.mxu0 0
      %2099 = vmatprep.subr.bf16.mxu0 0
      %2100 = vmatpush1.bf16.msra.mxu0 0
      %2101 = vmatprep.subr.bf16.mxu0 0
      %2102 = vmatpush1.bf16.msra.mxu0 0
      %2103 = vmatprep.mubr.bf16.mxu0 0
      %2104 = vmatmul.mubr.bf16.gmra.mrb[0].mxu0 %v2069
      %v2105 = vpop.f32.mrb[0].mxu0
      %v2106 = vadd.f32 %v2031, %v2105
      %v2107 = vpop.f32.mrb[0].mxu0
      %v2108 = vadd.f32 %v2035, %v2107
      %v2109 = vpop.f32.mrb[0].mxu0
      %v2110 = vpop.f32.mrb[0].mxu0
      %2111 = vdwg.mxu0
      %2112 = vmatprep.subr.bf16.mxu0 %v1966
      %2113 = vmatpush1.bf16.msra.mxu0 %v1965
      %2114 = vmatprep.subr.bf16.mxu0 %v1974
      %2115 = vmatpush1.bf16.msra.mxu0 %v1973
      %2116 = vmatprep.subr.bf16.mxu0 %v1982
      %2117 = vmatpush1.bf16.msra.mxu0 %v1981
      %2118 = vmatprep.subr.bf16.mxu0 %v1990
      %2119 = vmatpush1.bf16.msra.mxu0 %v1989
      %2120 = vmatprep.subr.bf16.mxu0 0
      %2121 = vmatpush1.bf16.msra.mxu0 0
      %2122 = vmatprep.subr.bf16.mxu0 0
      %2123 = vmatpush1.bf16.msra.mxu0 0
      %2124 = vmatprep.subr.bf16.mxu0 0
      %2125 = vmatpush1.bf16.msra.mxu0 0
      %2126 = vmatprep.subr.bf16.mxu0 0
      %2127 = vmatpush1.bf16.msra.mxu0 0
      %2128 = vmatprep.subr.bf16.mxu0 0
      %2129 = vmatpush1.bf16.msra.mxu0 0
      %2130 = vmatprep.subr.bf16.mxu0 0
      %2131 = vmatpush1.bf16.msra.mxu0 0
      %2132 = vmatprep.subr.bf16.mxu0 0
      %2133 = vmatpush1.bf16.msra.mxu0 0
      %2134 = vmatprep.subr.bf16.mxu0 0
      %2135 = vmatpush1.bf16.msra.mxu0 0
      %2136 = vmatprep.subr.bf16.mxu0 0
      %2137 = vmatpush1.bf16.msra.mxu0 0
      %2138 = vmatprep.subr.bf16.mxu0 0
      %2139 = vmatpush1.bf16.msra.mxu0 0
      %2140 = vmatprep.subr.bf16.mxu0 0
      %2141 = vmatpush1.bf16.msra.mxu0 0
      %2142 = vmatprep.subr.bf16.mxu0 0
      %2143 = vmatpush1.bf16.msra.mxu0 0
      %2144 = vmatprep.mubr.bf16.mxu0 0
      %2145 = vmatmul.mubr.bf16.gmra.mrb[0].mxu0 %v2069
      %v2146 = vpop.f32.mrb[0].mxu0
      %v2147 = vadd.f32 %v2039, %v2146
      %v2148 = vpop.f32.mrb[0].mxu0
      %v2149 = vadd.f32 %v2043, %v2148
      %v2150 = vpop.f32.mrb[0].mxu0
      %v2151 = vpop.f32.mrb[0].mxu0
      %2152 = vdwg.mxu0
      %2153 = vmatprep.subr.bf16.mxu0 %v1968
      %2154 = vmatpush1.bf16.msra.mxu0 %v1967
      %2155 = vmatprep.subr.bf16.mxu0 %v1976
      %2156 = vmatpush1.bf16.msra.mxu0 %v1975
      %2157 = vmatprep.subr.bf16.mxu0 %v1984
      %2158 = vmatpush1.bf16.msra.mxu0 %v1983
      %2159 = vmatprep.subr.bf16.mxu0 %v1992
      %2160 = vmatpush1.bf16.msra.mxu0 %v1991
      %2161 = vmatprep.subr.bf16.mxu0 0
      %2162 = vmatpush1.bf16.msra.mxu0 0
      %2163 = vmatprep.subr.bf16.mxu0 0
      %2164 = vmatpush1.bf16.msra.mxu0 0
      %2165 = vmatprep.subr.bf16.mxu0 0
      %2166 = vmatpush1.bf16.msra.mxu0 0
      %2167 = vmatprep.subr.bf16.mxu0 0
      %2168 = vmatpush1.bf16.msra.mxu0 0
      %2169 = vmatprep.subr.bf16.mxu0 0
      %2170 = vmatpush1.bf16.msra.mxu0 0
      %2171 = vmatprep.subr.bf16.mxu0 0
      %2172 = vmatpush1.bf16.msra.mxu0 0
      %2173 = vmatprep.subr.bf16.mxu0 0
      %2174 = vmatpush1.bf16.msra.mxu0 0
      %2175 = vmatprep.subr.bf16.mxu0 0
      %2176 = vmatpush1.bf16.msra.mxu0 0
      %2177 = vmatprep.subr.bf16.mxu0 0
      %2178 = vmatpush1.bf16.msra.mxu0 0
      %2179 = vmatprep.subr.bf16.mxu0 0
      %2180 = vmatpush1.bf16.msra.mxu0 0
      %2181 = vmatprep.subr.bf16.mxu0 0
      %2182 = vmatpush1.bf16.msra.mxu0 0
      %2183 = vmatprep.subr.bf16.mxu0 0
      %2184 = vmatpush1.bf16.msra.mxu0 0
      %2185 = vmatprep.mubr.bf16.mxu0 0
      %2186 = vmatmul.mubr.bf16.gmra.mrb[0].mxu0 %v2069
      %v2187 = vpop.f32.mrb[0].mxu0
      %v2188 = vadd.f32 %v2047, %v2187
      %v2189 = vpop.f32.mrb[0].mxu0
      %v2190 = vadd.f32 %v2051, %v2189
      %v2191 = vpop.f32.mrb[0].mxu0
      %v2192 = vpop.f32.mrb[0].mxu0
      %2193 = vdwg.mxu0
      %2194 = vmatprep.subr.bf16.mxu0 %v1970
      %2195 = vmatpush1.bf16.msra.mxu0 %v1969
      %2196 = vmatprep.subr.bf16.mxu0 %v1978
      %2197 = vmatpush1.bf16.msra.mxu0 %v1977
      %2198 = vmatprep.subr.bf16.mxu0 %v1986
      %2199 = vmatpush1.bf16.msra.mxu0 %v1985
      %2200 = vmatprep.subr.bf16.mxu0 %v1994
      %2201 = vmatpush1.bf16.msra.mxu0 %v1993
      %2202 = vmatprep.subr.bf16.mxu0 0
      %2203 = vmatpush1.bf16.msra.mxu0 0
      %2204 = vmatprep.subr.bf16.mxu0 0
      %2205 = vmatpush1.bf16.msra.mxu0 0
      %2206 = vmatprep.subr.bf16.mxu0 0
      %2207 = vmatpush1.bf16.msra.mxu0 0
      %2208 = vmatprep.subr.bf16.mxu0 0
      %2209 = vmatpush1.bf16.msra.mxu0 0
      %2210 = vmatprep.subr.bf16.mxu0 0
      %2211 = vmatpush1.bf16.msra.mxu0 0
      %2212 = vmatprep.subr.bf16.mxu0 0
      %2213 = vmatpush1.bf16.msra.mxu0 0
      %2214 = vmatprep.subr.bf16.mxu0 0
      %2215 = vmatpush1.bf16.msra.mxu0 0
      %2216 = vmatprep.subr.bf16.mxu0 0
      %2217 = vmatpush1.bf16.msra.mxu0 0
      %2218 = vmatprep.subr.bf16.mxu0 0
      %2219 = vmatpush1.bf16.msra.mxu0 0
      %2220 = vmatprep.subr.bf16.mxu0 0
      %2221 = vmatpush1.bf16.msra.mxu0 0
      %2222 = vmatprep.subr.bf16.mxu0 0
      %2223 = vmatpush1.bf16.msra.mxu0 0
      %2224 = vmatprep.subr.bf16.mxu0 0
      %2225 = vmatpush1.bf16.msra.mxu0 0
      %2226 = vmatprep.mubr.bf16.mxu0 0
      %2227 = vmatmul.mubr.bf16.gmra.mrb[0].mxu0 %v2069
      %v2228 = vpop.f32.mrb[0].mxu0
      %v2229 = vadd.f32 %v2055, %v2228
      %v2230 = vpop.f32.mrb[0].mxu0
      %v2231 = vadd.f32 %v2059, %v2230
      %v2232 = vpop.f32.mrb[0].mxu0
      %v2233 = vpop.f32.mrb[0].mxu0
      %2234 = vdwg.mxu0
      %v2235 = vmax.f32 %v2106, 0.0
      %v2236 = vmax.f32 %v2108, 0.0
      %v2237 = vmax.f32 %v2147, 0.0
      %v2238 = vmax.f32 %v2149, 0.0
      %v2239 = vmax.f32 %v2188, 0.0
      %v2240 = vmax.f32 %v2190, 0.0
      %v2241 = vmax.f32 %v2229, 0.0
      %v2242 = vmax.f32 %v2231, 0.0
      %v2243 = vpack.c.bf16 %v2235, %v2235
      %v2244 = vpack.c.bf16 %v2236, %v2236
      %v2245 = vpack.c.bf16 %v2237, %v2237
      %v2246 = vpack.c.bf16 %v2238, %v2238
      %v2247 = vld [vmem:[%s9] sm:$0xf]
      %v2248 = vld [vmem:[%s9 + $0x4] sm:$0xf]
      %v2249 = vld [vmem:[%s9 + $0x8] sm:$0xf]
      %v2250 = vld [vmem:[%s9 + $0xc] sm:$0xf]
      %v2251 = vld [vmem:[%s9 + $0x10] sm:$0xf]
      %v2252 = vld [vmem:[%s9 + $0x14] sm:$0xf]
      %v2253 = vld [vmem:[%s9 + $0x18] sm:$0xf]
      %v2254 = vld [vmem:[%s9 + $0x1c] sm:$0xf]
      %v2255 = vld [vmem:[%s9 + $0x20] sm:$0xf]
      %v2256 = vld [vmem:[%s9 + $0x24] sm:$0xf]
      %v2257 = vld [vmem:[%s9 + $0x28] sm:$0xf]
      %v2258 = vld [vmem:[%s9 + $0x2c] sm:$0xf]
      %v2259 = vld [vmem:[%s9 + $0x30] sm:$0xf]
      %v2260 = vld [vmem:[%s9 + $0x34] sm:$0xf]
      %v2261 = vld [vmem:[%s9 + $0x38] sm:$0xf]
      %v2262 = vld [vmem:[%s9 + $0x3c] sm:$0xf]
      %v2263 = vld [vmem:[%s9 + $0x40] sm:$0xf]
      %v2264 = vld [vmem:[%s9 + $0x44] sm:$0xf]
      %v2265 = vld [vmem:[%s9 + $0x48] sm:$0xf]
      %v2266 = vld [vmem:[%s9 + $0x4c] sm:$0xf]
      %v2267 = vld [vmem:[%s9 + $0x50] sm:$0xf]
      %v2268 = vld [vmem:[%s9 + $0x54] sm:$0xf]
      %v2269 = vld [vmem:[%s9 + $0x58] sm:$0xf]
      %v2270 = vld [vmem:[%s9 + $0x5c] sm:$0xf]
      %v2271 = vld [vmem:[%s9 + $0x60] sm:$0xf]
      %v2272 = vld [vmem:[%s9 + $0x64] sm:$0xf]
      %v2273 = vld [vmem:[%s9 + $0x68] sm:$0xf]
      %v2274 = vld [vmem:[%s9 + $0x6c] sm:$0xf]
      %v2275 = vld [vmem:[%s9 + $0x70] sm:$0xf]
      %v2276 = vld [vmem:[%s9 + $0x74] sm:$0xf]
      %v2277 = vld [vmem:[%s9 + $0x78] sm:$0xf]
      %v2278 = vld [vmem:[%s9 + $0x7c] sm:$0xf]
      %v2279 = vld [vmem:[%s9 + $0x80] sm:$0xf]
      %v2280 = vld [vmem:[%s9 + $0x84] sm:$0xf]
      %v2281 = vld [vmem:[%s9 + $0x88] sm:$0xf]
      %v2282 = vld [vmem:[%s9 + $0x8c] sm:$0xf]
      %v2283 = vld [vmem:[%s9 + $0x90] sm:$0xf]
      %v2284 = vld [vmem:[%s9 + $0x94] sm:$0xf]
      %v2285 = vld [vmem:[%s9 + $0x98] sm:$0xf]
      %v2286 = vld [vmem:[%s9 + $0x9c] sm:$0xf]
      %v2287 = vld [vmem:[%s9 + $0xa0] sm:$0xf]
      %v2288 = vld [vmem:[%s9 + $0xa4] sm:$0xf]
      %v2289 = vld [vmem:[%s9 + $0xa8] sm:$0xf]
      %v2290 = vld [vmem:[%s9 + $0xac] sm:$0xf]
      %v2291 = vld [vmem:[%s9 + $0xb0] sm:$0xf]
      %v2292 = vld [vmem:[%s9 + $0xb4] sm:$0xf]
      %v2293 = vld [vmem:[%s9 + $0xb8] sm:$0xf]
      %v2294 = vld [vmem:[%s9 + $0xbc] sm:$0xf]
      %v2295 = vld [vmem:[%s9 + $0xc0] sm:$0xf]
      %v2296 = vld [vmem:[%s9 + $0xc4] sm:$0xf]
      %v2297 = vld [vmem:[%s9 + $0xc8] sm:$0xf]
      %v2298 = vld [vmem:[%s9 + $0xcc] sm:$0xf]
      %v2299 = vld [vmem:[%s9 + $0xd0] sm:$0xf]
      %v2300 = vld [vmem:[%s9 + $0xd4] sm:$0xf]
      %v2301 = vld [vmem:[%s9 + $0xd8] sm:$0xf]
      %v2302 = vld [vmem:[%s9 + $0xdc] sm:$0xf]
      %v2303 = vld [vmem:[%s9 + $0xe0] sm:$0xf]
      %v2304 = vld [vmem:[%s9 + $0xe4] sm:$0xf]
      %v2305 = vld [vmem:[%s9 + $0xe8] sm:$0xf]
      %v2306 = vld [vmem:[%s9 + $0xec] sm:$0xf]
      %v2307 = vld [vmem:[%s9 + $0xf0] sm:$0xf]
      %v2308 = vld [vmem:[%s9 + $0xf4] sm:$0xf]
      %v2309 = vld [vmem:[%s9 + $0xf8] sm:$0xf]
      %v2310 = vld [vmem:[%s9 + $0xfc] sm:$0xf]
      %v2311 = vld [vmem:[%s10] sm:$0x1]
      %v2376 = vunpack.c.l.b16 %v2247
      %v2377 = vunpack.c.l.b16 %v2248
      %v2378 = vunpack.c.l.b16 %v2249
      %v2379 = vunpack.c.l.b16 %v2250
      %v2380 = vunpack.c.l.b16 %v2251
      %v2381 = vunpack.c.l.b16 %v2252
      %v2382 = vunpack.c.l.b16 %v2253
      %v2383 = vunpack.c.l.b16 %v2254
      %v2384 = vunpack.c.l.b16 %v2255
      %v2385 = vunpack.c.l.b16 %v2256
      %v2386 = vunpack.c.l.b16 %v2257
      %v2387 = vunpack.c.l.b16 %v2258
      %v2388 = vunpack.c.l.b16 %v2259
      %v2389 = vunpack.c.l.b16 %v2260
      %v2390 = vunpack.c.l.b16 %v2261
      %v2391 = vunpack.c.l.b16 %v2262
      %v2392 = vunpack.c.l.b16 %v2263
      %v2393 = vunpack.c.l.b16 %v2264
      %v2394 = vunpack.c.l.b16 %v2265
      %v2395 = vunpack.c.l.b16 %v2266
      %v2396 = vunpack.c.l.b16 %v2267
      %v2397 = vunpack.c.l.b16 %v2268
      %v2398 = vunpack.c.l.b16 %v2269
      %v2399 = vunpack.c.l.b16 %v2270
      %v2400 = vunpack.c.l.b16 %v2271
      %v2401 = vunpack.c.l.b16 %v2272
      %v2402 = vunpack.c.l.b16 %v2273
      %v2403 = vunpack.c.l.b16 %v2274
      %v2404 = vunpack.c.l.b16 %v2275
      %v2405 = vunpack.c.l.b16 %v2276
      %v2406 = vunpack.c.l.b16 %v2277
      %v2407 = vunpack.c.l.b16 %v2278
      %v2408 = vunpack.c.l.b16 %v2279
      %v2409 = vunpack.c.l.b16 %v2280
      %v2410 = vunpack.c.l.b16 %v2281
      %v2411 = vunpack.c.l.b16 %v2282
      %v2412 = vunpack.c.l.b16 %v2283
      %v2413 = vunpack.c.l.b16 %v2284
      %v2414 = vunpack.c.l.b16 %v2285
      %v2415 = vunpack.c.l.b16 %v2286
      %v2416 = vunpack.c.l.b16 %v2287
      %v2417 = vunpack.c.l.b16 %v2288
      %v2418 = vunpack.c.l.b16 %v2289
      %v2419 = vunpack.c.l.b16 %v2290
      %v2420 = vunpack.c.l.b16 %v2291
      %v2421 = vunpack.c.l.b16 %v2292
      %v2422 = vunpack.c.l.b16 %v2293
      %v2423 = vunpack.c.l.b16 %v2294
      %v2424 = vunpack.c.l.b16 %v2295
      %v2425 = vunpack.c.l.b16 %v2296
      %v2426 = vunpack.c.l.b16 %v2297
      %v2427 = vunpack.c.l.b16 %v2298
      %v2428 = vunpack.c.l.b16 %v2299
      %v2429 = vunpack.c.l.b16 %v2300
      %v2430 = vunpack.c.l.b16 %v2301
      %v2431 = vunpack.c.l.b16 %v2302
      %v2432 = vunpack.c.l.b16 %v2303
      %v2433 = vunpack.c.l.b16 %v2304
      %v2434 = vunpack.c.l.b16 %v2305
      %v2435 = vunpack.c.l.b16 %v2306
      %v2436 = vunpack.c.l.b16 %v2307
      %v2437 = vunpack.c.l.b16 %v2308
      %v2438 = vunpack.c.l.b16 %v2309
      %v2439 = vunpack.c.l.b16 %v2310
      %v2440 = vpack.c.b16 %v2377, %v2376
      %v2441 = vpack.c.b16 %v2379, %v2378
      %v2442 = vpack.c.b16 %v2381, %v2380
      %v2443 = vpack.c.b16 %v2383, %v2382
      %v2444 = vpack.c.b16 %v2385, %v2384
      %v2445 = vpack.c.b16 %v2387, %v2386
      %v2446 = vpack.c.b16 %v2389, %v2388
      %v2447 = vpack.c.b16 %v2391, %v2390
      %v2448 = vpack.c.b16 %v2393, %v2392
      %v2449 = vpack.c.b16 %v2395, %v2394
      %v2450 = vpack.c.b16 %v2397, %v2396
      %v2451 = vpack.c.b16 %v2399, %v2398
      %v2452 = vpack.c.b16 %v2401, %v2400
      %v2453 = vpack.c.b16 %v2403, %v2402
      %v2454 = vpack.c.b16 %v2405, %v2404
      %v2455 = vpack.c.b16 %v2407, %v2406
      %v2456 = vpack.c.b16 %v2409, %v2408
      %v2457 = vpack.c.b16 %v2411, %v2410
      %v2458 = vpack.c.b16 %v2413, %v2412
      %v2459 = vpack.c.b16 %v2415, %v2414
      %v2460 = vpack.c.b16 %v2417, %v2416
      %v2461 = vpack.c.b16 %v2419, %v2418
      %v2462 = vpack.c.b16 %v2421, %v2420
      %v2463 = vpack.c.b16 %v2423, %v2422
      %v2464 = vpack.c.b16 %v2425, %v2424
      %v2465 = vpack.c.b16 %v2427, %v2426
      %v2466 = vpack.c.b16 %v2429, %v2428
      %v2467 = vpack.c.b16 %v2431, %v2430
      %v2468 = vpack.c.b16 %v2433, %v2432
      %v2469 = vpack.c.b16 %v2435, %v2434
      %v2470 = vpack.c.b16 %v2437, %v2436
      %v2471 = vpack.c.b16 %v2439, %v2438
      %2504 = vmatprep.subr.bf16.mxu0 0
      %2505 = vmatpush1.bf16.msra.mxu0 %v2440
      %2506 = vmatprep.subr.bf16.mxu0 0
      %2507 = vmatpush1.bf16.msra.mxu0 %v2441
      %2508 = vmatprep.subr.bf16.mxu0 0
      %2509 = vmatpush1.bf16.msra.mxu0 %v2442
      %2510 = vmatprep.subr.bf16.mxu0 0
      %2511 = vmatpush1.bf16.msra.mxu0 %v2443
      %2512 = vmatprep.subr.bf16.mxu0 0
      %2513 = vmatpush1.bf16.msra.mxu0 %v2444
      %2514 = vmatprep.subr.bf16.mxu0 0
      %2515 = vmatpush1.bf16.msra.mxu0 %v2445
      %2516 = vmatprep.subr.bf16.mxu0 0
      %2517 = vmatpush1.bf16.msra.mxu0 %v2446
      %2518 = vmatprep.subr.bf16.mxu0 0
      %2519 = vmatpush1.bf16.msra.mxu0 %v2447
      %2520 = vmatprep.subr.bf16.mxu0 0
      %2521 = vmatpush1.bf16.msra.mxu0 %v2448
      %2522 = vmatprep.subr.bf16.mxu0 0
      %2523 = vmatpush1.bf16.msra.mxu0 %v2449
      %2524 = vmatprep.subr.bf16.mxu0 0
      %2525 = vmatpush1.bf16.msra.mxu0 %v2450
      %2526 = vmatprep.subr.bf16.mxu0 0
      %2527 = vmatpush1.bf16.msra.mxu0 %v2451
      %2528 = vmatprep.subr.bf16.mxu0 0
      %2529 = vmatpush1.bf16.msra.mxu0 %v2452
      %2530 = vmatprep.subr.bf16.mxu0 0
      %2531 = vmatpush1.bf16.msra.mxu0 %v2453
      %2532 = vmatprep.subr.bf16.mxu0 0
      %2533 = vmatpush1.bf16.msra.mxu0 %v2454
      %2534 = vmatprep.subr.bf16.mxu0 0
      %2535 = vmatpush1.bf16.msra.mxu0 %v2455
      %2536 = vmatprep.mubr.bf16.mxu0 %v2244
      %2537 = vmatmul.mubr.bf16.gmra.mrb[0].mxu0 %v2243
      %v2538 = vpop.f32.mrb[0].mxu0
      %v2539 = vadd.f32 %v2311, %v2538
      %v2540 = vpop.f32.mrb[0].mxu0
      %v2541 = vpop.f32.mrb[0].mxu0
      %v2542 = vpop.f32.mrb[0].mxu0
      %2543 = vdwg.mxu0
      %2544 = vmatprep.subr.bf16.mxu0 0
      %2545 = vmatpush1.bf16.msra.mxu0 %v2456
      %2546 = vmatprep.subr.bf16.mxu0 0
      %2547 = vmatpush1.bf16.msra.mxu0 %v2457
      %2548 = vmatprep.subr.bf16.mxu0 0
      %2549 = vmatpush1.bf16.msra.mxu0 %v2458
      %2550 = vmatprep.subr.bf16.mxu0 0
      %2551 = vmatpush1.bf16.msra.mxu0 %v2459
      %2552 = vmatprep.subr.bf16.mxu0 0
      %2553 = vmatpush1.bf16.msra.mxu0 %v2460
      %2554 = vmatprep.subr.bf16.mxu0 0
      %2555 = vmatpush1.bf16.msra.mxu0 %v2461
      %2556 = vmatprep.subr.bf16.mxu0 0
      %2557 = vmatpush1.bf16.msra.mxu0 %v2462
      %2558 = vmatprep.subr.bf16.mxu0 0
      %2559 = vmatpush1.bf16.msra.mxu0 %v2463
      %2560 = vmatprep.subr.bf16.mxu0 0
      %2561 = vmatpush1.bf16.msra.mxu0 %v2464
      %2562 = vmatprep.subr.bf16.mxu0 0
      %2563 = vmatpush1.bf16.msra.mxu0 %v2465
      %2564 = vmatprep.subr.bf16.mxu0 0
      %2565 = vmatpush1.bf16.msra.mxu0 %v2466
      %2566 = vmatprep.subr.bf16.mxu0 0
      %2567 = vmatpush1.bf16.msra.mxu0 %v2467
      %2568 = vmatprep.subr.bf16.mxu0 0
      %2569 = vmatpush1.bf16.msra.mxu0 %v2468
      %2570 = vmatprep.subr.bf16.mxu0 0
      %2571 = vmatpush1.bf16.msra.mxu0 %v2469
      %2572 = vmatprep.subr.bf16.mxu0 0
      %2573 = vmatpush1.bf16.msra.mxu0 %v2470
      %2574 = vmatprep.subr.bf16.mxu0 0
      %2575 = vmatpush1.bf16.msra.mxu0 %v2471
      %2576 = vmatprep.mubr.bf16.mxu0 %v2246
      %2577 = vmatmul.mubr.bf16.gmra.mrb[0].mxu0 %v2245
      %v2578 = vpop.f32.mrb[0].mxu0
      %v2579 = vadd.f32 %v2539, %v2578
      %v2580 = vpop.f32.mrb[0].mxu0
      %v2581 = vpop.f32.mrb[0].mxu0
      %v2582 = vpop.f32.mrb[0].mxu0
      %2583 = vdwg.mxu0
      %v2584 = vpack.c.bf16 %v2239, %v2239
      %v2585 = vpack.c.bf16 %v2240, %v2240
      %v2586 = vpack.c.bf16 %v2241, %v2241
      %v2587 = vpack.c.bf16 %v2242, %v2242
      %v2588 = vld [vmem:[%s11] sm:$0xff]
      %v2589 = vld [vmem:[%s11 + $0x8] sm:$0xff]
      %v2590 = vld [vmem:[%s11 + $0x10] sm:$0xff]
      %v2591 = vld [vmem:[%s11 + $0x18] sm:$0xff]
      %v2592 = vld [vmem:[%s11 + $0x20] sm:$0xff]
      %v2593 = vld [vmem:[%s11 + $0x28] sm:$0xff]
      %v2594 = vld [vmem:[%s11 + $0x30] sm:$0xff]
      %v2595 = vld [vmem:[%s11 + $0x38] sm:$0xff]
      %v2596 = vld [vmem:[%s11 + $0x40] sm:$0xff]
      %v2597 = vld [vmem:[%s11 + $0x48] sm:$0xff]
      %v2598 = vld [vmem:[%s11 + $0x50] sm:$0xff]
      %v2599 = vld [vmem:[%s11 + $0x58] sm:$0xff]
      %v2600 = vld [vmem:[%s11 + $0x60] sm:$0xff]
      %v2601 = vld [vmem:[%s11 + $0x68] sm:$0xff]
      %v2602 = vld [vmem:[%s11 + $0x70] sm:$0xff]
      %v2603 = vld [vmem:[%s11 + $0x78] sm:$0xff]
      %v2604 = vld [vmem:[%s11 + $0x80] sm:$0xff]
      %v2605 = vld [vmem:[%s11 + $0x88] sm:$0xff]
      %v2606 = vld [vmem:[%s11 + $0x90] sm:$0xff]
      %v2607 = vld [vmem:[%s11 + $0x98] sm:$0xff]
      %v2608 = vld [vmem:[%s11 + $0xa0] sm:$0xff]
      %v2609 = vld [vmem:[%s11 + $0xa8] sm:$0xff]
      %v2610 = vld [vmem:[%s11 + $0xb0] sm:$0xff]
      %v2611 = vld [vmem:[%s11 + $0xb8] sm:$0xff]
      %v2612 = vld [vmem:[%s11 + $0xc0] sm:$0xff]
      %v2613 = vld [vmem:[%s11 + $0xc8] sm:$0xff]
      %v2614 = vld [vmem:[%s11 + $0xd0] sm:$0xff]
      %v2615 = vld [vmem:[%s11 + $0xd8] sm:$0xff]
      %v2616 = vld [vmem:[%s11 + $0xe0] sm:$0xff]
      %v2617 = vld [vmem:[%s11 + $0xe8] sm:$0xff]
      %v2618 = vld [vmem:[%s11 + $0xf0] sm:$0xff]
      %v2619 = vld [vmem:[%s11 + $0xf8] sm:$0xff]
      %v2620 = vld [vmem:[%s11 + $0x100] sm:$0xff]
      %v2621 = vld [vmem:[%s11 + $0x108] sm:$0xff]
      %v2622 = vld [vmem:[%s11 + $0x110] sm:$0xff]
      %v2623 = vld [vmem:[%s11 + $0x118] sm:$0xff]
      %v2624 = vld [vmem:[%s11 + $0x120] sm:$0xff]
      %v2625 = vld [vmem:[%s11 + $0x128] sm:$0xff]
      %v2626 = vld [vmem:[%s11 + $0x130] sm:$0xff]
      %v2627 = vld [vmem:[%s11 + $0x138] sm:$0xff]
      %v2628 = vld [vmem:[%s11 + $0x140] sm:$0xff]
      %v2629 = vld [vmem:[%s11 + $0x148] sm:$0xff]
      %v2630 = vld [vmem:[%s11 + $0x150] sm:$0xff]
      %v2631 = vld [vmem:[%s11 + $0x158] sm:$0xff]
      %v2632 = vld [vmem:[%s11 + $0x160] sm:$0xff]
      %v2633 = vld [vmem:[%s11 + $0x168] sm:$0xff]
      %v2634 = vld [vmem:[%s11 + $0x170] sm:$0xff]
      %v2635 = vld [vmem:[%s11 + $0x178] sm:$0xff]
      %v2636 = vld [vmem:[%s11 + $0x180] sm:$0xff]
      %v2637 = vld [vmem:[%s11 + $0x188] sm:$0xff]
      %v2638 = vld [vmem:[%s11 + $0x190] sm:$0xff]
      %v2639 = vld [vmem:[%s11 + $0x198] sm:$0xff]
      %v2640 = vld [vmem:[%s11 + $0x1a0] sm:$0xff]
      %v2641 = vld [vmem:[%s11 + $0x1a8] sm:$0xff]
      %v2642 = vld [vmem:[%s11 + $0x1b0] sm:$0xff]
      %v2643 = vld [vmem:[%s11 + $0x1b8] sm:$0xff]
      %v2644 = vld [vmem:[%s11 + $0x1c0] sm:$0xff]
      %v2645 = vld [vmem:[%s11 + $0x1c8] sm:$0xff]
      %v2646 = vld [vmem:[%s11 + $0x1d0] sm:$0xff]
      %v2647 = vld [vmem:[%s11 + $0x1d8] sm:$0xff]
      %v2648 = vld [vmem:[%s11 + $0x1e0] sm:$0xff]
      %v2649 = vld [vmem:[%s11 + $0x1e8] sm:$0xff]
      %v2650 = vld [vmem:[%s11 + $0x1f0] sm:$0xff]
      %v2651 = vld [vmem:[%s11 + $0x1f8] sm:$0xff]
      %v2652 = vld [vmem:[%s12] sm:$0x3]
      %v2717 = vunpack.c.l.b16 %v2588
      %v2718 = vunpack.c.h.b16 %v2588
      %v2719 = vunpack.c.l.b16 %v2589
      %v2720 = vunpack.c.h.b16 %v2589
      %v2721 = vunpack.c.l.b16 %v2590
      %v2722 = vunpack.c.h.b16 %v2590
      %v2723 = vunpack.c.l.b16 %v2591
      %v2724 = vunpack.c.h.b16 %v2591
      %v2725 = vunpack.c.l.b16 %v2592
      %v2726 = vunpack.c.h.b16 %v2592
      %v2727 = vunpack.c.l.b16 %v2593
      %v2728 = vunpack.c.h.b16 %v2593
      %v2729 = vunpack.c.l.b16 %v2594
      %v2730 = vunpack.c.h.b16 %v2594
      %v2731 = vunpack.c.l.b16 %v2595
      %v2732 = vunpack.c.h.b16 %v2595
      %v2733 = vunpack.c.l.b16 %v2596
      %v2734 = vunpack.c.h.b16 %v2596
      %v2735 = vunpack.c.l.b16 %v2597
      %v2736 = vunpack.c.h.b16 %v2597
      %v2737 = vunpack.c.l.b16 %v2598
      %v2738 = vunpack.c.h.b16 %v2598
      %v2739 = vunpack.c.l.b16 %v2599
      %v2740 = vunpack.c.h.b16 %v2599
      %v2741 = vunpack.c.l.b16 %v2600
      %v2742 = vunpack.c.h.b16 %v2600
      %v2743 = vunpack.c.l.b16 %v2601
      %v2744 = vunpack.c.h.b16 %v2601
      %v2745 = vunpack.c.l.b16 %v2602
      %v2746 = vunpack.c.h.b16 %v2602
      %v2747 = vunpack.c.l.b16 %v2603
      %v2748 = vunpack.c.h.b16 %v2603
      %v2749 = vunpack.c.l.b16 %v2604
      %v2750 = vunpack.c.h.b16 %v2604
      %v2751 = vunpack.c.l.b16 %v2605
      %v2752 = vunpack.c.h.b16 %v2605
      %v2753 = vunpack.c.l.b16 %v2606
      %v2754 = vunpack.c.h.b16 %v2606
      %v2755 = vunpack.c.l.b16 %v2607
      %v2756 = vunpack.c.h.b16 %v2607
      %v2757 = vunpack.c.l.b16 %v2608
      %v2758 = vunpack.c.h.b16 %v2608
      %v2759 = vunpack.c.l.b16 %v2609
      %v2760 = vunpack.c.h.b16 %v2609
      %v2761 = vunpack.c.l.b16 %v2610
      %v2762 = vunpack.c.h.b16 %v2610
      %v2763 = vunpack.c.l.b16 %v2611
      %v2764 = vunpack.c.h.b16 %v2611
      %v2765 = vunpack.c.l.b16 %v2612
      %v2766 = vunpack.c.h.b16 %v2612
      %v2767 = vunpack.c.l.b16 %v2613
      %v2768 = vunpack.c.h.b16 %v2613
      %v2769 = vunpack.c.l.b16 %v2614
      %v2770 = vunpack.c.h.b16 %v2614
      %v2771 = vunpack.c.l.b16 %v2615
      %v2772 = vunpack.c.h.b16 %v2615
      %v2773 = vunpack.c.l.b16 %v2616
      %v2774 = vunpack.c.h.b16 %v2616
      %v2775 = vunpack.c.l.b16 %v2617
      %v2776 = vunpack.c.h.b16 %v2617
      %v2777 = vunpack.c.l.b16 %v2618
      %v2778 = vunpack.c.h.b16 %v2618
      %v2779 = vunpack.c.l.b16 %v2619
      %v2780 = vunpack.c.h.b16 %v2619
      %v2781 = vunpack.c.l.b16 %v2620
      %v2782 = vunpack.c.h.b16 %v2620
      %v2783 = vunpack.c.l.b16 %v2621
      %v2784 = vunpack.c.h.b16 %v2621
      %v2785 = vunpack.c.l.b16 %v2622
      %v2786 = vunpack.c.h.b16 %v2622
      %v2787 = vunpack.c.l.b16 %v2623
      %v2788 = vunpack.c.h.b16 %v2623
      %v2789 = vunpack.c.l.b16 %v2624
      %v2790 = vunpack.c.h.b16 %v2624
      %v2791 = vunpack.c.l.b16 %v2625
      %v2792 = vunpack.c.h.b16 %v2625
      %v2793 = vunpack.c.l.b16 %v2626
      %v2794 = vunpack.c.h.b16 %v2626
      %v2795 = vunpack.c.l.b16 %v2627
      %v2796 = vunpack.c.h.b16 %v2627
      %v2797 = vunpack.c.l.b16 %v2628
      %v2798 = vunpack.c.h.b16 %v2628
      %v2799 = vunpack.c.l.b16 %v2629
      %v2800 = vunpack.c.h.b16 %v2629
      %v2801 = vunpack.c.l.b16 %v2630
      %v2802 = vunpack.c.h.b16 %v2630
      %v2803 = vunpack.c.l.b16 %v2631
      %v2804 = vunpack.c.h.b16 %v2631
      %v2805 = vunpack.c.l.b16 %v2632
      %v2806 = vunpack.c.h.b16 %v2632
      %v2807 = vunpack.c.l.b16 %v2633
      %v2808 = vunpack.c.h.b16 %v2633
      %v2809 = vunpack.c.l.b16 %v2634
      %v2810 = vunpack.c.h.b16 %v2634
      %v2811 = vunpack.c.l.b16 %v2635
      %v2812 = vunpack.c.h.b16 %v2635
      %v2813 = vunpack.c.l.b16 %v2636
      %v2814 = vunpack.c.h.b16 %v2636
      %v2815 = vunpack.c.l.b16 %v2637
      %v2816 = vunpack.c.h.b16 %v2637
      %v2817 = vunpack.c.l.b16 %v2638
      %v2818 = vunpack.c.h.b16 %v2638
      %v2819 = vunpack.c.l.b16 %v2639
      %v2820 = vunpack.c.h.b16 %v2639
      %v2821 = vunpack.c.l.b16 %v2640
      %v2822 = vunpack.c.h.b16 %v2640
      %v2823 = vunpack.c.l.b16 %v2641
      %v2824 = vunpack.c.h.b16 %v2641
      %v2825 = vunpack.c.l.b16 %v2642
      %v2826 = vunpack.c.h.b16 %v2642
      %v2827 = vunpack.c.l.b16 %v2643
      %v2828 = vunpack.c.h.b16 %v2643
      %v2829 = vunpack.c.l.b16 %v2644
      %v2830 = vunpack.c.h.b16 %v2644
      %v2831 = vunpack.c.l.b16 %v2645
      %v2832 = vunpack.c.h.b16 %v2645
      %v2833 = vunpack.c.l.b16 %v2646
      %v2834 = vunpack.c.h.b16 %v2646
      %v2835 = vunpack.c.l.b16 %v2647
      %v2836 = vunpack.c.h.b16 %v2647
      %v2837 = vunpack.c.l.b16 %v2648
      %v2838 = vunpack.c.h.b16 %v2648
      %v2839 = vunpack.c.l.b16 %v2649
      %v2840 = vunpack.c.h.b16 %v2649
      %v2841 = vunpack.c.l.b16 %v2650
      %v2842 = vunpack.c.h.b16 %v2650
      %v2843 = vunpack.c.l.b16 %v2651
      %v2844 = vunpack.c.h.b16 %v2651
      %v2845 = vpack.c.b16 %v2719, %v2717
      %v2846 = vpack.c.b16 %v2720, %v2718
      %v2847 = vpack.c.b16 %v2723, %v2721
      %v2848 = vpack.c.b16 %v2724, %v2722
      %v2849 = vpack.c.b16 %v2727, %v2725
      %v2850 = vpack.c.b16 %v2728, %v2726
      %v2851 = vpack.c.b16 %v2731, %v2729
      %v2852 = vpack.c.b16 %v2732, %v2730
      %v2853 = vpack.c.b16 %v2735, %v2733
      %v2854 = vpack.c.b16 %v2736, %v2734
      %v2855 = vpack.c.b16 %v2739, %v2737
      %v2856 = vpack.c.b16 %v2740, %v2738
      %v2857 = vpack.c.b16 %v2743, %v2741
      %v2858 = vpack.c.b16 %v2744, %v2742
      %v2859 = vpack.c.b16 %v2747, %v2745
      %v2860 = vpack.c.b16 %v2748, %v2746
      %v2861 = vpack.c.b16 %v2751, %v2749
      %v2862 = vpack.c.b16 %v2752, %v2750
      %v2863 = vpack.c.b16 %v2755, %v2753
      %v2864 = vpack.c.b16 %v2756, %v2754
      %v2865 = vpack.c.b16 %v2759, %v2757
      %v2866 = vpack.c.b16 %v2760, %v2758
      %v2867 = vpack.c.b16 %v2763, %v2761
      %v2868 = vpack.c.b16 %v2764, %v2762
      %v2869 = vpack.c.b16 %v2767, %v2765
      %v2870 = vpack.c.b16 %v2768, %v2766
      %v2871 = vpack.c.b16 %v2771, %v2769
      %v2872 = vpack.c.b16 %v2772, %v2770
      %v2873 = vpack.c.b16 %v2775, %v2773
      %v2874 = vpack.c.b16 %v2776, %v2774
      %v2875 = vpack.c.b16 %v2779, %v2777
      %v2876 = vpack.c.b16 %v2780, %v2778
      %v2877 = vpack.c.b16 %v2783, %v2781
      %v2878 = vpack.c.b16 %v2784, %v2782
      %v2879 = vpack.c.b16 %v2787, %v2785
      %v2880 = vpack.c.b16 %v2788, %v2786
      %v2881 = vpack.c.b16 %v2791, %v2789
      %v2882 = vpack.c.b16 %v2792, %v2790
      %v2883 = vpack.c.b16 %v2795, %v2793
      %v2884 = vpack.c.b16 %v2796, %v2794
      %v2885 = vpack.c.b16 %v2799, %v2797
      %v2886 = vpack.c.b16 %v2800, %v2798
      %v2887 = vpack.c.b16 %v2803, %v2801
      %v2888 = vpack.c.b16 %v2804, %v2802
      %v2889 = vpack.c.b16 %v2807, %v2805
      %v2890 = vpack.c.b16 %v2808, %v2806
      %v2891 = vpack.c.b16 %v2811, %v2809
      %v2892 = vpack.c.b16 %v2812, %v2810
      %v2893 = vpack.c.b16 %v2815, %v2813
      %v2894 = vpack.c.b16 %v2816, %v2814
      %v2895 = vpack.c.b16 %v2819, %v2817
      %v2896 = vpack.c.b16 %v2820, %v2818
      %v2897 = vpack.c.b16 %v2823, %v2821
      %v2898 = vpack.c.b16 %v2824, %v2822
      %v2899 = vpack.c.b16 %v2827, %v2825
      %v2900 = vpack.c.b16 %v2828, %v2826
      %v2901 = vpack.c.b16 %v2831, %v2829
      %v2902 = vpack.c.b16 %v2832, %v2830
      %v2903 = vpack.c.b16 %v2835, %v2833
      %v2904 = vpack.c.b16 %v2836, %v2834
      %v2905 = vpack.c.b16 %v2839, %v2837
      %v2906 = vpack.c.b16 %v2840, %v2838
      %v2907 = vpack.c.b16 %v2843, %v2841
      %v2908 = vpack.c.b16 %v2844, %v2842
      %v2974 = vlaneseq
      %v2975 = vshrl.u32 %v2974, 7
      %v2976 = vsub.s32 0, %v2975
      %v2977 = vrot.slane %v2652, %v2976
      %v2978 = vlaneseq
      %v2979 = vshrl.u32 %v2978, 7
      %v2980 = vsub.s32 1, %v2979
      %v2981 = vrot.slane %v2652, %v2980
      %2984 = vmatprep.subr.bf16.mxu0 %v2846
      %2985 = vmatpush1.bf16.msra.mxu0 %v2845
      %2986 = vmatprep.subr.bf16.mxu0 %v2848
      %2987 = vmatpush1.bf16.msra.mxu0 %v2847
      %2988 = vmatprep.subr.bf16.mxu0 %v2850
      %2989 = vmatpush1.bf16.msra.mxu0 %v2849
      %2990 = vmatprep.subr.bf16.mxu0 %v2852
      %2991 = vmatpush1.bf16.msra.mxu0 %v2851
      %2992 = vmatprep.subr.bf16.mxu0 %v2854
      %2993 = vmatpush1.bf16.msra.mxu0 %v2853
      %2994 = vmatprep.subr.bf16.mxu0 %v2856
      %2995 = vmatpush1.bf16.msra.mxu0 %v2855
      %2996 = vmatprep.subr.bf16.mxu0 %v2858
      %2997 = vmatpush1.bf16.msra.mxu0 %v2857
      %2998 = vmatprep.subr.bf16.mxu0 %v2860
      %2999 = vmatpush1.bf16.msra.mxu0 %v2859
      %3000 = vmatprep.subr.bf16.mxu0 %v2862
      %3001 = vmatpush1.bf16.msra.mxu0 %v2861
      %3002 = vmatprep.subr.bf16.mxu0 %v2864
      %3003 = vmatpush1.bf16.msra.mxu0 %v2863
      %3004 = vmatprep.subr.bf16.mxu0 %v2866
      %3005 = vmatpush1.bf16.msra.mxu0 %v2865
      %3006 = vmatprep.subr.bf16.mxu0 %v2868
      %3007 = vmatpush1.bf16.msra.mxu0 %v2867
      %3008 = vmatprep.subr.bf16.mxu0 %v2870
      %3009 = vmatpush1.bf16.msra.mxu0 %v2869
      %3010 = vmatprep.subr.bf16.mxu0 %v2872
      %3011 = vmatpush1.bf16.msra.mxu0 %v2871
      %3012 = vmatprep.subr.bf16.mxu0 %v2874
      %3013 = vmatpush1.bf16.msra.mxu0 %v2873
      %3014 = vmatprep.subr.bf16.mxu0 %v2876
      %3015 = vmatpush1.bf16.msra.mxu0 %v2875
      %3016 = vmatprep.mubr.bf16.mxu0 %v2585
      %3017 = vmatmul.mubr.bf16.gmra.mrb[0].mxu0 %v2584
      %v3018 = vpop.f32.mrb[0].mxu0
      %v3019 = vadd.f32 %v2977, %v3018
      %v3020 = vpop.f32.mrb[0].mxu0
      %v3021 = vadd.f32 %v2981, %v3020
      %v3022 = vpop.f32.mrb[0].mxu0
      %v3023 = vpop.f32.mrb[0].mxu0
      %3024 = vdwg.mxu0
      %3025 = vmatprep.subr.bf16.mxu0 %v2878
      %3026 = vmatpush1.bf16.msra.mxu0 %v2877
      %3027 = vmatprep.subr.bf16.mxu0 %v2880
      %3028 = vmatpush1.bf16.msra.mxu0 %v2879
      %3029 = vmatprep.subr.bf16.mxu0 %v2882
      %3030 = vmatpush1.bf16.msra.mxu0 %v2881
      %3031 = vmatprep.subr.bf16.mxu0 %v2884
      %3032 = vmatpush1.bf16.msra.mxu0 %v2883
      %3033 = vmatprep.subr.bf16.mxu0 %v2886
      %3034 = vmatpush1.bf16.msra.mxu0 %v2885
      %3035 = vmatprep.subr.bf16.mxu0 %v2888
      %3036 = vmatpush1.bf16.msra.mxu0 %v2887
      %3037 = vmatprep.subr.bf16.mxu0 %v2890
      %3038 = vmatpush1.bf16.msra.mxu0 %v2889
      %3039 = vmatprep.subr.bf16.mxu0 %v2892
      %3040 = vmatpush1.bf16.msra.mxu0 %v2891
      %3041 = vmatprep.subr.bf16.mxu0 %v2894
      %3042 = vmatpush1.bf16.msra.mxu0 %v2893
      %3043 = vmatprep.subr.bf16.mxu0 %v2896
      %3044 = vmatpush1.bf16.msra.mxu0 %v2895
      %3045 = vmatprep.subr.bf16.mxu0 %v2898
      %3046 = vmatpush1.bf16.msra.mxu0 %v2897
      %3047 = vmatprep.subr.bf16.mxu0 %v2900
      %3048 = vmatpush1.bf16.msra.mxu0 %v2899
      %3049 = vmatprep.subr.bf16.mxu0 %v2902
      %3050 = vmatpush1.bf16.msra.mxu0 %v2901
      %3051 = vmatprep.subr.bf16.mxu0 %v2904
      %3052 = vmatpush1.bf16.msra.mxu0 %v2903
      %3053 = vmatprep.subr.bf16.mxu0 %v2906
      %3054 = vmatpush1.bf16.msra.mxu0 %v2905
      %3055 = vmatprep.subr.bf16.mxu0 %v2908
      %3056 = vmatpush1.bf16.msra.mxu0 %v2907
      %3057 = vmatprep.mubr.bf16.mxu0 %v2587
      %3058 = vmatmul.mubr.bf16.gmra.mrb[0].mxu0 %v2586
      %v3059 = vpop.f32.mrb[0].mxu0
      %v3060 = vadd.f32 %v3019, %v3059
      %v3061 = vpop.f32.mrb[0].mxu0
      %v3062 = vadd.f32 %v3021, %v3061
      %v3063 = vpop.f32.mrb[0].mxu0
      %v3064 = vpop.f32.mrb[0].mxu0
      %3065 = vdwg.mxu0
      %3067 = vrot.lane.b32.xlu0 %v3060, 77
      %v3068 = vpop.permute.xlu0 %3067
      %v3070 = vadd.f32 %v3060, %v3068
      %3072 = vrot.lane.b32.xlu0 %v3060, 26
      %v3073 = vpop.permute.xlu0 %3072
      %3074 = vrot.lane.b32.xlu0 %v3062, 26
      %v3075 = vpop.permute.xlu0 %3074
      %vm3076 = vcmask 211968
      %v3077 = vsel %vm3076, %v3073, %v3075
      %v3079 = vadd.f32 %v3070, %v3077
      %3080 = vrot.lane.b32.xlu0 %v3062, 103
      %v3081 = vpop.permute.xlu0 %3080
      %v3083 = vadd.f32 %v3079, %v3081
      %v3084 = vmul.f32 %v3083, 0.25
      %v3085 = vadd.f32 %v2579, %v3060
      %v3086 = vsub.f32 %v3085, %v3084
      %vm3087 = vcmask 409600
      %v3088 = vsel %vm3087, %v3086, -inf
      %3089 = vmax.xlane.f32.xlu0 %v3088
      %v3090 = vpop.xlane.xlu0 %3089
      %v3091 = vsub.f32 %v3086, %v3090
      %v3092 = vmul.f32 %v3091, 1.442695
      %v3093 = vpow.pop %v3092
      %v3094 = vsel %vm3087, %v3093, 0.0
      %3095 = vadd.xlane.f32.xlu0 %v3094
      %v3096 = vpop.xlane.xlu0 %3095
      %v3097 = vrcp.pop %v3096
      %v3098 = vmul.f32 %v3093, %v3097
      %v3099 = vadd.f32 %v2579, %v3068
      %v3100 = vsub.f32 %v3099, %v3084
      %v3101 = vsel %vm3087, %v3100, -inf
      %3102 = vmax.xlane.f32.xlu0 %v3101
      %v3103 = vpop.xlane.xlu0 %3102
      %v3104 = vsub.f32 %v3100, %v3103
      %v3105 = vmul.f32 %v3104, 1.442695
      %v3106 = vpow.pop %v3105
      %v3107 = vsel %vm3087, %v3106, 0.0
      %3108 = vadd.xlane.f32.xlu0 %v3107
      %v3109 = vpop.xlane.xlu0 %3108
      %v3110 = vrcp.pop %v3109
      %v3111 = vmul.f32 %v3106, %v3110
      %v3112 = vadd.f32 %v2579, %v3077
      %v3113 = vsub.f32 %v3112, %v3084
      %v3114 = vsel %vm3087, %v3113, -inf
      %3115 = vmax.xlane.f32.xlu0 %v3114
      %v3116 = vpop.xlane.xlu0 %3115
      %v3117 = vsub.f32 %v3113, %v3116
      %v3118 = vmul.f32 %v3117, 1.442695
      %v3119 = vpow.pop %v3118
      %v3120 = vsel %vm3087, %v3119, 0.0
      %3121 = vadd.xlane.f32.xlu0 %v3120
      %v3122 = vpop.xlane.xlu0 %3121
      %v3123 = vrcp.pop %v3122
      %v3124 = vmul.f32 %v3119, %v3123
      %v3125 = vadd.f32 %v2579, %v3081
      %v3126 = vsub.f32 %v3125, %v3084
      %v3127 = vsel %vm3087, %v3126, -inf
      %3128 = vmax.xlane.f32.xlu0 %v3127
      %v3129 = vpop.xlane.xlu0 %3128
      %v3130 = vsub.f32 %v3126, %v3129
      %v3131 = vmul.f32 %v3130, 1.442695
      %v3132 = vpow.pop %v3131
      %v3133 = vsel %vm3087, %v3132, 0.0
      %3134 = vadd.xlane.f32.xlu0 %v3133
      %v3135 = vpop.xlane.xlu0 %3134
      %v3136 = vrcp.pop %v3135
      %v3137 = vmul.f32 %v3132, %v3136
      %3139 = vrot.lane.b32.xlu0 %v3111, 51
      %v3140 = vpop.permute.xlu0 %3139
      %3143 = vrot.lane.b32.xlu0 %v3124, 102
      %v3144 = vpop.permute.xlu0 %3143
      %3147 = vrot.lane.b32.xlu0 %v3137, 25
      %v3148 = vpop.permute.xlu0 %3147
      %vm3150 = vcmask 416768
      %v3151 = vsel %vm3150, %v3098, %v3140
      %vm3152 = vcmask 834560
      %v3153 = vsel %vm3152, %v3151, %v3144
      %vm3154 = vcmask 203776
      %v3155 = vsel %vm3154, %v3144, %v3148
      %v3158 = vcombine.low %v3153, %v3155
      %v3160 = vunpack.c.l.s4 1966171168
      %v3161 = vunpack.c.0.s8 %v3160
      %v3162 = vlaneseq
      %v3163 = vshrl.u32 %v3162, 7
      %v3164 = vsub.s32 %v3161, %v3163
      %v3165 = vrot.slane %v3158, %v3164
      %v3167 = vunpack.c.l.s4 1966171168
      %v3168 = vunpack.c.0.s8 %v3167
      %v3169 = vlaneseq
      %v3170 = vshrl.u32 %v3169, 7
      %v3171 = vsub.s32 %v3168, %v3170
      %v3172 = vrot.slane %v3165, %v3171
      %v3174 = vlaneseq
      %vm3175 = vcmp.ge.s32.totalorder %v3174, 0
      %vm3176 = vcmp.lt.s32.totalorder %v3174, 204
      %vm3177 = vmand %vm3175, %vm3176
      %3178 = vst.msk [vmem:[%s443] sm:$0x3] %vm3177, %v3172
      %p3179 = scmp.lt.s32.totalorder %s24, 1
      %s3180 = scalar_select %p3179, %s24, 1
      %s3181 = smul.addr %s3180, 2
      %s3182 = scalar_lea.vmem %s13, %s3181
      // Predicated region
      $region73: #{rainbow_forward.1} parent=71 // pred_check
        %p3183 = pneg %p320
      $region74: #{rainbow_forward.1} parent=71 // pred_check_branch
        %3185 = sbr.rel (%p3183) target = $region76
      $region75: #{rainbow_forward.1} parent=71 // pred_region
        _
      $region76: #{rainbow_forward.1} parent=71 // pred_fallthru
        _
    $region72: #{rainbow_forward.1} parent=5 // pred_fallthru
      _
    %p3186 = scmp.le.s32.totalorder 2, %s19
    // Predicated region
    $region77: #{rainbow_forward.1} parent=5 // pred_check
      %p3187 = pneg %p3186
    $region78: #{rainbow_forward.1} parent=5 // pred_check_branch
      %3189 = sbr.rel (%p3187) target = $region80
    $region79: #{rainbow_forward.1} parent=5 // pred_region
      %s3190 = ssub.s32 %s19, 2
      // Predicated region
      $region81: #{rainbow_forward.1} parent=79 // pred_check
        %p3191 = pneg %p326
      $region82: #{rainbow_forward.1} parent=79 // pred_check_branch
        %3193 = sbr.rel (%p3191) target = $region84
      $region83: #{rainbow_forward.1} parent=79 // pred_region
        %p3194 = scmp.lt.s32.totalorder %s25, 1
        %s3195 = scalar_select %p3194, %s25, 1
        %s3196 = smul.addr %s3195, 2
        %s3197 = scalar_lea.vmem %s13, %s3196
      $region84: #{rainbow_forward.1} parent=79 // pred_fallthru
        _
    $region80: #{rainbow_forward.1} parent=5 // pred_fallthru
      _
  $region6: #{rainbow_forward.1} parent=0 // loop_footer
    %s23 = sadd.s32 1, %s19
  $region7: #{rainbow_forward.1} parent=0 // loop_footer_branch
    %18 = sbr.rel target = $region3
  $region8: #{rainbow_forward.1} parent=0 // loop_exit
    _

</llo_original>
